<compile_context>
chip_gen: v6e
topology: v6e:2x2x1
jax: 0.10.0
libtpu: 0.0.40
codegen_flags: <defaults>
</compile_context>

<pallas_src>
import functools

import numpy as np
import jax
import jax.numpy as jnp
from jax.experimental import pallas as pl
from jax.experimental.pallas import tpu as pltpu


# ----------------------------------------------------------------------------
# Small helpers (static / trace-time only)
# ----------------------------------------------------------------------------
def _round_up(x, m):
    return (x + m - 1) // m * m


def _pre_dtype(io_dtype):
    # Hoisted preactivations: exact f32 on the f32 path; bf16 on the bf16 perf path
    # (halves the (T, BT, 4*H_pad) scratch -> matters under v7x's 64 MiB VMEM).
    return jnp.float32 if np.dtype(io_dtype) == np.dtype(jnp.float32) else np.dtype(io_dtype)


def _estimate_vmem(seq_len, bt, d_pad, h_pad, c_pad, io_dtype):
    """Rough VMEM need (bytes) incl. the pipeline's double-buffered weight blocks."""
    g = 4 * h_pad
    isz = np.dtype(io_dtype).itemsize
    psz = np.dtype(_pre_dtype(io_dtype)).itemsize
    need = 0
    need += 2 * seq_len * bt * d_pad * isz          # layer-0 input block (pipelined)
    need += 2 * d_pad * g * isz                     # W_ih block (double-buffered over layers)
    need += 2 * h_pad * g * isz                     # W_hh block
    need += 2 * g * 4                               # bias block
    need += 2 * h_pad * c_pad * isz + 2 * c_pad * 4 # classifier params
    need += 2 * bt * c_pad * 4                      # output block
    need += seq_len * bt * h_pad * isz              # seq scratch (inter-layer acts)
    need += seq_len * bt * g * psz                  # hoisted preactivation scratch
    need += 2 * bt * h_pad * 4                      # h / c state
    return need


def _pick_tiles(bsz, seq_len, d_pad, h_pad, c_pad, io_dtype, vmem_budget=40 << 20):
    # bf16 packs 16 rows per vreg -> pad batch to 16 sublanes on the bf16 path.
    sub = 16 if np.dtype(io_dtype) == np.dtype(jnp.bfloat16) else 8
    b_pad = _round_up(max(bsz, sub), sub)
    if b_pad > 128:
        # Fixed fallback: round the padded batch up to a multiple of 128 and tile at
        # 128 (never let one tile grow to the whole padded batch and blow VMEM).
        b_pad = _round_up(b_pad, 128)
        batch_tile = 128
    else:
        batch_tile = b_pad
        # Give the "parallel" batch axis >=2 blocks (v7x has 2 TensorCores) when
        # halving still leaves a reasonable MXU M dimension.
        if b_pad % (2 * sub) == 0 and b_pad // 2 >= 32:
            batch_tile = b_pad // 2
    # Shrink the batch tile (keeping it a power-of-two fraction of b_pad) until the
    # resident buffers fit a conservative budget (safe for v7x's 64 MiB per-TC VMEM).
    while (_estimate_vmem(seq_len, batch_tile, d_pad, h_pad, c_pad, io_dtype) > vmem_budget
           and batch_tile > sub and batch_tile % 2 == 0 and (batch_tile // 2) % sub == 0):
        batch_tile //= 2
    return b_pad, batch_tile


# ----------------------------------------------------------------------------
# Fused kernel: all LSTM layers + classifier in one pallas_call.
# ----------------------------------------------------------------------------
def _fused_lstm_fc_kernel(
    x_ref,      # (T, BT, Dp)      io_dtype  layer-0 input sequence (time-major, padded)
    wih_ref,    # (Dp, 4*Hp)       io_dtype  this layer's fused input->hidden weights
    whh_ref,    # (Hp, 4*Hp)       io_dtype  this layer's fused hidden->hidden weights
    b_ref,      # (1, 4*Hp)        f32       b_ih + b_hh, gate-major
    fcw_ref,    # (Hp, Cp)         io_dtype  classifier weight (pre-transposed, padded)
    fcb_ref,    # (1, Cp)          f32       classifier bias (padded)
    out_ref,    # (BT, Cp)         f32       logits for this batch tile
    seq_sc,     # (T, BT, Hp)      io_dtype  VMEM: this layer's output sequence
    pre_sc,     # (T, BT, 4*Hp)    pre_dtype VMEM: hoisted input preactivations
    h_sc,       # (BT, Hp)         f32       recurrent hidden state
    c_sc,       # (BT, Hp)         f32       recurrent cell state
    *,
    seq_len, h_pad, d_pad, num_layers, io_dtype, unroll,
):
    layer = pl.program_id(1)  # inner, sequential ("arbitrary") grid axis
    bt = h_sc.shape[0]
    g = 4 * h_pad

    # ---- Hoisted input projection: ONE big MXU matmul off the serial chain. ----
    # Layer 0 reads the pipelined input block directly (no VMEM->VMEM copy);
    # deeper layers read the previous layer's h sequence from the resident scratch.
    # Padded gate columns get zero weights + zero bias -> padded h/c stay exactly 0.
    @pl.when(layer == 0)
    def _():
        xs = x_ref[...].reshape(seq_len * bt, d_pad)
        p = jnp.dot(xs, wih_ref[...], preferred_element_type=jnp.float32) + b_ref[...]
        pre_sc[...] = p.reshape(seq_len, bt, g).astype(pre_sc.dtype)

    if num_layers > 1:
        @pl.when(layer > 0)
        def _():
            hs = seq_sc[...].reshape(seq_len * bt, h_pad)
            w = wih_ref[...] if d_pad == h_pad else wih_ref[0:h_pad, :]
            p = jnp.dot(hs, w, preferred_element_type=jnp.float32) + b_ref[...]
            pre_sc[...] = p.reshape(seq_len, bt, g).astype(pre_sc.dtype)

    # PyTorch nn.LSTM starts every layer from h0 = c0 = 0.
    h_sc[...] = jnp.zeros_like(h_sc)
    c_sc[...] = jnp.zeros_like(c_sc)

    # ---- Serial recurrence: one fused (BT,Hp) @ (Hp,4*Hp) matmul per timestep. ----
    def step(t, carry):
        h = h_sc[...]
        c = c_sc[...]
        gates = pre_sc[t].astype(jnp.float32) + jnp.dot(
            h.astype(io_dtype), whh_ref[...], preferred_element_type=jnp.float32)
        # Gate slices are 128-lane-aligned (Hp is a multiple of 128).  Order: i,f,g,o.
        # sigmoid/tanh lower to single EUP ops; elementwise mixes stay on the VPU.
        i_g = jax.nn.sigmoid(gates[:, 0:h_pad])
        f_g = jax.nn.sigmoid(gates[:, h_pad:2 * h_pad])
        g_g = jnp.tanh(gates[:, 2 * h_pad:3 * h_pad])
        o_g = jax.nn.sigmoid(gates[:, 3 * h_pad:4 * h_pad])
        c_new = f_g * c + i_g * g_g
        h_new = o_g * jnp.tanh(c_new)
        h_sc[...] = h_new
        c_sc[...] = c_new
        # Full-lane store of h_t as the next layer's input at time t (harmless and
        # cheap on the last layer).
        seq_sc[t] = h_new.astype(seq_sc.dtype)
        return carry

    jax.lax.fori_loop(0, seq_len, step, 0, unroll=unroll)

    # Last layer: fuse the classifier and emit only the (BT, Cp) logits — the full
    # (T, B, H) hidden sequence never leaves VMEM.
    @pl.when(layer == num_layers - 1)
    def _():
        out_ref[...] = (
            jnp.dot(h_sc[...].astype(io_dtype), fcw_ref[...],
                    preferred_element_type=jnp.float32)
            + fcb_ref[...]
        ).astype(out_ref.dtype)


def _fused_forward(x_pad, w_ih, w_hh, bias, fc_w, fc_b, *, batch_tile):
    """x_pad: (T, B_pad, Dp) time-major, batch/feature padded.  Returns (B_pad, Cp) f32."""
    seq_len, b_pad, d_pad = x_pad.shape
    num_layers, h_pad, g = w_hh.shape
    c_pad = fc_w.shape[1]
    io_dtype = w_ih.dtype
    pre_dtype = _pre_dtype(io_dtype)
    n_btiles = b_pad // batch_tile

    # Short sequences: full unroll.  Large tiles: small unroll (each unrolled step
    # keeps several (BT, 4*Hp) f32 intermediates live -> vreg spills otherwise).
    if seq_len <= 8:
        unroll = seq_len
    elif batch_tile * h_pad <= 64 * 128:
        unroll = 4
    else:
        unroll = 2

    need = _estimate_vmem(seq_len, batch_tile, d_pad, h_pad, c_pad, io_dtype)
    vmem_limit = int(min(max(need * 1.4 + (2 << 20), 16 << 20), 96 << 20))

    kernel = functools.partial(
        _fused_lstm_fc_kernel,
        seq_len=seq_len, h_pad=h_pad, d_pad=d_pad,
        num_layers=num_layers, io_dtype=io_dtype, unroll=unroll,
    )

    return pl.pallas_call(
        kernel,
        out_shape=jax.ShapeDtypeStruct((b_pad, c_pad), jnp.float32),
        grid_spec=pltpu.PrefetchScalarGridSpec(
            num_scalar_prefetch=0,
            grid=(n_btiles, num_layers),
            in_specs=[
                # layer-0 input for this batch tile: constant over the layer axis
                # -> DMA'd once per batch tile.
                pl.BlockSpec((seq_len, batch_tile, d_pad), lambda b, l: (0, b, 0)),
                # per-layer fused weights: block index follows the layer axis so the
                # pipeline prefetches layer l+1's weights while layer l computes.
                pl.BlockSpec((None, d_pad, g), lambda b, l: (l, 0, 0)),
                pl.BlockSpec((None, h_pad, g), lambda b, l: (l, 0, 0)),
                pl.BlockSpec((None, 1, g), lambda b, l: (l, 0, 0)),
                # classifier params: tiny, constant index map -> resident.
                pl.BlockSpec((h_pad, c_pad), lambda b, l: (0, 0)),
                pl.BlockSpec((1, c_pad), lambda b, l: (0, 0)),
            ],
            out_specs=pl.BlockSpec((batch_tile, c_pad), lambda b, l: (b, 0)),
            scratch_shapes=[
                pltpu.VMEM((seq_len, batch_tile, h_pad), io_dtype),   # inter-layer acts
                pltpu.VMEM((seq_len, batch_tile, g), pre_dtype),      # hoisted preacts
                pltpu.VMEM((batch_tile, h_pad), jnp.float32),         # h state (f32)
                pltpu.VMEM((batch_tile, h_pad), jnp.float32),         # c state (f32)
            ],
        ),
        compiler_params=pltpu.CompilerParams(
            # batch tiles are independent -> "parallel" (sharded across TCs on v7x);
            # the layer axis carries VMEM-resident state -> "arbitrary" (sequential).
            dimension_semantics=("parallel", "arbitrary"),
            vmem_limit_bytes=vmem_limit,
        ),
    )(x_pad, w_ih, w_hh, bias, fc_w, fc_b)


# ----------------------------------------------------------------------------
# Public forward (weights are pre-packed once by prepare_params).
# ----------------------------------------------------------------------------
@functools.partial(jax.jit, static_argnames=("num_classes",))
def lstm_classifier_forward(x_btd, w_ih, w_hh, bias, fc_w, fc_b, *, num_classes):
    """x_btd: (B, T, input_dim) f32.  Returns (B, num_classes) f32 logits."""
    bsz, seq_len, in_dim = x_btd.shape
    d_pad = w_ih.shape[1]
    h_pad = w_hh.shape[1]
    c_pad = fc_w.shape[1]
    io_dtype = w_ih.dtype
    b_pad, batch_tile = _pick_tiles(bsz, seq_len, d_pad, h_pad, c_pad, io_dtype)
    x = jnp.transpose(x_btd, (1, 0, 2)).astype(io_dtype)       # time-major (T, B, D)
    x = jnp.pad(x, ((0, 0), (0, b_pad - bsz), (0, d_pad - in_dim)))
    logits = _fused_forward(x, w_ih, w_hh, bias, fc_w, fc_b, batch_tile=batch_tile)
    return logits[:bsz, :num_classes]


def prepare_params(params, io_dtype=jnp.float32):
    """One-time repack of PyTorch-layout params (done OUTSIDE the jitted forward).

    Gate-major fused weights: W_ih -> (L, Dp, 4*Hp), W_hh -> (L, Hp, 4*Hp), with
    gate k occupying lane-aligned columns [k*Hp, (k+1)*Hp).  Hp = round_up(H, 128),
    Dp = max(round_up(input_dim, 128), Hp).  All padding is explicit zeros (padded
    gate columns + zero bias keep the padded h/c columns exactly zero), biases are
    pre-summed, the classifier weight is pre-transposed and padded to (Hp, Cp).
    """
    lstm = params["lstm"]
    hidden = lstm[0][1].shape[1]                  # w_hh: (4H, H)
    in_dim = lstm[0][0].shape[1]                  # layer-0 w_ih: (4H, D)
    h_pad = _round_up(hidden, 128)
    g = 4 * h_pad
    d_pad = max(_round_up(in_dim, 128), h_pad)

    wih_l, whh_l, b_l = [], [], []
    for (w_ih, w_hh, b_ih, b_hh) in lstm:
        d_in = w_ih.shape[1]
        # (4H, d_in) -> (4, d_in, H) -> pad -> (4, Dp, Hp) -> (Dp, 4*Hp) gate-major
        gih = jnp.transpose(w_ih.reshape(4, hidden, d_in), (0, 2, 1))
        gih = jnp.pad(gih, ((0, 0), (0, d_pad - d_in), (0, h_pad - hidden)))
        wih_l.append(jnp.transpose(gih, (1, 0, 2)).reshape(d_pad, g))
        ghh = jnp.transpose(w_hh.reshape(4, hidden, hidden), (0, 2, 1))
        ghh = jnp.pad(ghh, ((0, 0), (0, h_pad - hidden), (0, h_pad - hidden)))
        whh_l.append(jnp.transpose(ghh, (1, 0, 2)).reshape(h_pad, g))
        gb = jnp.pad((b_ih + b_hh).reshape(4, hidden), ((0, 0), (0, h_pad - hidden)))
        b_l.append(gb.reshape(1, g))

    w_ih_all = jnp.stack(wih_l).astype(io_dtype)       # (L, Dp, 4*Hp)
    w_hh_all = jnp.stack(whh_l).astype(io_dtype)       # (L, Hp, 4*Hp)
    bias_all = jnp.stack(b_l).astype(jnp.float32)      # (L, 1, 4*Hp)  gate math stays f32

    n_classes = params["fc_w"].shape[0]
    c_pad = _round_up(n_classes, 128)
    fc_w = jnp.transpose(params["fc_w"])                                   # (H, C)
    fc_w = jnp.pad(fc_w, ((0, h_pad - hidden), (0, c_pad - n_classes))).astype(io_dtype)
    fc_b = jnp.pad(params["fc_b"], (0, c_pad - n_classes)).reshape(1, c_pad).astype(jnp.float32)
    return w_ih_all, w_hh_all, bias_all, fc_w, fc_b


# ----------------------------------------------------------------------------
# Deterministic parameter init (PyTorch-style uniform(-1/sqrt(H), 1/sqrt(H)))
# ----------------------------------------------------------------------------
def init_params(key, input_dim, hidden_dim, num_layers, num_classes):
    k = 1.0 / jnp.sqrt(hidden_dim)
    lstm_params = []
    for layer in range(num_layers):
        d_in = input_dim if layer == 0 else hidden_dim
        key, k1, k2, k3, k4 = jax.random.split(key, 5)
        w_ih = jax.random.uniform(k1, (4 * hidden_dim, d_in), jnp.float32, -k, k)
        w_hh = jax.random.uniform(k2, (4 * hidden_dim, hidden_dim), jnp.float32, -k, k)
        b_ih = jax.random.uniform(k3, (4 * hidden_dim,), jnp.float32, -k, k)
        b_hh = jax.random.uniform(k4, (4 * hidden_dim,), jnp.float32, -k, k)
        lstm_params.append((w_ih, w_hh, b_ih, b_hh))
    key, kf1, kf2 = jax.random.split(key, 3)
    fc_w = jax.random.uniform(kf1, (num_classes, hidden_dim), jnp.float32, -k, k)
    fc_b = jax.random.uniform(kf2, (num_classes,), jnp.float32, -k, k)
    return {"lstm": lstm_params, "fc_w": fc_w, "fc_b": fc_b}


# ----------------------------------------------------------------------------
# Pure-JAX reference (semantics check vs. the fused Pallas kernel)
# ----------------------------------------------------------------------------
def ref_forward(x_btd, params):
    B = x_btd.shape[0]
    h_seq = x_btd
    for (w_ih, w_hh, b_ih, b_hh) in params["lstm"]:
        H = w_hh.shape[1]

        def step(carry, x_t):
            h, c = carry
            gates = x_t @ w_ih.T + h @ w_hh.T + b_ih + b_hh
            i = jax.nn.sigmoid(gates[:, :H])
            f = jax.nn.sigmoid(gates[:, H:2 * H])
            g = jnp.tanh(gates[:, 2 * H:3 * H])
            o = jax.nn.sigmoid(gates[:, 3 * H:])
            c = f * c + i * g
            h = o * jnp.tanh(c)
            return (h, c), h

        init = (jnp.zeros((B, H), jnp.float32), jnp.zeros((B, H), jnp.float32))
        _, hs = jax.lax.scan(step, init, jnp.transpose(h_seq, (1, 0, 2)))
        h_seq = jnp.transpose(hs, (1, 0, 2))
    last = h_seq[:, -1, :]
    return last @ params["fc_w"].T + params["fc_b"]


# ----------------------------------------------------------------------------
if __name__ == "__main__":
    B, T = 2, 8
    input_dim, hidden_dim, num_layers, num_classes = 16, 32, 2, 4

    key = jax.random.PRNGKey(0)
    key, kx, kp = jax.random.split(key, 3)
    x = jax.random.normal(kx, (B, T, input_dim), jnp.float32)
    params = init_params(kp, input_dim, hidden_dim, num_layers, num_classes)

    ref = jax.block_until_ready(ref_forward(x, params))

    # f32 path: matches the PyTorch f32 module semantics.
    packed_f32 = prepare_params(params, io_dtype=jnp.float32)
    out = jax.block_until_ready(
        lstm_classifier_forward(x, *packed_f32, num_classes=num_classes))
    assert out.shape == (B, num_classes)
    assert jnp.allclose(out, ref, rtol=5e-4, atol=1e-5), (out, ref)

    # bf16 weights / activations / preactivations, f32 state + f32 MXU accumulation
    # (perf path: 2x MXU rate, half the weight/activation traffic) — loose tolerance.
    packed_bf16 = prepare_params(params, io_dtype=jnp.bfloat16)
    out_bf16 = jax.block_until_ready(
        lstm_classifier_forward(x, *packed_bf16, num_classes=num_classes))
    assert out_bf16.shape == (B, num_classes)
    assert jnp.all(jnp.isfinite(out_bf16))
    assert jnp.allclose(out_bf16, ref, rtol=5e-2, atol=2e-1), (out_bf16, ref)

    print("KERNEL_OK")
</pallas_src>

<mosaic_0001>
module attributes {stable_mosaic.version = 11 : i64} {
  func.func @_fused_lstm_fc_kernel(%arg0: i32, %arg1: i32, %arg2: memref<8x8x128xf32, #tpu.memory_space<vmem>>, %arg3: memref<1x128x512xf32, #tpu.memory_space<vmem>>, %arg4: memref<1x128x512xf32, #tpu.memory_space<vmem>>, %arg5: memref<1x1x512xf32, #tpu.memory_space<vmem>>, %arg6: memref<128x128xf32, #tpu.memory_space<vmem>>, %arg7: memref<1x128xf32, #tpu.memory_space<vmem>>, %arg8: memref<8x128xf32, #tpu.memory_space<vmem>>, %arg9: memref<8x8x128xf32, #tpu.memory_space<vmem>>, %arg10: memref<8x8x512xf32, #tpu.memory_space<vmem>>, %arg11: memref<8x128xf32, #tpu.memory_space<vmem>>, %arg12: memref<8x128xf32, #tpu.memory_space<vmem>>) attributes {dimension_semantics = [#tpu.dimension_semantics<parallel>, #tpu.dimension_semantics<arbitrary>], iteration_bounds = array<i64: 1, 2>, scalar_prefetch = 0 : i64, scratch_operands = 4 : i64, tpu.core_type = #tpu.core_type<tc>, window_params = [{transform_indices = @transform_0, window_bounds = array<i64: 8, 8, 128>}, {transform_indices = @transform_1, window_bounds = array<i64: 1, 128, 512>}, {transform_indices = @transform_2, window_bounds = array<i64: 1, 128, 512>}, {transform_indices = @transform_3, window_bounds = array<i64: 1, 1, 512>}, {pipeline_mode = #tpu.pipeline_mode<synchronous>, transform_indices = @transform_4, window_bounds = array<i64: 128, 128>}, {pipeline_mode = #tpu.pipeline_mode<synchronous>, transform_indices = @transform_5, window_bounds = array<i64: 1, 128>}, {transform_indices = @transform_6, window_bounds = array<i64: 8, 128>}]} {
    %c0_i32 = arith.constant 0 : i32
    %0 = arith.cmpi eq, %arg1, %c0_i32 : i32
    %1 = arith.extui %0 : i1 to i32
    %c0_i32_0 = arith.constant 0 : i32
    %2 = arith.cmpi ne, %1, %c0_i32_0 : i32
    scf.if %2 {
      %c0_162 = arith.constant 0 : index
      %c0_163 = arith.constant 0 : index
      %c0_164 = arith.constant 0 : index
      %333 = vector.load %arg2[%c0_162, %c0_163, %c0_164] : memref<8x8x128xf32, #tpu.memory_space<vmem>>, vector<8x8x128xf32>
      %334 = vector.shape_cast %333 : vector<8x8x128xf32> to vector<64x128xf32>
      %c0_165 = arith.constant 0 : index
      %c0_166 = arith.constant 0 : index
      %c0_167 = arith.constant 0 : index
      %335 = vector.load %arg3[%c0_165, %c0_166, %c0_167] : memref<1x128x512xf32, #tpu.memory_space<vmem>>, vector<1x128x512xf32>
      %336 = vector.shape_cast %335 : vector<1x128x512xf32> to vector<128x512xf32>
      %cst_168 = arith.constant dense<0.000000e+00> : vector<64x512xf32>
      %337 = tpu.matmul %334, %336, %cst_168 {dimension_numbers = #tpu.dot_dimension_numbers<[1], [0], [0], [1], [0, 0, 1, 1], [], []>} : vector<64x128xf32>, vector<128x512xf32>, vector<64x512xf32> -> vector<64x512xf32>
      %c0_169 = arith.constant 0 : index
      %c0_170 = arith.constant 0 : index
      %c0_171 = arith.constant 0 : index
      %338 = vector.load %arg5[%c0_169, %c0_170, %c0_171] : memref<1x1x512xf32, #tpu.memory_space<vmem>>, vector<1x1x512xf32>
      %339 = vector.shape_cast %338 : vector<1x1x512xf32> to vector<1x512xf32>
      %340 = vector.broadcast %339 : vector<1x512xf32> to vector<64x512xf32>
      %341 = arith.addf %337, %340 : vector<64x512xf32>
      %342 = vector.shape_cast %341 : vector<64x512xf32> to vector<8x8x512xf32>
      %c0_172 = arith.constant 0 : index
      %c0_173 = arith.constant 0 : index
      %c0_174 = arith.constant 0 : index
      %343 = vector.load %arg10[%c0_172, %c0_173, %c0_174] : memref<8x8x512xf32, #tpu.memory_space<vmem>>, vector<8x8x512xf32>
      tpu.vector_store %arg10[%c0_172, %c0_173, %c0_174], %342 {strides = array<i32>} : memref<8x8x512xf32, #tpu.memory_space<vmem>>, vector<8x8x512xf32>,
    } else {
    }
    %c0_i32_1 = arith.constant 0 : i32
    %3 = arith.cmpi sgt, %arg1, %c0_i32_1 : i32
    %4 = arith.extui %3 : i1 to i32
    %c0_i32_2 = arith.constant 0 : i32
    %5 = arith.cmpi ne, %4, %c0_i32_2 : i32
    scf.if %5 {
      %c0_162 = arith.constant 0 : index
      %c0_163 = arith.constant 0 : index
      %c0_164 = arith.constant 0 : index
      %333 = vector.load %arg9[%c0_162, %c0_163, %c0_164] : memref<8x8x128xf32, #tpu.memory_space<vmem>>, vector<8x8x128xf32>
      %334 = vector.shape_cast %333 : vector<8x8x128xf32> to vector<64x128xf32>
      %c0_165 = arith.constant 0 : index
      %c0_166 = arith.constant 0 : index
      %c0_167 = arith.constant 0 : index
      %335 = vector.load %arg3[%c0_165, %c0_166, %c0_167] : memref<1x128x512xf32, #tpu.memory_space<vmem>>, vector<1x128x512xf32>
      %336 = vector.shape_cast %335 : vector<1x128x512xf32> to vector<128x512xf32>
      %cst_168 = arith.constant dense<0.000000e+00> : vector<64x512xf32>
      %337 = tpu.matmul %334, %336, %cst_168 {dimension_numbers = #tpu.dot_dimension_numbers<[1], [0], [0], [1], [0, 0, 1, 1], [], []>} : vector<64x128xf32>, vector<128x512xf32>, vector<64x512xf32> -> vector<64x512xf32>
      %c0_169 = arith.constant 0 : index
      %c0_170 = arith.constant 0 : index
      %c0_171 = arith.constant 0 : index
      %338 = vector.load %arg5[%c0_169, %c0_170, %c0_171] : memref<1x1x512xf32, #tpu.memory_space<vmem>>, vector<1x1x512xf32>
      %339 = vector.shape_cast %338 : vector<1x1x512xf32> to vector<1x512xf32>
      %340 = vector.broadcast %339 : vector<1x512xf32> to vector<64x512xf32>
      %341 = arith.addf %337, %340 : vector<64x512xf32>
      %342 = vector.shape_cast %341 : vector<64x512xf32> to vector<8x8x512xf32>
      %c0_172 = arith.constant 0 : index
      %c0_173 = arith.constant 0 : index
      %c0_174 = arith.constant 0 : index
      %343 = vector.load %arg10[%c0_172, %c0_173, %c0_174] : memref<8x8x512xf32, #tpu.memory_space<vmem>>, vector<8x8x512xf32>
      tpu.vector_store %arg10[%c0_172, %c0_173, %c0_174], %342 {strides = array<i32>} : memref<8x8x512xf32, #tpu.memory_space<vmem>>, vector<8x8x512xf32>,
    } else {
    }
    %cst = arith.constant 0.000000e+00 : f32
    %6 = vector.broadcast %cst : f32 to vector<8x128xf32>
    %c0 = arith.constant 0 : index
    %c0_3 = arith.constant 0 : index
    %7 = vector.load %arg11[%c0, %c0_3] : memref<8x128xf32, #tpu.memory_space<vmem>>, vector<8x128xf32>
    tpu.vector_store %arg11[%c0, %c0_3], %6 {strides = array<i32>} : memref<8x128xf32, #tpu.memory_space<vmem>>, vector<8x128xf32>,
    %cst_4 = arith.constant 0.000000e+00 : f32
    %8 = vector.broadcast %cst_4 : f32 to vector<8x128xf32>
    %c0_5 = arith.constant 0 : index
    %c0_6 = arith.constant 0 : index
    %9 = vector.load %arg12[%c0_5, %c0_6] : memref<8x128xf32, #tpu.memory_space<vmem>>, vector<8x128xf32>
    tpu.vector_store %arg12[%c0_5, %c0_6], %8 {strides = array<i32>} : memref<8x128xf32, #tpu.memory_space<vmem>>, vector<8x128xf32>,
    %c0_i32_7 = arith.constant 0 : i32
    %c0_8 = arith.constant 0 : index
    %c0_9 = arith.constant 0 : index
    %10 = vector.load %arg11[%c0_8, %c0_9] : memref<8x128xf32, #tpu.memory_space<vmem>>, vector<8x128xf32>
    %c0_10 = arith.constant 0 : index
    %c0_11 = arith.constant 0 : index
    %11 = vector.load %arg12[%c0_10, %c0_11] : memref<8x128xf32, #tpu.memory_space<vmem>>, vector<8x128xf32>
    %12 = arith.index_cast %c0_i32_7 : i32 to index
    %c0_12 = arith.constant 0 : index
    %c0_13 = arith.constant 0 : index
    %13 = vector.load %arg10[%12, %c0_12, %c0_13] : memref<8x8x512xf32, #tpu.memory_space<vmem>>, vector<1x8x512xf32>
    %14 = vector.shape_cast %13 : vector<1x8x512xf32> to vector<8x512xf32>
    %c0_14 = arith.constant 0 : index
    %c0_15 = arith.constant 0 : index
    %c0_16 = arith.constant 0 : index
    %15 = vector.load %arg4[%c0_14, %c0_15, %c0_16] : memref<1x128x512xf32, #tpu.memory_space<vmem>>, vector<1x128x512xf32>
    %16 = vector.shape_cast %15 : vector<1x128x512xf32> to vector<128x512xf32>
    %cst_17 = arith.constant dense<0.000000e+00> : vector<8x512xf32>
    %17 = tpu.matmul %10, %16, %cst_17 {dimension_numbers = #tpu.dot_dimension_numbers<[1], [0], [0], [1], [0, 0, 1, 1], [], []>} : vector<8x128xf32>, vector<128x512xf32>, vector<8x512xf32> -> vector<8x512xf32>
    %18 = arith.addf %14, %17 : vector<8x512xf32>
    %19 = vector.extract_strided_slice %18 {offsets = [0, 0], sizes = [8, 128], strides = [1, 1]} : vector<8x512xf32> to vector<8x128xf32>
    %20 = arith.negf %19 : vector<8x128xf32>
    %21 = math.exp %20 : vector<8x128xf32>
    %cst_18 = arith.constant 1.000000e+00 : f32
    %22 = vector.broadcast %cst_18 : f32 to vector<8x128xf32>
    %23 = arith.addf %22, %21 : vector<8x128xf32>
    %24 = arith.divf %22, %23 : vector<8x128xf32>
    %25 = vector.extract_strided_slice %18 {offsets = [0, 128], sizes = [8, 128], strides = [1, 1]} : vector<8x512xf32> to vector<8x128xf32>
    %26 = arith.negf %25 : vector<8x128xf32>
    %27 = math.exp %26 : vector<8x128xf32>
    %cst_19 = arith.constant 1.000000e+00 : f32
    %28 = vector.broadcast %cst_19 : f32 to vector<8x128xf32>
    %29 = arith.addf %28, %27 : vector<8x128xf32>
    %30 = arith.divf %28, %29 : vector<8x128xf32>
    %31 = vector.extract_strided_slice %18 {offsets = [0, 256], sizes = [8, 128], strides = [1, 1]} : vector<8x512xf32> to vector<8x128xf32>
    %32 = math.tanh %31 : vector<8x128xf32>
    %33 = vector.extract_strided_slice %18 {offsets = [0, 384], sizes = [8, 128], strides = [1, 1]} : vector<8x512xf32> to vector<8x128xf32>
    %34 = arith.negf %33 : vector<8x128xf32>
    %35 = math.exp %34 : vector<8x128xf32>
    %cst_20 = arith.constant 1.000000e+00 : f32
    %36 = vector.broadcast %cst_20 : f32 to vector<8x128xf32>
    %37 = arith.addf %36, %35 : vector<8x128xf32>
    %38 = arith.divf %36, %37 : vector<8x128xf32>
    %39 = arith.mulf %30, %11 : vector<8x128xf32>
    %40 = arith.mulf %24, %32 : vector<8x128xf32>
    %41 = arith.addf %39, %40 : vector<8x128xf32>
    %42 = math.tanh %41 : vector<8x128xf32>
    %43 = arith.mulf %38, %42 : vector<8x128xf32>
    %c0_21 = arith.constant 0 : index
    %c0_22 = arith.constant 0 : index
    %44 = vector.load %arg11[%c0_21, %c0_22] : memref<8x128xf32, #tpu.memory_space<vmem>>, vector<8x128xf32>
    tpu.vector_store %arg11[%c0_21, %c0_22], %43 {strides = array<i32>} : memref<8x128xf32, #tpu.memory_space<vmem>>, vector<8x128xf32>,
    %c0_23 = arith.constant 0 : index
    %c0_24 = arith.constant 0 : index
    %45 = vector.load %arg12[%c0_23, %c0_24] : memref<8x128xf32, #tpu.memory_space<vmem>>, vector<8x128xf32>
    tpu.vector_store %arg12[%c0_23, %c0_24], %41 {strides = array<i32>} : memref<8x128xf32, #tpu.memory_space<vmem>>, vector<8x128xf32>,
    %46 = arith.index_cast %c0_i32_7 : i32 to index
    %c0_25 = arith.constant 0 : index
    %c0_26 = arith.constant 0 : index
    %47 = vector.load %arg9[%46, %c0_25, %c0_26] : memref<8x8x128xf32, #tpu.memory_space<vmem>>, vector<1x8x128xf32>
    %48 = vector.shape_cast %47 : vector<1x8x128xf32> to vector<8x128xf32>
    %49 = vector.shape_cast %43 : vector<8x128xf32> to vector<1x8x128xf32>
    tpu.vector_store %arg9[%46, %c0_25, %c0_26], %49 {strides = array<i32>} : memref<8x8x128xf32, #tpu.memory_space<vmem>>, vector<1x8x128xf32>,
    %c1_i32 = arith.constant 1 : i32
    %c0_27 = arith.constant 0 : index
    %c0_28 = arith.constant 0 : index
    %50 = vector.load %arg11[%c0_27, %c0_28] : memref<8x128xf32, #tpu.memory_space<vmem>>, vector<8x128xf32>
    %c0_29 = arith.constant 0 : index
    %c0_30 = arith.constant 0 : index
    %51 = vector.load %arg12[%c0_29, %c0_30] : memref<8x128xf32, #tpu.memory_space<vmem>>, vector<8x128xf32>
    %52 = arith.index_cast %c1_i32 : i32 to index
    %c0_31 = arith.constant 0 : index
    %c0_32 = arith.constant 0 : index
    %53 = vector.load %arg10[%52, %c0_31, %c0_32] : memref<8x8x512xf32, #tpu.memory_space<vmem>>, vector<1x8x512xf32>
    %54 = vector.shape_cast %53 : vector<1x8x512xf32> to vector<8x512xf32>
    %c0_33 = arith.constant 0 : index
    %c0_34 = arith.constant 0 : index
    %c0_35 = arith.constant 0 : index
    %55 = vector.load %arg4[%c0_33, %c0_34, %c0_35] : memref<1x128x512xf32, #tpu.memory_space<vmem>>, vector<1x128x512xf32>
    %56 = vector.shape_cast %55 : vector<1x128x512xf32> to vector<128x512xf32>
    %cst_36 = arith.constant dense<0.000000e+00> : vector<8x512xf32>
    %57 = tpu.matmul %50, %56, %cst_36 {dimension_numbers = #tpu.dot_dimension_numbers<[1], [0], [0], [1], [0, 0, 1, 1], [], []>} : vector<8x128xf32>, vector<128x512xf32>, vector<8x512xf32> -> vector<8x512xf32>
    %58 = arith.addf %54, %57 : vector<8x512xf32>
    %59 = vector.extract_strided_slice %58 {offsets = [0, 0], sizes = [8, 128], strides = [1, 1]} : vector<8x512xf32> to vector<8x128xf32>
    %60 = arith.negf %59 : vector<8x128xf32>
    %61 = math.exp %60 : vector<8x128xf32>
    %cst_37 = arith.constant 1.000000e+00 : f32
    %62 = vector.broadcast %cst_37 : f32 to vector<8x128xf32>
    %63 = arith.addf %62, %61 : vector<8x128xf32>
    %64 = arith.divf %62, %63 : vector<8x128xf32>
    %65 = vector.extract_strided_slice %58 {offsets = [0, 128], sizes = [8, 128], strides = [1, 1]} : vector<8x512xf32> to vector<8x128xf32>
    %66 = arith.negf %65 : vector<8x128xf32>
    %67 = math.exp %66 : vector<8x128xf32>
    %cst_38 = arith.constant 1.000000e+00 : f32
    %68 = vector.broadcast %cst_38 : f32 to vector<8x128xf32>
    %69 = arith.addf %68, %67 : vector<8x128xf32>
    %70 = arith.divf %68, %69 : vector<8x128xf32>
    %71 = vector.extract_strided_slice %58 {offsets = [0, 256], sizes = [8, 128], strides = [1, 1]} : vector<8x512xf32> to vector<8x128xf32>
    %72 = math.tanh %71 : vector<8x128xf32>
    %73 = vector.extract_strided_slice %58 {offsets = [0, 384], sizes = [8, 128], strides = [1, 1]} : vector<8x512xf32> to vector<8x128xf32>
    %74 = arith.negf %73 : vector<8x128xf32>
    %75 = math.exp %74 : vector<8x128xf32>
    %cst_39 = arith.constant 1.000000e+00 : f32
    %76 = vector.broadcast %cst_39 : f32 to vector<8x128xf32>
    %77 = arith.addf %76, %75 : vector<8x128xf32>
    %78 = arith.divf %76, %77 : vector<8x128xf32>
    %79 = arith.mulf %70, %51 : vector<8x128xf32>
    %80 = arith.mulf %64, %72 : vector<8x128xf32>
    %81 = arith.addf %79, %80 : vector<8x128xf32>
    %82 = math.tanh %81 : vector<8x128xf32>
    %83 = arith.mulf %78, %82 : vector<8x128xf32>
    %c0_40 = arith.constant 0 : index
    %c0_41 = arith.constant 0 : index
    %84 = vector.load %arg11[%c0_40, %c0_41] : memref<8x128xf32, #tpu.memory_space<vmem>>, vector<8x128xf32>
    tpu.vector_store %arg11[%c0_40, %c0_41], %83 {strides = array<i32>} : memref<8x128xf32, #tpu.memory_space<vmem>>, vector<8x128xf32>,
    %c0_42 = arith.constant 0 : index
    %c0_43 = arith.constant 0 : index
    %85 = vector.load %arg12[%c0_42, %c0_43] : memref<8x128xf32, #tpu.memory_space<vmem>>, vector<8x128xf32>
    tpu.vector_store %arg12[%c0_42, %c0_43], %81 {strides = array<i32>} : memref<8x128xf32, #tpu.memory_space<vmem>>, vector<8x128xf32>,
    %86 = arith.index_cast %c1_i32 : i32 to index
    %c0_44 = arith.constant 0 : index
    %c0_45 = arith.constant 0 : index
    %87 = vector.load %arg9[%86, %c0_44, %c0_45] : memref<8x8x128xf32, #tpu.memory_space<vmem>>, vector<1x8x128xf32>
    %88 = vector.shape_cast %87 : vector<1x8x128xf32> to vector<8x128xf32>
    %89 = vector.shape_cast %83 : vector<8x128xf32> to vector<1x8x128xf32>
    tpu.vector_store %arg9[%86, %c0_44, %c0_45], %89 {strides = array<i32>} : memref<8x8x128xf32, #tpu.memory_space<vmem>>, vector<1x8x128xf32>,
    %c2_i32 = arith.constant 2 : i32
    %c0_46 = arith.constant 0 : index
    %c0_47 = arith.constant 0 : index
    %90 = vector.load %arg11[%c0_46, %c0_47] : memref<8x128xf32, #tpu.memory_space<vmem>>, vector<8x128xf32>
    %c0_48 = arith.constant 0 : index
    %c0_49 = arith.constant 0 : index
    %91 = vector.load %arg12[%c0_48, %c0_49] : memref<8x128xf32, #tpu.memory_space<vmem>>, vector<8x128xf32>
    %92 = arith.index_cast %c2_i32 : i32 to index
    %c0_50 = arith.constant 0 : index
    %c0_51 = arith.constant 0 : index
    %93 = vector.load %arg10[%92, %c0_50, %c0_51] : memref<8x8x512xf32, #tpu.memory_space<vmem>>, vector<1x8x512xf32>
    %94 = vector.shape_cast %93 : vector<1x8x512xf32> to vector<8x512xf32>
    %c0_52 = arith.constant 0 : index
    %c0_53 = arith.constant 0 : index
    %c0_54 = arith.constant 0 : index
    %95 = vector.load %arg4[%c0_52, %c0_53, %c0_54] : memref<1x128x512xf32, #tpu.memory_space<vmem>>, vector<1x128x512xf32>
    %96 = vector.shape_cast %95 : vector<1x128x512xf32> to vector<128x512xf32>
    %cst_55 = arith.constant dense<0.000000e+00> : vector<8x512xf32>
    %97 = tpu.matmul %90, %96, %cst_55 {dimension_numbers = #tpu.dot_dimension_numbers<[1], [0], [0], [1], [0, 0, 1, 1], [], []>} : vector<8x128xf32>, vector<128x512xf32>, vector<8x512xf32> -> vector<8x512xf32>
    %98 = arith.addf %94, %97 : vector<8x512xf32>
    %99 = vector.extract_strided_slice %98 {offsets = [0, 0], sizes = [8, 128], strides = [1, 1]} : vector<8x512xf32> to vector<8x128xf32>
    %100 = arith.negf %99 : vector<8x128xf32>
    %101 = math.exp %100 : vector<8x128xf32>
    %cst_56 = arith.constant 1.000000e+00 : f32
    %102 = vector.broadcast %cst_56 : f32 to vector<8x128xf32>
    %103 = arith.addf %102, %101 : vector<8x128xf32>
    %104 = arith.divf %102, %103 : vector<8x128xf32>
    %105 = vector.extract_strided_slice %98 {offsets = [0, 128], sizes = [8, 128], strides = [1, 1]} : vector<8x512xf32> to vector<8x128xf32>
    %106 = arith.negf %105 : vector<8x128xf32>
    %107 = math.exp %106 : vector<8x128xf32>
    %cst_57 = arith.constant 1.000000e+00 : f32
    %108 = vector.broadcast %cst_57 : f32 to vector<8x128xf32>
    %109 = arith.addf %108, %107 : vector<8x128xf32>
    %110 = arith.divf %108, %109 : vector<8x128xf32>
    %111 = vector.extract_strided_slice %98 {offsets = [0, 256], sizes = [8, 128], strides = [1, 1]} : vector<8x512xf32> to vector<8x128xf32>
    %112 = math.tanh %111 : vector<8x128xf32>
    %113 = vector.extract_strided_slice %98 {offsets = [0, 384], sizes = [8, 128], strides = [1, 1]} : vector<8x512xf32> to vector<8x128xf32>
    %114 = arith.negf %113 : vector<8x128xf32>
    %115 = math.exp %114 : vector<8x128xf32>
    %cst_58 = arith.constant 1.000000e+00 : f32
    %116 = vector.broadcast %cst_58 : f32 to vector<8x128xf32>
    %117 = arith.addf %116, %115 : vector<8x128xf32>
    %118 = arith.divf %116, %117 : vector<8x128xf32>
    %119 = arith.mulf %110, %91 : vector<8x128xf32>
    %120 = arith.mulf %104, %112 : vector<8x128xf32>
    %121 = arith.addf %119, %120 : vector<8x128xf32>
    %122 = math.tanh %121 : vector<8x128xf32>
    %123 = arith.mulf %118, %122 : vector<8x128xf32>
    %c0_59 = arith.constant 0 : index
    %c0_60 = arith.constant 0 : index
    %124 = vector.load %arg11[%c0_59, %c0_60] : memref<8x128xf32, #tpu.memory_space<vmem>>, vector<8x128xf32>
    tpu.vector_store %arg11[%c0_59, %c0_60], %123 {strides = array<i32>} : memref<8x128xf32, #tpu.memory_space<vmem>>, vector<8x128xf32>,
    %c0_61 = arith.constant 0 : index
    %c0_62 = arith.constant 0 : index
    %125 = vector.load %arg12[%c0_61, %c0_62] : memref<8x128xf32, #tpu.memory_space<vmem>>, vector<8x128xf32>
    tpu.vector_store %arg12[%c0_61, %c0_62], %121 {strides = array<i32>} : memref<8x128xf32, #tpu.memory_space<vmem>>, vector<8x128xf32>,
    %126 = arith.index_cast %c2_i32 : i32 to index
    %c0_63 = arith.constant 0 : index
    %c0_64 = arith.constant 0 : index
    %127 = vector.load %arg9[%126, %c0_63, %c0_64] : memref<8x8x128xf32, #tpu.memory_space<vmem>>, vector<1x8x128xf32>
    %128 = vector.shape_cast %127 : vector<1x8x128xf32> to vector<8x128xf32>
    %129 = vector.shape_cast %123 : vector<8x128xf32> to vector<1x8x128xf32>
    tpu.vector_store %arg9[%126, %c0_63, %c0_64], %129 {strides = array<i32>} : memref<8x8x128xf32, #tpu.memory_space<vmem>>, vector<1x8x128xf32>,
    %c3_i32 = arith.constant 3 : i32
    %c0_65 = arith.constant 0 : index
    %c0_66 = arith.constant 0 : index
    %130 = vector.load %arg11[%c0_65, %c0_66] : memref<8x128xf32, #tpu.memory_space<vmem>>, vector<8x128xf32>
    %c0_67 = arith.constant 0 : index
    %c0_68 = arith.constant 0 : index
    %131 = vector.load %arg12[%c0_67, %c0_68] : memref<8x128xf32, #tpu.memory_space<vmem>>, vector<8x128xf32>
    %132 = arith.index_cast %c3_i32 : i32 to index
    %c0_69 = arith.constant 0 : index
    %c0_70 = arith.constant 0 : index
    %133 = vector.load %arg10[%132, %c0_69, %c0_70] : memref<8x8x512xf32, #tpu.memory_space<vmem>>, vector<1x8x512xf32>
    %134 = vector.shape_cast %133 : vector<1x8x512xf32> to vector<8x512xf32>
    %c0_71 = arith.constant 0 : index
    %c0_72 = arith.constant 0 : index
    %c0_73 = arith.constant 0 : index
    %135 = vector.load %arg4[%c0_71, %c0_72, %c0_73] : memref<1x128x512xf32, #tpu.memory_space<vmem>>, vector<1x128x512xf32>
    %136 = vector.shape_cast %135 : vector<1x128x512xf32> to vector<128x512xf32>
    %cst_74 = arith.constant dense<0.000000e+00> : vector<8x512xf32>
    %137 = tpu.matmul %130, %136, %cst_74 {dimension_numbers = #tpu.dot_dimension_numbers<[1], [0], [0], [1], [0, 0, 1, 1], [], []>} : vector<8x128xf32>, vector<128x512xf32>, vector<8x512xf32> -> vector<8x512xf32>
    %138 = arith.addf %134, %137 : vector<8x512xf32>
    %139 = vector.extract_strided_slice %138 {offsets = [0, 0], sizes = [8, 128], strides = [1, 1]} : vector<8x512xf32> to vector<8x128xf32>
    %140 = arith.negf %139 : vector<8x128xf32>
    %141 = math.exp %140 : vector<8x128xf32>
    %cst_75 = arith.constant 1.000000e+00 : f32
    %142 = vector.broadcast %cst_75 : f32 to vector<8x128xf32>
    %143 = arith.addf %142, %141 : vector<8x128xf32>
    %144 = arith.divf %142, %143 : vector<8x128xf32>
    %145 = vector.extract_strided_slice %138 {offsets = [0, 128], sizes = [8, 128], strides = [1, 1]} : vector<8x512xf32> to vector<8x128xf32>
    %146 = arith.negf %145 : vector<8x128xf32>
    %147 = math.exp %146 : vector<8x128xf32>
    %cst_76 = arith.constant 1.000000e+00 : f32
    %148 = vector.broadcast %cst_76 : f32 to vector<8x128xf32>
    %149 = arith.addf %148, %147 : vector<8x128xf32>
    %150 = arith.divf %148, %149 : vector<8x128xf32>
    %151 = vector.extract_strided_slice %138 {offsets = [0, 256], sizes = [8, 128], strides = [1, 1]} : vector<8x512xf32> to vector<8x128xf32>
    %152 = math.tanh %151 : vector<8x128xf32>
    %153 = vector.extract_strided_slice %138 {offsets = [0, 384], sizes = [8, 128], strides = [1, 1]} : vector<8x512xf32> to vector<8x128xf32>
    %154 = arith.negf %153 : vector<8x128xf32>
    %155 = math.exp %154 : vector<8x128xf32>
    %cst_77 = arith.constant 1.000000e+00 : f32
    %156 = vector.broadcast %cst_77 : f32 to vector<8x128xf32>
    %157 = arith.addf %156, %155 : vector<8x128xf32>
    %158 = arith.divf %156, %157 : vector<8x128xf32>
    %159 = arith.mulf %150, %131 : vector<8x128xf32>
    %160 = arith.mulf %144, %152 : vector<8x128xf32>
    %161 = arith.addf %159, %160 : vector<8x128xf32>
    %162 = math.tanh %161 : vector<8x128xf32>
    %163 = arith.mulf %158, %162 : vector<8x128xf32>
    %c0_78 = arith.constant 0 : index
    %c0_79 = arith.constant 0 : index
    %164 = vector.load %arg11[%c0_78, %c0_79] : memref<8x128xf32, #tpu.memory_space<vmem>>, vector<8x128xf32>
    tpu.vector_store %arg11[%c0_78, %c0_79], %163 {strides = array<i32>} : memref<8x128xf32, #tpu.memory_space<vmem>>, vector<8x128xf32>,
    %c0_80 = arith.constant 0 : index
    %c0_81 = arith.constant 0 : index
    %165 = vector.load %arg12[%c0_80, %c0_81] : memref<8x128xf32, #tpu.memory_space<vmem>>, vector<8x128xf32>
    tpu.vector_store %arg12[%c0_80, %c0_81], %161 {strides = array<i32>} : memref<8x128xf32, #tpu.memory_space<vmem>>, vector<8x128xf32>,
    %166 = arith.index_cast %c3_i32 : i32 to index
    %c0_82 = arith.constant 0 : index
    %c0_83 = arith.constant 0 : index
    %167 = vector.load %arg9[%166, %c0_82, %c0_83] : memref<8x8x128xf32, #tpu.memory_space<vmem>>, vector<1x8x128xf32>
    %168 = vector.shape_cast %167 : vector<1x8x128xf32> to vector<8x128xf32>
    %169 = vector.shape_cast %163 : vector<8x128xf32> to vector<1x8x128xf32>
    tpu.vector_store %arg9[%166, %c0_82, %c0_83], %169 {strides = array<i32>} : memref<8x8x128xf32, #tpu.memory_space<vmem>>, vector<1x8x128xf32>,
    %c4_i32 = arith.constant 4 : i32
    %c0_84 = arith.constant 0 : index
    %c0_85 = arith.constant 0 : index
    %170 = vector.load %arg11[%c0_84, %c0_85] : memref<8x128xf32, #tpu.memory_space<vmem>>, vector<8x128xf32>
    %c0_86 = arith.constant 0 : index
    %c0_87 = arith.constant 0 : index
    %171 = vector.load %arg12[%c0_86, %c0_87] : memref<8x128xf32, #tpu.memory_space<vmem>>, vector<8x128xf32>
    %172 = arith.index_cast %c4_i32 : i32 to index
    %c0_88 = arith.constant 0 : index
    %c0_89 = arith.constant 0 : index
    %173 = vector.load %arg10[%172, %c0_88, %c0_89] : memref<8x8x512xf32, #tpu.memory_space<vmem>>, vector<1x8x512xf32>
    %174 = vector.shape_cast %173 : vector<1x8x512xf32> to vector<8x512xf32>
    %c0_90 = arith.constant 0 : index
    %c0_91 = arith.constant 0 : index
    %c0_92 = arith.constant 0 : index
    %175 = vector.load %arg4[%c0_90, %c0_91, %c0_92] : memref<1x128x512xf32, #tpu.memory_space<vmem>>, vector<1x128x512xf32>
    %176 = vector.shape_cast %175 : vector<1x128x512xf32> to vector<128x512xf32>
    %cst_93 = arith.constant dense<0.000000e+00> : vector<8x512xf32>
    %177 = tpu.matmul %170, %176, %cst_93 {dimension_numbers = #tpu.dot_dimension_numbers<[1], [0], [0], [1], [0, 0, 1, 1], [], []>} : vector<8x128xf32>, vector<128x512xf32>, vector<8x512xf32> -> vector<8x512xf32>
    %178 = arith.addf %174, %177 : vector<8x512xf32>
    %179 = vector.extract_strided_slice %178 {offsets = [0, 0], sizes = [8, 128], strides = [1, 1]} : vector<8x512xf32> to vector<8x128xf32>
    %180 = arith.negf %179 : vector<8x128xf32>
    %181 = math.exp %180 : vector<8x128xf32>
    %cst_94 = arith.constant 1.000000e+00 : f32
    %182 = vector.broadcast %cst_94 : f32 to vector<8x128xf32>
    %183 = arith.addf %182, %181 : vector<8x128xf32>
    %184 = arith.divf %182, %183 : vector<8x128xf32>
    %185 = vector.extract_strided_slice %178 {offsets = [0, 128], sizes = [8, 128], strides = [1, 1]} : vector<8x512xf32> to vector<8x128xf32>
    %186 = arith.negf %185 : vector<8x128xf32>
    %187 = math.exp %186 : vector<8x128xf32>
    %cst_95 = arith.constant 1.000000e+00 : f32
    %188 = vector.broadcast %cst_95 : f32 to vector<8x128xf32>
    %189 = arith.addf %188, %187 : vector<8x128xf32>
    %190 = arith.divf %188, %189 : vector<8x128xf32>
    %191 = vector.extract_strided_slice %178 {offsets = [0, 256], sizes = [8, 128], strides = [1, 1]} : vector<8x512xf32> to vector<8x128xf32>
    %192 = math.tanh %191 : vector<8x128xf32>
    %193 = vector.extract_strided_slice %178 {offsets = [0, 384], sizes = [8, 128], strides = [1, 1]} : vector<8x512xf32> to vector<8x128xf32>
    %194 = arith.negf %193 : vector<8x128xf32>
    %195 = math.exp %194 : vector<8x128xf32>
    %cst_96 = arith.constant 1.000000e+00 : f32
    %196 = vector.broadcast %cst_96 : f32 to vector<8x128xf32>
    %197 = arith.addf %196, %195 : vector<8x128xf32>
    %198 = arith.divf %196, %197 : vector<8x128xf32>
    %199 = arith.mulf %190, %171 : vector<8x128xf32>
    %200 = arith.mulf %184, %192 : vector<8x128xf32>
    %201 = arith.addf %199, %200 : vector<8x128xf32>
    %202 = math.tanh %201 : vector<8x128xf32>
    %203 = arith.mulf %198, %202 : vector<8x128xf32>
    %c0_97 = arith.constant 0 : index
    %c0_98 = arith.constant 0 : index
    %204 = vector.load %arg11[%c0_97, %c0_98] : memref<8x128xf32, #tpu.memory_space<vmem>>, vector<8x128xf32>
    tpu.vector_store %arg11[%c0_97, %c0_98], %203 {strides = array<i32>} : memref<8x128xf32, #tpu.memory_space<vmem>>, vector<8x128xf32>,
    %c0_99 = arith.constant 0 : index
    %c0_100 = arith.constant 0 : index
    %205 = vector.load %arg12[%c0_99, %c0_100] : memref<8x128xf32, #tpu.memory_space<vmem>>, vector<8x128xf32>
    tpu.vector_store %arg12[%c0_99, %c0_100], %201 {strides = array<i32>} : memref<8x128xf32, #tpu.memory_space<vmem>>, vector<8x128xf32>,
    %206 = arith.index_cast %c4_i32 : i32 to index
    %c0_101 = arith.constant 0 : index
    %c0_102 = arith.constant 0 : index
    %207 = vector.load %arg9[%206, %c0_101, %c0_102] : memref<8x8x128xf32, #tpu.memory_space<vmem>>, vector<1x8x128xf32>
    %208 = vector.shape_cast %207 : vector<1x8x128xf32> to vector<8x128xf32>
    %209 = vector.shape_cast %203 : vector<8x128xf32> to vector<1x8x128xf32>
    tpu.vector_store %arg9[%206, %c0_101, %c0_102], %209 {strides = array<i32>} : memref<8x8x128xf32, #tpu.memory_space<vmem>>, vector<1x8x128xf32>,
    %c5_i32 = arith.constant 5 : i32
    %c0_103 = arith.constant 0 : index
    %c0_104 = arith.constant 0 : index
    %210 = vector.load %arg11[%c0_103, %c0_104] : memref<8x128xf32, #tpu.memory_space<vmem>>, vector<8x128xf32>
    %c0_105 = arith.constant 0 : index
    %c0_106 = arith.constant 0 : index
    %211 = vector.load %arg12[%c0_105, %c0_106] : memref<8x128xf32, #tpu.memory_space<vmem>>, vector<8x128xf32>
    %212 = arith.index_cast %c5_i32 : i32 to index
    %c0_107 = arith.constant 0 : index
    %c0_108 = arith.constant 0 : index
    %213 = vector.load %arg10[%212, %c0_107, %c0_108] : memref<8x8x512xf32, #tpu.memory_space<vmem>>, vector<1x8x512xf32>
    %214 = vector.shape_cast %213 : vector<1x8x512xf32> to vector<8x512xf32>
    %c0_109 = arith.constant 0 : index
    %c0_110 = arith.constant 0 : index
    %c0_111 = arith.constant 0 : index
    %215 = vector.load %arg4[%c0_109, %c0_110, %c0_111] : memref<1x128x512xf32, #tpu.memory_space<vmem>>, vector<1x128x512xf32>
    %216 = vector.shape_cast %215 : vector<1x128x512xf32> to vector<128x512xf32>
    %cst_112 = arith.constant dense<0.000000e+00> : vector<8x512xf32>
    %217 = tpu.matmul %210, %216, %cst_112 {dimension_numbers = #tpu.dot_dimension_numbers<[1], [0], [0], [1], [0, 0, 1, 1], [], []>} : vector<8x128xf32>, vector<128x512xf32>, vector<8x512xf32> -> vector<8x512xf32>
    %218 = arith.addf %214, %217 : vector<8x512xf32>
    %219 = vector.extract_strided_slice %218 {offsets = [0, 0], sizes = [8, 128], strides = [1, 1]} : vector<8x512xf32> to vector<8x128xf32>
    %220 = arith.negf %219 : vector<8x128xf32>
    %221 = math.exp %220 : vector<8x128xf32>
    %cst_113 = arith.constant 1.000000e+00 : f32
    %222 = vector.broadcast %cst_113 : f32 to vector<8x128xf32>
    %223 = arith.addf %222, %221 : vector<8x128xf32>
    %224 = arith.divf %222, %223 : vector<8x128xf32>
    %225 = vector.extract_strided_slice %218 {offsets = [0, 128], sizes = [8, 128], strides = [1, 1]} : vector<8x512xf32> to vector<8x128xf32>
    %226 = arith.negf %225 : vector<8x128xf32>
    %227 = math.exp %226 : vector<8x128xf32>
    %cst_114 = arith.constant 1.000000e+00 : f32
    %228 = vector.broadcast %cst_114 : f32 to vector<8x128xf32>
    %229 = arith.addf %228, %227 : vector<8x128xf32>
    %230 = arith.divf %228, %229 : vector<8x128xf32>
    %231 = vector.extract_strided_slice %218 {offsets = [0, 256], sizes = [8, 128], strides = [1, 1]} : vector<8x512xf32> to vector<8x128xf32>
    %232 = math.tanh %231 : vector<8x128xf32>
    %233 = vector.extract_strided_slice %218 {offsets = [0, 384], sizes = [8, 128], strides = [1, 1]} : vector<8x512xf32> to vector<8x128xf32>
    %234 = arith.negf %233 : vector<8x128xf32>
    %235 = math.exp %234 : vector<8x128xf32>
    %cst_115 = arith.constant 1.000000e+00 : f32
    %236 = vector.broadcast %cst_115 : f32 to vector<8x128xf32>
    %237 = arith.addf %236, %235 : vector<8x128xf32>
    %238 = arith.divf %236, %237 : vector<8x128xf32>
    %239 = arith.mulf %230, %211 : vector<8x128xf32>
    %240 = arith.mulf %224, %232 : vector<8x128xf32>
    %241 = arith.addf %239, %240 : vector<8x128xf32>
    %242 = math.tanh %241 : vector<8x128xf32>
    %243 = arith.mulf %238, %242 : vector<8x128xf32>
    %c0_116 = arith.constant 0 : index
    %c0_117 = arith.constant 0 : index
    %244 = vector.load %arg11[%c0_116, %c0_117] : memref<8x128xf32, #tpu.memory_space<vmem>>, vector<8x128xf32>
    tpu.vector_store %arg11[%c0_116, %c0_117], %243 {strides = array<i32>} : memref<8x128xf32, #tpu.memory_space<vmem>>, vector<8x128xf32>,
    %c0_118 = arith.constant 0 : index
    %c0_119 = arith.constant 0 : index
    %245 = vector.load %arg12[%c0_118, %c0_119] : memref<8x128xf32, #tpu.memory_space<vmem>>, vector<8x128xf32>
    tpu.vector_store %arg12[%c0_118, %c0_119], %241 {strides = array<i32>} : memref<8x128xf32, #tpu.memory_space<vmem>>, vector<8x128xf32>,
    %246 = arith.index_cast %c5_i32 : i32 to index
    %c0_120 = arith.constant 0 : index
    %c0_121 = arith.constant 0 : index
    %247 = vector.load %arg9[%246, %c0_120, %c0_121] : memref<8x8x128xf32, #tpu.memory_space<vmem>>, vector<1x8x128xf32>
    %248 = vector.shape_cast %247 : vector<1x8x128xf32> to vector<8x128xf32>
    %249 = vector.shape_cast %243 : vector<8x128xf32> to vector<1x8x128xf32>
    tpu.vector_store %arg9[%246, %c0_120, %c0_121], %249 {strides = array<i32>} : memref<8x8x128xf32, #tpu.memory_space<vmem>>, vector<1x8x128xf32>,
    %c6_i32 = arith.constant 6 : i32
    %c0_122 = arith.constant 0 : index
    %c0_123 = arith.constant 0 : index
    %250 = vector.load %arg11[%c0_122, %c0_123] : memref<8x128xf32, #tpu.memory_space<vmem>>, vector<8x128xf32>
    %c0_124 = arith.constant 0 : index
    %c0_125 = arith.constant 0 : index
    %251 = vector.load %arg12[%c0_124, %c0_125] : memref<8x128xf32, #tpu.memory_space<vmem>>, vector<8x128xf32>
    %252 = arith.index_cast %c6_i32 : i32 to index
    %c0_126 = arith.constant 0 : index
    %c0_127 = arith.constant 0 : index
    %253 = vector.load %arg10[%252, %c0_126, %c0_127] : memref<8x8x512xf32, #tpu.memory_space<vmem>>, vector<1x8x512xf32>
    %254 = vector.shape_cast %253 : vector<1x8x512xf32> to vector<8x512xf32>
    %c0_128 = arith.constant 0 : index
    %c0_129 = arith.constant 0 : index
    %c0_130 = arith.constant 0 : index
    %255 = vector.load %arg4[%c0_128, %c0_129, %c0_130] : memref<1x128x512xf32, #tpu.memory_space<vmem>>, vector<1x128x512xf32>
    %256 = vector.shape_cast %255 : vector<1x128x512xf32> to vector<128x512xf32>
    %cst_131 = arith.constant dense<0.000000e+00> : vector<8x512xf32>
    %257 = tpu.matmul %250, %256, %cst_131 {dimension_numbers = #tpu.dot_dimension_numbers<[1], [0], [0], [1], [0, 0, 1, 1], [], []>} : vector<8x128xf32>, vector<128x512xf32>, vector<8x512xf32> -> vector<8x512xf32>
    %258 = arith.addf %254, %257 : vector<8x512xf32>
    %259 = vector.extract_strided_slice %258 {offsets = [0, 0], sizes = [8, 128], strides = [1, 1]} : vector<8x512xf32> to vector<8x128xf32>
    %260 = arith.negf %259 : vector<8x128xf32>
    %261 = math.exp %260 : vector<8x128xf32>
    %cst_132 = arith.constant 1.000000e+00 : f32
    %262 = vector.broadcast %cst_132 : f32 to vector<8x128xf32>
    %263 = arith.addf %262, %261 : vector<8x128xf32>
    %264 = arith.divf %262, %263 : vector<8x128xf32>
    %265 = vector.extract_strided_slice %258 {offsets = [0, 128], sizes = [8, 128], strides = [1, 1]} : vector<8x512xf32> to vector<8x128xf32>
    %266 = arith.negf %265 : vector<8x128xf32>
    %267 = math.exp %266 : vector<8x128xf32>
    %cst_133 = arith.constant 1.000000e+00 : f32
    %268 = vector.broadcast %cst_133 : f32 to vector<8x128xf32>
    %269 = arith.addf %268, %267 : vector<8x128xf32>
    %270 = arith.divf %268, %269 : vector<8x128xf32>
    %271 = vector.extract_strided_slice %258 {offsets = [0, 256], sizes = [8, 128], strides = [1, 1]} : vector<8x512xf32> to vector<8x128xf32>
    %272 = math.tanh %271 : vector<8x128xf32>
    %273 = vector.extract_strided_slice %258 {offsets = [0, 384], sizes = [8, 128], strides = [1, 1]} : vector<8x512xf32> to vector<8x128xf32>
    %274 = arith.negf %273 : vector<8x128xf32>
    %275 = math.exp %274 : vector<8x128xf32>
    %cst_134 = arith.constant 1.000000e+00 : f32
    %276 = vector.broadcast %cst_134 : f32 to vector<8x128xf32>
    %277 = arith.addf %276, %275 : vector<8x128xf32>
    %278 = arith.divf %276, %277 : vector<8x128xf32>
    %279 = arith.mulf %270, %251 : vector<8x128xf32>
    %280 = arith.mulf %264, %272 : vector<8x128xf32>
    %281 = arith.addf %279, %280 : vector<8x128xf32>
    %282 = math.tanh %281 : vector<8x128xf32>
    %283 = arith.mulf %278, %282 : vector<8x128xf32>
    %c0_135 = arith.constant 0 : index
    %c0_136 = arith.constant 0 : index
    %284 = vector.load %arg11[%c0_135, %c0_136] : memref<8x128xf32, #tpu.memory_space<vmem>>, vector<8x128xf32>
    tpu.vector_store %arg11[%c0_135, %c0_136], %283 {strides = array<i32>} : memref<8x128xf32, #tpu.memory_space<vmem>>, vector<8x128xf32>,
    %c0_137 = arith.constant 0 : index
    %c0_138 = arith.constant 0 : index
    %285 = vector.load %arg12[%c0_137, %c0_138] : memref<8x128xf32, #tpu.memory_space<vmem>>, vector<8x128xf32>
    tpu.vector_store %arg12[%c0_137, %c0_138], %281 {strides = array<i32>} : memref<8x128xf32, #tpu.memory_space<vmem>>, vector<8x128xf32>,
    %286 = arith.index_cast %c6_i32 : i32 to index
    %c0_139 = arith.constant 0 : index
    %c0_140 = arith.constant 0 : index
    %287 = vector.load %arg9[%286, %c0_139, %c0_140] : memref<8x8x128xf32, #tpu.memory_space<vmem>>, vector<1x8x128xf32>
    %288 = vector.shape_cast %287 : vector<1x8x128xf32> to vector<8x128xf32>
    %289 = vector.shape_cast %283 : vector<8x128xf32> to vector<1x8x128xf32>
    tpu.vector_store %arg9[%286, %c0_139, %c0_140], %289 {strides = array<i32>} : memref<8x8x128xf32, #tpu.memory_space<vmem>>, vector<1x8x128xf32>,
    %c7_i32 = arith.constant 7 : i32
    %c0_141 = arith.constant 0 : index
    %c0_142 = arith.constant 0 : index
    %290 = vector.load %arg11[%c0_141, %c0_142] : memref<8x128xf32, #tpu.memory_space<vmem>>, vector<8x128xf32>
    %c0_143 = arith.constant 0 : index
    %c0_144 = arith.constant 0 : index
    %291 = vector.load %arg12[%c0_143, %c0_144] : memref<8x128xf32, #tpu.memory_space<vmem>>, vector<8x128xf32>
    %292 = arith.index_cast %c7_i32 : i32 to index
    %c0_145 = arith.constant 0 : index
    %c0_146 = arith.constant 0 : index
    %293 = vector.load %arg10[%292, %c0_145, %c0_146] : memref<8x8x512xf32, #tpu.memory_space<vmem>>, vector<1x8x512xf32>
    %294 = vector.shape_cast %293 : vector<1x8x512xf32> to vector<8x512xf32>
    %c0_147 = arith.constant 0 : index
    %c0_148 = arith.constant 0 : index
    %c0_149 = arith.constant 0 : index
    %295 = vector.load %arg4[%c0_147, %c0_148, %c0_149] : memref<1x128x512xf32, #tpu.memory_space<vmem>>, vector<1x128x512xf32>
    %296 = vector.shape_cast %295 : vector<1x128x512xf32> to vector<128x512xf32>
    %cst_150 = arith.constant dense<0.000000e+00> : vector<8x512xf32>
    %297 = tpu.matmul %290, %296, %cst_150 {dimension_numbers = #tpu.dot_dimension_numbers<[1], [0], [0], [1], [0, 0, 1, 1], [], []>} : vector<8x128xf32>, vector<128x512xf32>, vector<8x512xf32> -> vector<8x512xf32>
    %298 = arith.addf %294, %297 : vector<8x512xf32>
    %299 = vector.extract_strided_slice %298 {offsets = [0, 0], sizes = [8, 128], strides = [1, 1]} : vector<8x512xf32> to vector<8x128xf32>
    %300 = arith.negf %299 : vector<8x128xf32>
    %301 = math.exp %300 : vector<8x128xf32>
    %cst_151 = arith.constant 1.000000e+00 : f32
    %302 = vector.broadcast %cst_151 : f32 to vector<8x128xf32>
    %303 = arith.addf %302, %301 : vector<8x128xf32>
    %304 = arith.divf %302, %303 : vector<8x128xf32>
    %305 = vector.extract_strided_slice %298 {offsets = [0, 128], sizes = [8, 128], strides = [1, 1]} : vector<8x512xf32> to vector<8x128xf32>
    %306 = arith.negf %305 : vector<8x128xf32>
    %307 = math.exp %306 : vector<8x128xf32>
    %cst_152 = arith.constant 1.000000e+00 : f32
    %308 = vector.broadcast %cst_152 : f32 to vector<8x128xf32>
    %309 = arith.addf %308, %307 : vector<8x128xf32>
    %310 = arith.divf %308, %309 : vector<8x128xf32>
    %311 = vector.extract_strided_slice %298 {offsets = [0, 256], sizes = [8, 128], strides = [1, 1]} : vector<8x512xf32> to vector<8x128xf32>
    %312 = math.tanh %311 : vector<8x128xf32>
    %313 = vector.extract_strided_slice %298 {offsets = [0, 384], sizes = [8, 128], strides = [1, 1]} : vector<8x512xf32> to vector<8x128xf32>
    %314 = arith.negf %313 : vector<8x128xf32>
    %315 = math.exp %314 : vector<8x128xf32>
    %cst_153 = arith.constant 1.000000e+00 : f32
    %316 = vector.broadcast %cst_153 : f32 to vector<8x128xf32>
    %317 = arith.addf %316, %315 : vector<8x128xf32>
    %318 = arith.divf %316, %317 : vector<8x128xf32>
    %319 = arith.mulf %310, %291 : vector<8x128xf32>
    %320 = arith.mulf %304, %312 : vector<8x128xf32>
    %321 = arith.addf %319, %320 : vector<8x128xf32>
    %322 = math.tanh %321 : vector<8x128xf32>
    %323 = arith.mulf %318, %322 : vector<8x128xf32>
    %c0_154 = arith.constant 0 : index
    %c0_155 = arith.constant 0 : index
    %324 = vector.load %arg11[%c0_154, %c0_155] : memref<8x128xf32, #tpu.memory_space<vmem>>, vector<8x128xf32>
    tpu.vector_store %arg11[%c0_154, %c0_155], %323 {strides = array<i32>} : memref<8x128xf32, #tpu.memory_space<vmem>>, vector<8x128xf32>,
    %c0_156 = arith.constant 0 : index
    %c0_157 = arith.constant 0 : index
    %325 = vector.load %arg12[%c0_156, %c0_157] : memref<8x128xf32, #tpu.memory_space<vmem>>, vector<8x128xf32>
    tpu.vector_store %arg12[%c0_156, %c0_157], %321 {strides = array<i32>} : memref<8x128xf32, #tpu.memory_space<vmem>>, vector<8x128xf32>,
    %326 = arith.index_cast %c7_i32 : i32 to index
    %c0_158 = arith.constant 0 : index
    %c0_159 = arith.constant 0 : index
    %327 = vector.load %arg9[%326, %c0_158, %c0_159] : memref<8x8x128xf32, #tpu.memory_space<vmem>>, vector<1x8x128xf32>
    %328 = vector.shape_cast %327 : vector<1x8x128xf32> to vector<8x128xf32>
    %329 = vector.shape_cast %323 : vector<8x128xf32> to vector<1x8x128xf32>
    tpu.vector_store %arg9[%326, %c0_158, %c0_159], %329 {strides = array<i32>} : memref<8x8x128xf32, #tpu.memory_space<vmem>>, vector<1x8x128xf32>,
    %c8_i32 = arith.constant 8 : i32
    %c1_i32_160 = arith.constant 1 : i32
    %330 = arith.cmpi eq, %arg1, %c1_i32_160 : i32
    %331 = arith.extui %330 : i1 to i32
    %c0_i32_161 = arith.constant 0 : i32
    %332 = arith.cmpi ne, %331, %c0_i32_161 : i32
    scf.if %332 {
      %c0_162 = arith.constant 0 : index
      %c0_163 = arith.constant 0 : index
      %333 = vector.load %arg11[%c0_162, %c0_163] : memref<8x128xf32, #tpu.memory_space<vmem>>, vector<8x128xf32>
      %c0_164 = arith.constant 0 : index
      %c0_165 = arith.constant 0 : index
      %334 = vector.load %arg6[%c0_164, %c0_165] : memref<128x128xf32, #tpu.memory_space<vmem>>, vector<128x128xf32>
      %cst_166 = arith.constant dense<0.000000e+00> : vector<8x128xf32>
      %335 = tpu.matmul %333, %334, %cst_166 {dimension_numbers = #tpu.dot_dimension_numbers<[1], [0], [0], [1], [0, 0, 1, 1], [], []>} : vector<8x128xf32>, vector<128x128xf32>, vector<8x128xf32> -> vector<8x128xf32>
      %c0_167 = arith.constant 0 : index
      %c0_168 = arith.constant 0 : index
      %336 = vector.load %arg7[%c0_167, %c0_168] : memref<1x128xf32, #tpu.memory_space<vmem>>, vector<1x128xf32>
      %337 = vector.broadcast %336 : vector<1x128xf32> to vector<8x128xf32>
      %338 = arith.addf %335, %337 : vector<8x128xf32>
      %c0_169 = arith.constant 0 : index
      %c0_170 = arith.constant 0 : index
      %339 = vector.load %arg8[%c0_169, %c0_170] : memref<8x128xf32, #tpu.memory_space<vmem>>, vector<8x128xf32>
      tpu.vector_store %arg8[%c0_169, %c0_170], %338 {strides = array<i32>} : memref<8x128xf32, #tpu.memory_space<vmem>>, vector<8x128xf32>,
    } else {
    }
    return
  }
  func.func @transform_0(%arg0: i32, %arg1: i32) -> (i32, i32, i32) {
    %c0_i32 = arith.constant 0 : i32
    %c0_i32_0 = arith.constant 0 : i32
    %c0_i32_1 = arith.constant 0 : i32
    return %c0_i32, %arg0, %c0_i32_0 : i32, i32, i32
  }
  func.func @transform_1(%arg0: i32, %arg1: i32) -> (i32, i32, i32) {
    %c0_i32 = arith.constant 0 : i32
    %c0_i32_0 = arith.constant 0 : i32
    %c0_i32_1 = arith.constant 0 : i32
    return %arg1, %c0_i32, %c0_i32_0 : i32, i32, i32
  }
  func.func @transform_2(%arg0: i32, %arg1: i32) -> (i32, i32, i32) {
    %c0_i32 = arith.constant 0 : i32
    %c0_i32_0 = arith.constant 0 : i32
    %c0_i32_1 = arith.constant 0 : i32
    return %arg1, %c0_i32, %c0_i32_0 : i32, i32, i32
  }
  func.func @transform_3(%arg0: i32, %arg1: i32) -> (i32, i32, i32) {
    %c0_i32 = arith.constant 0 : i32
    %c0_i32_0 = arith.constant 0 : i32
    %c0_i32_1 = arith.constant 0 : i32
    return %arg1, %c0_i32, %c0_i32_0 : i32, i32, i32
  }
  func.func @transform_4(%arg0: i32, %arg1: i32) -> (i32, i32) {
    %c0_i32 = arith.constant 0 : i32
    %c0_i32_0 = arith.constant 0 : i32
    %c0_i32_1 = arith.constant 0 : i32
    return %c0_i32, %c0_i32_0 : i32, i32
  }
  func.func @transform_5(%arg0: i32, %arg1: i32) -> (i32, i32) {
    %c0_i32 = arith.constant 0 : i32
    %c0_i32_0 = arith.constant 0 : i32
    %c0_i32_1 = arith.constant 0 : i32
    return %c0_i32, %c0_i32_0 : i32, i32
  }
  func.func @transform_6(%arg0: i32, %arg1: i32) -> (i32, i32) {
    %c0_i32 = arith.constant 0 : i32
    %c0_i32_0 = arith.constant 0 : i32
    return %arg0, %c0_i32 : i32, i32
  }
}

</mosaic_0001>

<llo_original>
// kernel: lstm_classifier_forward.1
$region0: #{lstm_classifier_forward.1}
  #allocation0 [shape = 'u32[]', space=smem, size = 0x4, offset = 0x4, fixed_abs, tag = 'smem constant byte address 0x4 - core index']
  #allocation1 [shape = 'u32[144,128]{1,0:T(1,128)}', space=vmem, size = 0x12000, scoped, tag = 'internal scratch']
  #allocation2 [shape = 'f32[8,8,128]{2,1,0:T(8,128)}', space=vmem, size = 0x8000, scoped, tag = 'scratch operand']
  #allocation3 [shape = 'f32[8,8,512]{2,1,0:T(8,128)}', space=vmem, size = 0x20000, scoped, tag = 'scratch operand']
  #allocation4 [shape = 'f32[8,128]{1,0:T(8,128)}', space=vmem, size = 0x1000, scoped, tag = 'scratch operand']
  #allocation5 [shape = 'f32[8,128]{1,0:T(8,128)}', space=vmem, size = 0x1000, scoped, tag = 'scratch operand']
  %s0 = inlined_call_operand.vmem [shape: f32[8,8,128], index: 0, kind: input, shape index: {}]
  %s1 = inlined_call_operand.hbm [shape: f32[2,128,512], index: 1, kind: input, shape index: {}]
  %s2 = inlined_call_operand.hbm [shape: f32[2,128,512], index: 2, kind: input, shape index: {}]
  %s3 = inlined_call_operand.vmem [shape: f32[2,1,512], index: 3, kind: input, shape index: {}]
  %s4 = inlined_call_operand.hbm [shape: f32[128,128], index: 4, kind: input, shape index: {}]
  %s5 = inlined_call_operand.vmem [shape: f32[1,128], index: 5, kind: input, shape index: {}]
  %s6 = inlined_call_operand.vmem [shape: f32[8,128], index: 6, kind: output, shape index: {}]
  %s7 = sld [smem:[#allocation0]]
  $region81: #{lstm_classifier_forward.1} parent=0
    _
  %s9 = ssub.s32 1, %s7
  %s10 = scalar_select 0, %s9, %s7
  $region1: #{lstm_classifier_forward.1} parent=0
    #allocation6 [shape = 'u8[524288]{0}', space=vmem, size = 0x80000, scoped, tag = 'input window, operand 1']
    #allocation7 [shape = 's32[2]{0}', space=sflag, size = 0x8, scoped, tag = 'scoped memory for lstm_classifier_forward.1']
    #allocation8 [shape = 'u8[524288]{0}', space=vmem, size = 0x80000, scoped, tag = 'input window, operand 2']
    #allocation9 [shape = 's32[2]{0}', space=sflag, size = 0x8, scoped, tag = 'scoped memory for lstm_classifier_forward.1']
    #allocation10 [shape = 'u8[65536]{0}', space=vmem, size = 0x10000, scoped, tag = 'input window, operand 4, single buffered']
    %11 = vsyncpa [#allocation7], 0
    %s12 = scalar_lea.sflag [#allocation7], 1
    %13 = vsyncpa %s12, 0
    %14 = vsyncpa [#allocation9], 0
    %s15 = scalar_lea.sflag [#allocation9], 1
    %16 = vsyncpa %s15, 0
    loop: start=0, step=1, limit=4
    $region2: #{lstm_classifier_forward.1} parent=1 // loop_pre_header
      _
    $region3: #{lstm_classifier_forward.1} parent=1 // loop_header
      %s18 = sphi 0, %s22
      %p19 = scmp.ge.s32.totalorder %s18, 4
      %s25 = sphi 0, %s37
      %s26 = sphi 0, %s33
      %s27 = sphi 0, %s25
      %s28 = sphi 0, %s26
      %s29 = sphi 0, %s27
      %s30 = sphi 0, %s28
      %s40 = sphi 0, %s42
      %s43 = sphi 0, %s40
      %s44 = sphi 0, %s43
      %s60 = sphi 0, %s44
      %s66 = sphi 0, %s68
      %s69 = sphi 0, %s66
      %s70 = sphi 0, %s69
      %s86 = sphi 0, %s70
      %s92 = sphi 0, %s94
      %s95 = sphi 0, %s92
      %s96 = sphi 0, %s95
      %s112 = sphi 0, %s96
      %s118 = sphi 0, %s120
      %s121 = sphi 0, %s118
      %s122 = sphi 0, %s121
      %s138 = sphi 0, %s122
      %s142 = sphi 0, %s142
      %s144 = sphi 0, %s142
      %s145 = sphi 0, %s144
      %s159 = sphi 0, %s145
      %s163 = sphi 0, %s163
      %s165 = sphi 0, %s163
      %s166 = sphi 0, %s165
      %s180 = sphi 0, %s166
      %s186 = sphi 0, %s188
      %s189 = sphi 0, %s186
      %s190 = sphi 0, %s189
      %s206 = sphi 0, %s190
    $region4: #{lstm_classifier_forward.1} parent=1 // loop_header_branch
      %21 = sbr.rel (%p19) target = $region8
    $region5: #{lstm_classifier_forward.1} parent=1 // loop_body
      %s23 = ssub.s32 %s18, 1
      %s24 = ssub.s32 %s18, 2
      %s31 = sadd.s32 1, %s26
      %p32 = scmp.ge.s32.totalorder %s31, 2
      %s33 = scalar_select %p32, 0, %s31
      %s34 = sadd.s32 1, %s25
      %s35 = scalar_select %p32, %s34, %s25
      %p36 = scmp.ge.s32.totalorder %s35, 1
      %s37 = scalar_select %p36, 0, %s35
      %s38 = ssub.s32 %s25, %s37
      %p39 = scmp.eq.s32.totalorder %s38, 0
      %s41 = sadd.s32 %s40, 1
      %s42 = scalar_select %p39, %s40, %s41
      %p45 = pneg %p39
      %p46 = scmp.eq.s32.totalorder %s18, 1
      %p47 = por %p45, %p46
      %p48 = scmp.ne.s32.totalorder %s40, %s43
      %p49 = scmp.eq.s32.totalorder %s18, 0
      %p50 = por %p48, %p49
      %p51 = scmp.ne.s32.totalorder %s40, %s43
      %p52 = scmp.eq.s32.totalorder %s23, 1
      %p53 = por %p51, %p52
      %p54 = scmp.ne.s32.totalorder %s43, %s44
      %p55 = scmp.eq.s32.totalorder %s23, 0
      %p56 = por %p54, %p55
      %p57 = scmp.ne.s32.totalorder %s43, %s44
      %p58 = scmp.eq.s32.totalorder %s24, 1
      %p59 = por %p57, %p58
      %p61 = scmp.ne.s32.totalorder %s44, %s60
      %p62 = scmp.eq.s32.totalorder %s24, 0
      %p63 = por %p61, %p62
      %s64 = ssub.s32 %s26, %s33
      %p65 = scmp.eq.s32.totalorder %s64, 0
      %s67 = sadd.s32 %s66, 1
      %s68 = scalar_select %p65, %s66, %s67
      %p71 = pneg %p65
      %p72 = scmp.eq.s32.totalorder %s18, 1
      %p73 = por %p71, %p72
      %p74 = scmp.ne.s32.totalorder %s66, %s69
      %p75 = scmp.eq.s32.totalorder %s18, 0
      %p76 = por %p74, %p75
      %p77 = scmp.ne.s32.totalorder %s66, %s69
      %p78 = scmp.eq.s32.totalorder %s23, 1
      %p79 = por %p77, %p78
      %p80 = scmp.ne.s32.totalorder %s69, %s70
      %p81 = scmp.eq.s32.totalorder %s23, 0
      %p82 = por %p80, %p81
      %p83 = scmp.ne.s32.totalorder %s69, %s70
      %p84 = scmp.eq.s32.totalorder %s24, 1
      %p85 = por %p83, %p84
      %p87 = scmp.ne.s32.totalorder %s70, %s86
      %p88 = scmp.eq.s32.totalorder %s24, 0
      %p89 = por %p87, %p88
      %s90 = ssub.s32 %s26, %s33
      %p91 = scmp.eq.s32.totalorder %s90, 0
      %s93 = sadd.s32 %s92, 1
      %s94 = scalar_select %p91, %s92, %s93
      %p97 = pneg %p91
      %p98 = scmp.eq.s32.totalorder %s18, 1
      %p99 = por %p97, %p98
      %p100 = scmp.ne.s32.totalorder %s92, %s95
      %p101 = scmp.eq.s32.totalorder %s18, 0
      %p102 = por %p100, %p101
      %p103 = scmp.ne.s32.totalorder %s92, %s95
      %p104 = scmp.eq.s32.totalorder %s23, 1
      %p105 = por %p103, %p104
      %p106 = scmp.ne.s32.totalorder %s95, %s96
      %p107 = scmp.eq.s32.totalorder %s23, 0
      %p108 = por %p106, %p107
      %p109 = scmp.ne.s32.totalorder %s95, %s96
      %p110 = scmp.eq.s32.totalorder %s24, 1
      %p111 = por %p109, %p110
      %p113 = scmp.ne.s32.totalorder %s96, %s112
      %p114 = scmp.eq.s32.totalorder %s24, 0
      %p115 = por %p113, %p114
      %s116 = ssub.s32 %s26, %s33
      %p117 = scmp.eq.s32.totalorder %s116, 0
      %s119 = sadd.s32 %s118, 1
      %s120 = scalar_select %p117, %s118, %s119
      %p123 = pneg %p117
      %p124 = scmp.eq.s32.totalorder %s18, 1
      %p125 = por %p123, %p124
      %p126 = scmp.ne.s32.totalorder %s118, %s121
      %p127 = scmp.eq.s32.totalorder %s18, 0
      %p128 = por %p126, %p127
      %p129 = scmp.ne.s32.totalorder %s118, %s121
      %p130 = scmp.eq.s32.totalorder %s23, 1
      %p131 = por %p129, %p130
      %p132 = scmp.ne.s32.totalorder %s121, %s122
      %p133 = scmp.eq.s32.totalorder %s23, 0
      %p134 = por %p132, %p133
      %p135 = scmp.ne.s32.totalorder %s121, %s122
      %p136 = scmp.eq.s32.totalorder %s24, 1
      %p137 = por %p135, %p136
      %p139 = scmp.ne.s32.totalorder %s122, %s138
      %p140 = scmp.eq.s32.totalorder %s24, 0
      %p141 = por %p139, %p140
      %s143 = sadd.s32 %s142, 1
      %p146 = scmp.eq.s32.totalorder %s18, 1
      %p147 = scmp.ne.s32.totalorder %s142, %s144
      %p148 = scmp.eq.s32.totalorder %s18, 0
      %p149 = por %p147, %p148
      %p150 = scmp.ne.s32.totalorder %s142, %s144
      %p151 = scmp.eq.s32.totalorder %s23, 1
      %p152 = por %p150, %p151
      %p153 = scmp.ne.s32.totalorder %s144, %s145
      %p154 = scmp.eq.s32.totalorder %s23, 0
      %p155 = por %p153, %p154
      %p156 = scmp.ne.s32.totalorder %s144, %s145
      %p157 = scmp.eq.s32.totalorder %s24, 1
      %p158 = por %p156, %p157
      %p160 = scmp.ne.s32.totalorder %s145, %s159
      %p161 = scmp.eq.s32.totalorder %s24, 0
      %p162 = por %p160, %p161
      %s164 = sadd.s32 %s163, 1
      %p167 = scmp.eq.s32.totalorder %s18, 1
      %p168 = scmp.ne.s32.totalorder %s163, %s165
      %p169 = scmp.eq.s32.totalorder %s18, 0
      %p170 = por %p168, %p169
      %p171 = scmp.ne.s32.totalorder %s163, %s165
      %p172 = scmp.eq.s32.totalorder %s23, 1
      %p173 = por %p171, %p172
      %p174 = scmp.ne.s32.totalorder %s165, %s166
      %p175 = scmp.eq.s32.totalorder %s23, 0
      %p176 = por %p174, %p175
      %p177 = scmp.ne.s32.totalorder %s165, %s166
      %p178 = scmp.eq.s32.totalorder %s24, 1
      %p179 = por %p177, %p178
      %p181 = scmp.ne.s32.totalorder %s166, %s180
      %p182 = scmp.eq.s32.totalorder %s24, 0
      %p183 = por %p181, %p182
      %s184 = ssub.s32 %s25, %s37
      %p185 = scmp.eq.s32.totalorder %s184, 0
      %s187 = sadd.s32 %s186, 1
      %s188 = scalar_select %p185, %s186, %s187
      %p191 = pneg %p185
      %p192 = scmp.eq.s32.totalorder %s18, 1
      %p193 = por %p191, %p192
      %p194 = scmp.ne.s32.totalorder %s186, %s189
      %p195 = scmp.eq.s32.totalorder %s18, 0
      %p196 = por %p194, %p195
      %p197 = scmp.ne.s32.totalorder %s186, %s189
      %p198 = scmp.eq.s32.totalorder %s23, 1
      %p199 = por %p197, %p198
      %p200 = scmp.ne.s32.totalorder %s189, %s190
      %p201 = scmp.eq.s32.totalorder %s23, 0
      %p202 = por %p200, %p201
      %p203 = scmp.ne.s32.totalorder %s189, %s190
      %p204 = scmp.eq.s32.totalorder %s24, 1
      %p205 = por %p203, %p204
      %p207 = scmp.ne.s32.totalorder %s190, %s206
      %p208 = scmp.eq.s32.totalorder %s24, 0
      %p209 = por %p207, %p208
      %p210 = scmp.le.s32.totalorder 1, %s18
      %p211 = scmp.lt.s32.totalorder %s18, 3
      %p212 = pnand %p210, %p211
      %p213 = pneg %p212
      // Predicated region
      $region9: #{lstm_classifier_forward.1} parent=5 // pred_check
        _
      $region10: #{lstm_classifier_forward.1} parent=5 // pred_check_branch
        %215 = sbr.rel (%p212) target = $region12
      $region11: #{lstm_classifier_forward.1} parent=5 // pred_region
        %s216 = ssub.s32 %s18, 1
        // Predicated region
        $region13: #{lstm_classifier_forward.1} parent=11 // pred_check
          %p217 = pneg %p56
        $region14: #{lstm_classifier_forward.1} parent=11 // pred_check_branch
          %219 = sbr.rel (%p217) target = $region16
        $region15: #{lstm_classifier_forward.1} parent=11 // pred_region
          %p220 = scmp.lt.s32.totalorder %s27, 0
          %s221 = scalar_select %p220, %s27, 0
          %s222 = smul.addr %s221, 8
          %s223 = scalar_lea.vmem %s0, %s222
        $region16: #{lstm_classifier_forward.1} parent=11 // pred_fallthru
          _
        // Predicated region
        $region17: #{lstm_classifier_forward.1} parent=11 // pred_check
          %p224 = pneg %p155
        $region18: #{lstm_classifier_forward.1} parent=11 // pred_check_branch
          %226 = sbr.rel (%p224) target = $region20
        $region19: #{lstm_classifier_forward.1} parent=11 // pred_region
          %s228 = ssub.s32 2048, 2048
          %229 = vsyncadd [#allocation9], %s228
          %s230 = sshll.u32 [#allocation10], 4
          %s231 = int_to_ptr.vmem [resolvable:$true] %s230
          %236 = dma.hbm_to_vmem [thread:$0]  %s4, 2048, %s231, [#allocation9], 128, 128, 8
        $region20: #{lstm_classifier_forward.1} parent=11 // pred_fallthru
          _
        // Predicated region
        $region21: #{lstm_classifier_forward.1} parent=11 // pred_check
          %p237 = pneg %p176
        $region22: #{lstm_classifier_forward.1} parent=11 // pred_check_branch
          %239 = sbr.rel (%p237) target = $region24
        $region23: #{lstm_classifier_forward.1} parent=11 // pred_region
          _
        $region24: #{lstm_classifier_forward.1} parent=11 // pred_fallthru
          _
      $region12: #{lstm_classifier_forward.1} parent=5 // pred_fallthru
        _
      %p240 = scmp.lt.s32.totalorder %s18, 2
      // Predicated region
      $region25: #{lstm_classifier_forward.1} parent=5 // pred_check
        %p241 = pneg %p240
      $region26: #{lstm_classifier_forward.1} parent=5 // pred_check_branch
        %243 = sbr.rel (%p241) target = $region28
      $region27: #{lstm_classifier_forward.1} parent=5 // pred_region
        // Predicated region
        $region29: #{lstm_classifier_forward.1} parent=27 // pred_check
          %p244 = pneg %p76
        $region30: #{lstm_classifier_forward.1} parent=27 // pred_check_branch
          %246 = sbr.rel (%p244) target = $region32
        $region31: #{lstm_classifier_forward.1} parent=27 // pred_region
          %s247 = sand.u32 %s66, 1
          %s248 = scalar_lea.sflag [#allocation7], %s247
          %s249 = sand.u32 %s66, 1
          %s250 = smul.addr %s249, 512
          %s251 = scalar_lea.vmem [#allocation6], %s250
          %s253 = ssub.s32 8192, 8192
          %254 = vsyncadd %s248, %s253
          %s255 = smul.addr %s26, 64
          %s256 = smul.addr %s255, 128
          %s257 = scalar_lea.hbm %s1, %s256
          %s258 = sshll.u32 %s251, 4
          %s259 = int_to_ptr.vmem [resolvable:$true] %s258
          %264 = dma.hbm_to_vmem [thread:$0]  %s257, 8192, %s259, %s248, 512, 512, 32
        $region32: #{lstm_classifier_forward.1} parent=27 // pred_fallthru
          _
        // Predicated region
        $region33: #{lstm_classifier_forward.1} parent=27 // pred_check
          %p265 = pneg %p102
        $region34: #{lstm_classifier_forward.1} parent=27 // pred_check_branch
          %267 = sbr.rel (%p265) target = $region36
        $region35: #{lstm_classifier_forward.1} parent=27 // pred_region
          %s268 = sand.u32 %s18, 1
          %s269 = scalar_lea.sflag [#allocation9], %s268
          %s270 = sand.u32 %s92, 1
          %s271 = smul.addr %s270, 512
          %s272 = scalar_lea.vmem [#allocation8], %s271
          %s274 = ssub.s32 8192, 8192
          %275 = vsyncadd %s269, %s274
          %s276 = smul.addr %s26, 64
          %s277 = smul.addr %s276, 128
          %s278 = scalar_lea.hbm %s2, %s277
          %s279 = sshll.u32 %s272, 4
          %s280 = int_to_ptr.vmem [resolvable:$true] %s279
          %285 = dma.hbm_to_vmem [thread:$0]  %s278, 8192, %s280, %s269, 512, 512, 32
        $region36: #{lstm_classifier_forward.1} parent=27 // pred_fallthru
          _
        // Predicated region
        $region37: #{lstm_classifier_forward.1} parent=27 // pred_check
          %p286 = pneg %p128
        $region38: #{lstm_classifier_forward.1} parent=27 // pred_check_branch
          %288 = sbr.rel (%p286) target = $region40
        $region39: #{lstm_classifier_forward.1} parent=27 // pred_region
          %p289 = scmp.lt.s32.totalorder %s26, 1
          %s290 = scalar_select %p289, %s26, 1
          %s291 = smul.addr %s290, 4
          %s292 = scalar_lea.vmem %s3, %s291
        $region40: #{lstm_classifier_forward.1} parent=27 // pred_fallthru
          _
      $region28: #{lstm_classifier_forward.1} parent=5 // pred_fallthru
        _
      %p293 = scmp.le.s32.totalorder 1, %s18
      %p294 = scmp.lt.s32.totalorder %s18, 3
      %p295 = pnand %p293, %p294
      %p296 = pneg %p295
      // Predicated region
      $region41: #{lstm_classifier_forward.1} parent=5 // pred_check
        _
      $region42: #{lstm_classifier_forward.1} parent=5 // pred_check_branch
        %298 = sbr.rel (%p295) target = $region44
      $region43: #{lstm_classifier_forward.1} parent=5 // pred_region
        %s299 = ssub.s32 %s18, 1
        %s300 = sand.u32 %s69, 1
        %s301 = scalar_lea.sflag [#allocation7], %s300
        %s302 = sand.u32 %s69, 1
        %s303 = smul.addr %s302, 512
        %s304 = scalar_lea.vmem [#allocation6], %s303
        // Predicated region
        $region45: #{lstm_classifier_forward.1} parent=43 // pred_check
          %p305 = pneg %p82
        $region46: #{lstm_classifier_forward.1} parent=43 // pred_check_branch
          %307 = sbr.rel (%p305) target = $region48
        $region47: #{lstm_classifier_forward.1} parent=43 // pred_region
          %308 = dma.done %s301, 8192
        $region48: #{lstm_classifier_forward.1} parent=43 // pred_fallthru
          _
        %s309 = sand.u32 %s23, 1
        %s310 = scalar_lea.sflag [#allocation9], %s309
        %s311 = sand.u32 %s95, 1
        %s312 = smul.addr %s311, 512
        %s313 = scalar_lea.vmem [#allocation8], %s312
        // Predicated region
        $region49: #{lstm_classifier_forward.1} parent=43 // pred_check
          %p314 = pneg %p108
        $region50: #{lstm_classifier_forward.1} parent=43 // pred_check_branch
          %316 = sbr.rel (%p314) target = $region52
        $region51: #{lstm_classifier_forward.1} parent=43 // pred_region
          %317 = dma.done %s310, 8192
        $region52: #{lstm_classifier_forward.1} parent=43 // pred_fallthru
          _
        // Predicated region
        $region53: #{lstm_classifier_forward.1} parent=43 // pred_check
          %p318 = pneg %p155
        $region54: #{lstm_classifier_forward.1} parent=43 // pred_check_branch
          %320 = sbr.rel (%p318) target = $region56
        $region55: #{lstm_classifier_forward.1} parent=43 // pred_region
          %321 = dma.done [#allocation9], 2048
        $region56: #{lstm_classifier_forward.1} parent=43 // pred_fallthru
          _
        %p322 = scmp.lt.s32.totalorder %s27, 0
        %s323 = scalar_select %p322, %s27, 0
        %s324 = smul.addr %s323, 8
        %s325 = scalar_lea.vmem %s0, %s324
        %p326 = pneg %p56
        %p327 = pneg %p53
        %s328 = sand.u32 %s69, 1
        %s329 = scalar_lea.sflag [#allocation7], %s328
        %s330 = sand.u32 %s69, 1
        %s331 = smul.addr %s330, 512
        %s332 = scalar_lea.vmem [#allocation6], %s331
        %p333 = pneg %p82
        %p334 = pneg %p79
        %s335 = sand.u32 %s23, 1
        %s336 = scalar_lea.sflag [#allocation9], %s335
        %s337 = sand.u32 %s95, 1
        %s338 = smul.addr %s337, 512
        %s339 = scalar_lea.vmem [#allocation8], %s338
        %p340 = pneg %p108
        %p341 = pneg %p105
        %p342 = scmp.lt.s32.totalorder %s28, 1
        %s343 = scalar_select %p342, %s28, 1
        %s344 = smul.addr %s343, 4
        %s345 = scalar_lea.vmem %s3, %s344
        %p346 = pneg %p134
        %p347 = pneg %p131
        %p348 = pneg %p155
        %p349 = pneg %p152
        %p350 = pneg %p176
        %p351 = pneg %p173
        %p352 = pneg %p202
        %p353 = pneg %p199
        %p354 = scmp.lt.s32.totalorder %s27, 0
        %s355 = scalar_select %p354, %s27, 0
        %s356 = smul.addr %s355, 8
        %s357 = scalar_lea.vmem %s6, %s356
        %p358 = scmp.lt.s32.totalorder %s27, 0
        %s359 = scalar_select %p358, %s27, 0
        %s360 = smul.addr %s359, 8
        %s361 = scalar_lea.vmem %s0, %s360
        %p362 = scmp.lt.s32.totalorder %s28, 1
        %s363 = scalar_select %p362, %s28, 1
        %s364 = smul.addr %s363, 4
        %s365 = scalar_lea.vmem %s3, %s364
        %p366 = scmp.lt.s32.totalorder %s27, 0
        %s367 = scalar_select %p366, %s27, 0
        %s368 = smul.addr %s367, 8
        %s369 = scalar_lea.vmem %s6, %s368
        %p370 = scmp.eq.s32.totalorder %s28, 0
        // Predicated region
        $region57: #{lstm_classifier_forward.1} parent=43 // pred_check
          %p371 = pneg %p370
        $region58: #{lstm_classifier_forward.1} parent=43 // pred_check_branch
          %373 = sbr.rel (%p371) target = $region60
        $region59: #{lstm_classifier_forward.1} parent=43 // pred_region
          %v374 = vld [vmem:[%s361] sm:$0xff]
          %v375 = vld [vmem:[%s361 + $0x8] sm:$0xff]
          %v376 = vld [vmem:[%s361 + $0x10] sm:$0xff]
          %v377 = vld [vmem:[%s361 + $0x18] sm:$0xff]
          %v378 = vld [vmem:[%s361 + $0x20] sm:$0xff]
          %v379 = vld [vmem:[%s361 + $0x28] sm:$0xff]
          %v380 = vld [vmem:[%s361 + $0x30] sm:$0xff]
          %v381 = vld [vmem:[%s361 + $0x38] sm:$0xff]
          %v382 = vld [vmem:[%s304] sm:$0xff]
          %v383 = vld [vmem:[%s304 + $0x8] sm:$0xff]
          %v384 = vld [vmem:[%s304 + $0x10] sm:$0xff]
          %v385 = vld [vmem:[%s304 + $0x18] sm:$0xff]
          %v386 = vld [vmem:[%s304 + $0x20] sm:$0xff]
          %v387 = vld [vmem:[%s304 + $0x28] sm:$0xff]
          %v388 = vld [vmem:[%s304 + $0x30] sm:$0xff]
          %v389 = vld [vmem:[%s304 + $0x38] sm:$0xff]
          %v390 = vld [vmem:[%s304 + $0x40] sm:$0xff]
          %v391 = vld [vmem:[%s304 + $0x48] sm:$0xff]
          %v392 = vld [vmem:[%s304 + $0x50] sm:$0xff]
          %v393 = vld [vmem:[%s304 + $0x58] sm:$0xff]
          %v394 = vld [vmem:[%s304 + $0x60] sm:$0xff]
          %v395 = vld [vmem:[%s304 + $0x68] sm:$0xff]
          %v396 = vld [vmem:[%s304 + $0x70] sm:$0xff]
          %v397 = vld [vmem:[%s304 + $0x78] sm:$0xff]
          %v398 = vld [vmem:[%s304 + $0x80] sm:$0xff]
          %v399 = vld [vmem:[%s304 + $0x88] sm:$0xff]
          %v400 = vld [vmem:[%s304 + $0x90] sm:$0xff]
          %v401 = vld [vmem:[%s304 + $0x98] sm:$0xff]
          %v402 = vld [vmem:[%s304 + $0xa0] sm:$0xff]
          %v403 = vld [vmem:[%s304 + $0xa8] sm:$0xff]
          %v404 = vld [vmem:[%s304 + $0xb0] sm:$0xff]
          %v405 = vld [vmem:[%s304 + $0xb8] sm:$0xff]
          %v406 = vld [vmem:[%s304 + $0xc0] sm:$0xff]
          %v407 = vld [vmem:[%s304 + $0xc8] sm:$0xff]
          %v408 = vld [vmem:[%s304 + $0xd0] sm:$0xff]
          %v409 = vld [vmem:[%s304 + $0xd8] sm:$0xff]
          %v410 = vld [vmem:[%s304 + $0xe0] sm:$0xff]
          %v411 = vld [vmem:[%s304 + $0xe8] sm:$0xff]
          %v412 = vld [vmem:[%s304 + $0xf0] sm:$0xff]
          %v413 = vld [vmem:[%s304 + $0xf8] sm:$0xff]
          %v414 = vld [vmem:[%s304 + $0x100] sm:$0xff]
          %v415 = vld [vmem:[%s304 + $0x108] sm:$0xff]
          %v416 = vld [vmem:[%s304 + $0x110] sm:$0xff]
          %v417 = vld [vmem:[%s304 + $0x118] sm:$0xff]
          %v418 = vld [vmem:[%s304 + $0x120] sm:$0xff]
          %v419 = vld [vmem:[%s304 + $0x128] sm:$0xff]
          %v420 = vld [vmem:[%s304 + $0x130] sm:$0xff]
          %v421 = vld [vmem:[%s304 + $0x138] sm:$0xff]
          %v422 = vld [vmem:[%s304 + $0x140] sm:$0xff]
          %v423 = vld [vmem:[%s304 + $0x148] sm:$0xff]
          %v424 = vld [vmem:[%s304 + $0x150] sm:$0xff]
          %v425 = vld [vmem:[%s304 + $0x158] sm:$0xff]
          %v426 = vld [vmem:[%s304 + $0x160] sm:$0xff]
          %v427 = vld [vmem:[%s304 + $0x168] sm:$0xff]
          %v428 = vld [vmem:[%s304 + $0x170] sm:$0xff]
          %v429 = vld [vmem:[%s304 + $0x178] sm:$0xff]
          %v430 = vld [vmem:[%s304 + $0x180] sm:$0xff]
          %v431 = vld [vmem:[%s304 + $0x188] sm:$0xff]
          %v432 = vld [vmem:[%s304 + $0x190] sm:$0xff]
          %v433 = vld [vmem:[%s304 + $0x198] sm:$0xff]
          %v434 = vld [vmem:[%s304 + $0x1a0] sm:$0xff]
          %v435 = vld [vmem:[%s304 + $0x1a8] sm:$0xff]
          %v436 = vld [vmem:[%s304 + $0x1b0] sm:$0xff]
          %v437 = vld [vmem:[%s304 + $0x1b8] sm:$0xff]
          %v438 = vld [vmem:[%s304 + $0x1c0] sm:$0xff]
          %v439 = vld [vmem:[%s304 + $0x1c8] sm:$0xff]
          %v440 = vld [vmem:[%s304 + $0x1d0] sm:$0xff]
          %v441 = vld [vmem:[%s304 + $0x1d8] sm:$0xff]
          %v442 = vld [vmem:[%s304 + $0x1e0] sm:$0xff]
          %v443 = vld [vmem:[%s304 + $0x1e8] sm:$0xff]
          %v444 = vld [vmem:[%s304 + $0x1f0] sm:$0xff]
          %v445 = vld [vmem:[%s304 + $0x1f8] sm:$0xff]
          %v446 = vld [vmem:[%s365] sm:$0xf]
          %v448 = vlaneseq
          %v449 = vshrl.u32 %v448, 7
          %v450 = vsub.s32 0, %v449
          %v451 = vrot.slane %v446, %v450
          %v452 = vlaneseq
          %v453 = vshrl.u32 %v452, 7
          %v454 = vsub.s32 1, %v453
          %v455 = vrot.slane %v446, %v454
          %v456 = vlaneseq
          %v457 = vshrl.u32 %v456, 7
          %v458 = vsub.s32 2, %v457
          %v459 = vrot.slane %v446, %v458
          %v460 = vlaneseq
          %v461 = vshrl.u32 %v460, 7
          %v462 = vsub.s32 3, %v461
          %v463 = vrot.slane %v446, %v462
          %468 = vmatprep.subr.mxu0 %v443
          %469 = vmatpush1.msra.mxu0 %v442
          %470 = vmatprep.subr.mxu0 %v439
          %471 = vmatpush1.msra.mxu0 %v438
          %472 = vmatprep.subr.mxu0 %v435
          %473 = vmatpush1.msra.mxu0 %v434
          %474 = vmatprep.subr.mxu0 %v431
          %475 = vmatpush1.msra.mxu0 %v430
          %476 = vmatprep.subr.mxu0 %v427
          %477 = vmatpush1.msra.mxu0 %v426
          %478 = vmatprep.subr.mxu0 %v423
          %479 = vmatpush1.msra.mxu0 %v422
          %480 = vmatprep.subr.mxu0 %v419
          %481 = vmatpush1.msra.mxu0 %v418
          %482 = vmatprep.subr.mxu0 %v415
          %483 = vmatpush1.msra.mxu0 %v414
          %484 = vmatprep.subr.mxu0 %v411
          %485 = vmatpush1.msra.mxu0 %v410
          %486 = vmatprep.subr.mxu0 %v407
          %487 = vmatpush1.msra.mxu0 %v406
          %488 = vmatprep.subr.mxu0 %v403
          %489 = vmatpush1.msra.mxu0 %v402
          %490 = vmatprep.subr.mxu0 %v399
          %491 = vmatpush1.msra.mxu0 %v398
          %492 = vmatprep.subr.mxu0 %v395
          %493 = vmatpush1.msra.mxu0 %v394
          %494 = vmatprep.subr.mxu0 %v391
          %495 = vmatpush1.msra.mxu0 %v390
          %496 = vmatprep.subr.mxu0 %v387
          %497 = vmatpush1.msra.mxu0 %v386
          %498 = vmatprep.subr.mxu0 %v383
          %499 = vmatpush1.msra.mxu0 %v382
          %500 = vmatprep.subr.mxu0 0.0
          %501 = vmatpush2.msra.mxu0 0.0
          %502 = vmatprep.subr.mxu0 0.0
          %503 = vmatpush2.msra.mxu0 0.0
          %504 = vmatprep.subr.mxu0 0.0
          %505 = vmatpush2.msra.mxu0 0.0
          %506 = vmatprep.subr.mxu0 0.0
          %507 = vmatpush2.msra.mxu0 0.0
          %508 = vmatprep.subr.mxu0 0.0
          %509 = vmatpush2.msra.mxu0 0.0
          %510 = vmatprep.subr.mxu0 0.0
          %511 = vmatpush2.msra.mxu0 0.0
          %512 = vmatprep.subr.mxu0 0.0
          %513 = vmatpush2.msra.mxu0 0.0
          %514 = vmatprep.subr.mxu0 0.0
          %515 = vmatpush2.msra.mxu0 0.0
          %516 = vmatprep.subr.mxu0 0.0
          %517 = vmatpush2.msra.mxu0 0.0
          %518 = vmatprep.subr.mxu0 0.0
          %519 = vmatpush2.msra.mxu0 0.0
          %520 = vmatprep.subr.mxu0 0.0
          %521 = vmatpush2.msra.mxu0 0.0
          %522 = vmatprep.subr.mxu0 0.0
          %523 = vmatpush2.msra.mxu0 0.0
          %524 = vmatprep.subr.mxu0 0.0
          %525 = vmatpush2.msra.mxu0 0.0
          %526 = vmatprep.subr.mxu0 0.0
          %527 = vmatpush2.msra.mxu0 0.0
          %528 = vmatprep.subr.mxu0 0.0
          %529 = vmatpush2.msra.mxu0 0.0
          %530 = vmatprep.subr.mxu0 0.0
          %531 = vmatpush2.msra.mxu0 0.0
          %532 = vmatprep.mubr.f32.mxu0 0.0
          %533 = vmatmul.mubr.f32.gmra.mxu0 %v374
          %v534 = vpop.f32.mrf.mxu0
          %v535 = vadd.f32 %v451, %v534
          %v536 = vpop.f32.mrf.mxu0
          %v537 = vadd.f32 %v455, %v536
          %538 = vmatprep.mubr.f32.mxu0 0.0
          %539 = vmatmul.mubr.f32.gmra.mxu0 %v375
          %v540 = vpop.f32.mrf.mxu0
          %v541 = vadd.f32 %v451, %v540
          %v542 = vpop.f32.mrf.mxu0
          %v543 = vadd.f32 %v455, %v542
          %544 = vmatprep.mubr.f32.mxu0 0.0
          %545 = vmatmul.mubr.f32.gmra.mxu0 %v376
          %v546 = vpop.f32.mrf.mxu0
          %v547 = vadd.f32 %v451, %v546
          %v548 = vpop.f32.mrf.mxu0
          %v549 = vadd.f32 %v455, %v548
          %550 = vmatprep.mubr.f32.mxu0 0.0
          %551 = vmatmul.mubr.f32.gmra.mxu0 %v377
          %v552 = vpop.f32.mrf.mxu0
          %v553 = vadd.f32 %v451, %v552
          %v554 = vpop.f32.mrf.mxu0
          %v555 = vadd.f32 %v455, %v554
          %556 = vmatprep.mubr.f32.mxu0 0.0
          %557 = vmatmul.mubr.f32.gmra.mxu0 %v378
          %v558 = vpop.f32.mrf.mxu0
          %v559 = vadd.f32 %v451, %v558
          %v560 = vpop.f32.mrf.mxu0
          %v561 = vadd.f32 %v455, %v560
          %562 = vmatprep.mubr.f32.mxu0 0.0
          %563 = vmatmul.mubr.f32.gmra.mxu0 %v379
          %v564 = vpop.f32.mrf.mxu0
          %v565 = vadd.f32 %v451, %v564
          %v566 = vpop.f32.mrf.mxu0
          %v567 = vadd.f32 %v455, %v566
          %568 = vmatprep.mubr.f32.mxu0 0.0
          %569 = vmatmul.mubr.f32.gmra.mxu0 %v380
          %v570 = vpop.f32.mrf.mxu0
          %v571 = vadd.f32 %v451, %v570
          %v572 = vpop.f32.mrf.mxu0
          %v573 = vadd.f32 %v455, %v572
          %574 = vmatprep.mubr.f32.mxu0 0.0
          %575 = vmatmul.mubr.f32.gmra.mxu0 %v381
          %v576 = vpop.f32.mrf.mxu0
          %v577 = vadd.f32 %v451, %v576
          %v578 = vpop.f32.mrf.mxu0
          %v579 = vadd.f32 %v455, %v578
          %580 = vdwg.mxu0
          %581 = vmatprep.subr.mxu0 %v445
          %582 = vmatpush1.msra.mxu0 %v444
          %583 = vmatprep.subr.mxu0 %v441
          %584 = vmatpush1.msra.mxu0 %v440
          %585 = vmatprep.subr.mxu0 %v437
          %586 = vmatpush1.msra.mxu0 %v436
          %587 = vmatprep.subr.mxu0 %v433
          %588 = vmatpush1.msra.mxu0 %v432
          %589 = vmatprep.subr.mxu0 %v429
          %590 = vmatpush1.msra.mxu0 %v428
          %591 = vmatprep.subr.mxu0 %v425
          %592 = vmatpush1.msra.mxu0 %v424
          %593 = vmatprep.subr.mxu0 %v421
          %594 = vmatpush1.msra.mxu0 %v420
          %595 = vmatprep.subr.mxu0 %v417
          %596 = vmatpush1.msra.mxu0 %v416
          %597 = vmatprep.subr.mxu0 %v413
          %598 = vmatpush1.msra.mxu0 %v412
          %599 = vmatprep.subr.mxu0 %v409
          %600 = vmatpush1.msra.mxu0 %v408
          %601 = vmatprep.subr.mxu0 %v405
          %602 = vmatpush1.msra.mxu0 %v404
          %603 = vmatprep.subr.mxu0 %v401
          %604 = vmatpush1.msra.mxu0 %v400
          %605 = vmatprep.subr.mxu0 %v397
          %606 = vmatpush1.msra.mxu0 %v396
          %607 = vmatprep.subr.mxu0 %v393
          %608 = vmatpush1.msra.mxu0 %v392
          %609 = vmatprep.subr.mxu0 %v389
          %610 = vmatpush1.msra.mxu0 %v388
          %611 = vmatprep.subr.mxu0 %v385
          %612 = vmatpush1.msra.mxu0 %v384
          %613 = vmatprep.subr.mxu0 0.0
          %614 = vmatpush2.msra.mxu0 0.0
          %615 = vmatprep.subr.mxu0 0.0
          %616 = vmatpush2.msra.mxu0 0.0
          %617 = vmatprep.subr.mxu0 0.0
          %618 = vmatpush2.msra.mxu0 0.0
          %619 = vmatprep.subr.mxu0 0.0
          %620 = vmatpush2.msra.mxu0 0.0
          %621 = vmatprep.subr.mxu0 0.0
          %622 = vmatpush2.msra.mxu0 0.0
          %623 = vmatprep.subr.mxu0 0.0
          %624 = vmatpush2.msra.mxu0 0.0
          %625 = vmatprep.subr.mxu0 0.0
          %626 = vmatpush2.msra.mxu0 0.0
          %627 = vmatprep.subr.mxu0 0.0
          %628 = vmatpush2.msra.mxu0 0.0
          %629 = vmatprep.subr.mxu0 0.0
          %630 = vmatpush2.msra.mxu0 0.0
          %631 = vmatprep.subr.mxu0 0.0
          %632 = vmatpush2.msra.mxu0 0.0
          %633 = vmatprep.subr.mxu0 0.0
          %634 = vmatpush2.msra.mxu0 0.0
          %635 = vmatprep.subr.mxu0 0.0
          %636 = vmatpush2.msra.mxu0 0.0
          %637 = vmatprep.subr.mxu0 0.0
          %638 = vmatpush2.msra.mxu0 0.0
          %639 = vmatprep.subr.mxu0 0.0
          %640 = vmatpush2.msra.mxu0 0.0
          %641 = vmatprep.subr.mxu0 0.0
          %642 = vmatpush2.msra.mxu0 0.0
          %643 = vmatprep.subr.mxu0 0.0
          %644 = vmatpush2.msra.mxu0 0.0
          %645 = vmatprep.mubr.f32.mxu0 0.0
          %646 = vmatmul.mubr.f32.gmra.mxu0 %v374
          %v647 = vpop.f32.mrf.mxu0
          %v648 = vadd.f32 %v459, %v647
          %v649 = vpop.f32.mrf.mxu0
          %v650 = vadd.f32 %v463, %v649
          %651 = vmatprep.mubr.f32.mxu0 0.0
          %652 = vmatmul.mubr.f32.gmra.mxu0 %v375
          %v653 = vpop.f32.mrf.mxu0
          %v654 = vadd.f32 %v459, %v653
          %v655 = vpop.f32.mrf.mxu0
          %v656 = vadd.f32 %v463, %v655
          %657 = vmatprep.mubr.f32.mxu0 0.0
          %658 = vmatmul.mubr.f32.gmra.mxu0 %v376
          %v659 = vpop.f32.mrf.mxu0
          %v660 = vadd.f32 %v459, %v659
          %v661 = vpop.f32.mrf.mxu0
          %v662 = vadd.f32 %v463, %v661
          %663 = vmatprep.mubr.f32.mxu0 0.0
          %664 = vmatmul.mubr.f32.gmra.mxu0 %v377
          %v665 = vpop.f32.mrf.mxu0
          %v666 = vadd.f32 %v459, %v665
          %v667 = vpop.f32.mrf.mxu0
          %v668 = vadd.f32 %v463, %v667
          %669 = vmatprep.mubr.f32.mxu0 0.0
          %670 = vmatmul.mubr.f32.gmra.mxu0 %v378
          %v671 = vpop.f32.mrf.mxu0
          %v672 = vadd.f32 %v459, %v671
          %v673 = vpop.f32.mrf.mxu0
          %v674 = vadd.f32 %v463, %v673
          %675 = vmatprep.mubr.f32.mxu0 0.0
          %676 = vmatmul.mubr.f32.gmra.mxu0 %v379
          %v677 = vpop.f32.mrf.mxu0
          %v678 = vadd.f32 %v459, %v677
          %v679 = vpop.f32.mrf.mxu0
          %v680 = vadd.f32 %v463, %v679
          %681 = vmatprep.mubr.f32.mxu0 0.0
          %682 = vmatmul.mubr.f32.gmra.mxu0 %v380
          %v683 = vpop.f32.mrf.mxu0
          %v684 = vadd.f32 %v459, %v683
          %v685 = vpop.f32.mrf.mxu0
          %v686 = vadd.f32 %v463, %v685
          %687 = vmatprep.mubr.f32.mxu0 0.0
          %688 = vmatmul.mubr.f32.gmra.mxu0 %v381
          %v689 = vpop.f32.mrf.mxu0
          %v690 = vadd.f32 %v459, %v689
          %v691 = vpop.f32.mrf.mxu0
          %v692 = vadd.f32 %v463, %v691
          %693 = vdwg.mxu0
          %694 = vst [vmem:[#allocation3] sm:$0xff] %v535
          %695 = vst [vmem:[#allocation3 + $0x8] sm:$0xff] %v537
          %696 = vst [vmem:[#allocation3 + $0x10] sm:$0xff] %v648
          %697 = vst [vmem:[#allocation3 + $0x18] sm:$0xff] %v650
          %698 = vst [vmem:[#allocation3 + $0x20] sm:$0xff] %v541
          %699 = vst [vmem:[#allocation3 + $0x28] sm:$0xff] %v543
          %700 = vst [vmem:[#allocation3 + $0x30] sm:$0xff] %v654
          %701 = vst [vmem:[#allocation3 + $0x38] sm:$0xff] %v656
          %702 = vst [vmem:[#allocation3 + $0x40] sm:$0xff] %v547
          %703 = vst [vmem:[#allocation3 + $0x48] sm:$0xff] %v549
          %704 = vst [vmem:[#allocation3 + $0x50] sm:$0xff] %v660
          %705 = vst [vmem:[#allocation3 + $0x58] sm:$0xff] %v662
          %706 = vst [vmem:[#allocation3 + $0x60] sm:$0xff] %v553
          %707 = vst [vmem:[#allocation3 + $0x68] sm:$0xff] %v555
          %708 = vst [vmem:[#allocation3 + $0x70] sm:$0xff] %v666
          %709 = vst [vmem:[#allocation3 + $0x78] sm:$0xff] %v668
          %710 = vst [vmem:[#allocation3 + $0x80] sm:$0xff] %v559
          %711 = vst [vmem:[#allocation3 + $0x88] sm:$0xff] %v561
          %712 = vst [vmem:[#allocation3 + $0x90] sm:$0xff] %v672
          %713 = vst [vmem:[#allocation3 + $0x98] sm:$0xff] %v674
          %714 = vst [vmem:[#allocation3 + $0xa0] sm:$0xff] %v565
          %715 = vst [vmem:[#allocation3 + $0xa8] sm:$0xff] %v567
          %716 = vst [vmem:[#allocation3 + $0xb0] sm:$0xff] %v678
          %717 = vst [vmem:[#allocation3 + $0xb8] sm:$0xff] %v680
          %718 = vst [vmem:[#allocation3 + $0xc0] sm:$0xff] %v571
          %719 = vst [vmem:[#allocation3 + $0xc8] sm:$0xff] %v573
          %720 = vst [vmem:[#allocation3 + $0xd0] sm:$0xff] %v684
          %721 = vst [vmem:[#allocation3 + $0xd8] sm:$0xff] %v686
          %722 = vst [vmem:[#allocation3 + $0xe0] sm:$0xff] %v577
          %723 = vst [vmem:[#allocation3 + $0xe8] sm:$0xff] %v579
          %724 = vst [vmem:[#allocation3 + $0xf0] sm:$0xff] %v690
          %725 = vst [vmem:[#allocation3 + $0xf8] sm:$0xff] %v692
        $region60: #{lstm_classifier_forward.1} parent=43 // pred_fallthru
          _
        %p726 = scmp.gt.s32.totalorder %s28, 0
        // Predicated region
        $region61: #{lstm_classifier_forward.1} parent=43 // pred_check
          %p727 = pneg %p726
        $region62: #{lstm_classifier_forward.1} parent=43 // pred_check_branch
          %729 = sbr.rel (%p727) target = $region64
        $region63: #{lstm_classifier_forward.1} parent=43 // pred_region
          %v730 = vld [vmem:[#allocation2] sm:$0xff]
          %v731 = vld [vmem:[#allocation2 + $0x8] sm:$0xff]
          %v732 = vld [vmem:[#allocation2 + $0x10] sm:$0xff]
          %v733 = vld [vmem:[#allocation2 + $0x18] sm:$0xff]
          %v734 = vld [vmem:[#allocation2 + $0x20] sm:$0xff]
          %v735 = vld [vmem:[#allocation2 + $0x28] sm:$0xff]
          %v736 = vld [vmem:[#allocation2 + $0x30] sm:$0xff]
          %v737 = vld [vmem:[#allocation2 + $0x38] sm:$0xff]
          %v738 = vld [vmem:[%s304] sm:$0xff]
          %v739 = vld [vmem:[%s304 + $0x8] sm:$0xff]
          %v740 = vld [vmem:[%s304 + $0x10] sm:$0xff]
          %v741 = vld [vmem:[%s304 + $0x18] sm:$0xff]
          %v742 = vld [vmem:[%s304 + $0x20] sm:$0xff]
          %v743 = vld [vmem:[%s304 + $0x28] sm:$0xff]
          %v744 = vld [vmem:[%s304 + $0x30] sm:$0xff]
          %v745 = vld [vmem:[%s304 + $0x38] sm:$0xff]
          %v746 = vld [vmem:[%s304 + $0x40] sm:$0xff]
          %v747 = vld [vmem:[%s304 + $0x48] sm:$0xff]
          %v748 = vld [vmem:[%s304 + $0x50] sm:$0xff]
          %v749 = vld [vmem:[%s304 + $0x58] sm:$0xff]
          %v750 = vld [vmem:[%s304 + $0x60] sm:$0xff]
          %v751 = vld [vmem:[%s304 + $0x68] sm:$0xff]
          %v752 = vld [vmem:[%s304 + $0x70] sm:$0xff]
          %v753 = vld [vmem:[%s304 + $0x78] sm:$0xff]
          %v754 = vld [vmem:[%s304 + $0x80] sm:$0xff]
          %v755 = vld [vmem:[%s304 + $0x88] sm:$0xff]
          %v756 = vld [vmem:[%s304 + $0x90] sm:$0xff]
          %v757 = vld [vmem:[%s304 + $0x98] sm:$0xff]
          %v758 = vld [vmem:[%s304 + $0xa0] sm:$0xff]
          %v759 = vld [vmem:[%s304 + $0xa8] sm:$0xff]
          %v760 = vld [vmem:[%s304 + $0xb0] sm:$0xff]
          %v761 = vld [vmem:[%s304 + $0xb8] sm:$0xff]
          %v762 = vld [vmem:[%s304 + $0xc0] sm:$0xff]
          %v763 = vld [vmem:[%s304 + $0xc8] sm:$0xff]
          %v764 = vld [vmem:[%s304 + $0xd0] sm:$0xff]
          %v765 = vld [vmem:[%s304 + $0xd8] sm:$0xff]
          %v766 = vld [vmem:[%s304 + $0xe0] sm:$0xff]
          %v767 = vld [vmem:[%s304 + $0xe8] sm:$0xff]
          %v768 = vld [vmem:[%s304 + $0xf0] sm:$0xff]
          %v769 = vld [vmem:[%s304 + $0xf8] sm:$0xff]
          %v770 = vld [vmem:[%s304 + $0x100] sm:$0xff]
          %v771 = vld [vmem:[%s304 + $0x108] sm:$0xff]
          %v772 = vld [vmem:[%s304 + $0x110] sm:$0xff]
          %v773 = vld [vmem:[%s304 + $0x118] sm:$0xff]
          %v774 = vld [vmem:[%s304 + $0x120] sm:$0xff]
          %v775 = vld [vmem:[%s304 + $0x128] sm:$0xff]
          %v776 = vld [vmem:[%s304 + $0x130] sm:$0xff]
          %v777 = vld [vmem:[%s304 + $0x138] sm:$0xff]
          %v778 = vld [vmem:[%s304 + $0x140] sm:$0xff]
          %v779 = vld [vmem:[%s304 + $0x148] sm:$0xff]
          %v780 = vld [vmem:[%s304 + $0x150] sm:$0xff]
          %v781 = vld [vmem:[%s304 + $0x158] sm:$0xff]
          %v782 = vld [vmem:[%s304 + $0x160] sm:$0xff]
          %v783 = vld [vmem:[%s304 + $0x168] sm:$0xff]
          %v784 = vld [vmem:[%s304 + $0x170] sm:$0xff]
          %v785 = vld [vmem:[%s304 + $0x178] sm:$0xff]
          %v786 = vld [vmem:[%s304 + $0x180] sm:$0xff]
          %v787 = vld [vmem:[%s304 + $0x188] sm:$0xff]
          %v788 = vld [vmem:[%s304 + $0x190] sm:$0xff]
          %v789 = vld [vmem:[%s304 + $0x198] sm:$0xff]
          %v790 = vld [vmem:[%s304 + $0x1a0] sm:$0xff]
          %v791 = vld [vmem:[%s304 + $0x1a8] sm:$0xff]
          %v792 = vld [vmem:[%s304 + $0x1b0] sm:$0xff]
          %v793 = vld [vmem:[%s304 + $0x1b8] sm:$0xff]
          %v794 = vld [vmem:[%s304 + $0x1c0] sm:$0xff]
          %v795 = vld [vmem:[%s304 + $0x1c8] sm:$0xff]
          %v796 = vld [vmem:[%s304 + $0x1d0] sm:$0xff]
          %v797 = vld [vmem:[%s304 + $0x1d8] sm:$0xff]
          %v798 = vld [vmem:[%s304 + $0x1e0] sm:$0xff]
          %v799 = vld [vmem:[%s304 + $0x1e8] sm:$0xff]
          %v800 = vld [vmem:[%s304 + $0x1f0] sm:$0xff]
          %v801 = vld [vmem:[%s304 + $0x1f8] sm:$0xff]
          %v802 = vld [vmem:[%s365] sm:$0xf]
          %v804 = vlaneseq
          %v805 = vshrl.u32 %v804, 7
          %v806 = vsub.s32 0, %v805
          %v807 = vrot.slane %v802, %v806
          %v808 = vlaneseq
          %v809 = vshrl.u32 %v808, 7
          %v810 = vsub.s32 1, %v809
          %v811 = vrot.slane %v802, %v810
          %v812 = vlaneseq
          %v813 = vshrl.u32 %v812, 7
          %v814 = vsub.s32 2, %v813
          %v815 = vrot.slane %v802, %v814
          %v816 = vlaneseq
          %v817 = vshrl.u32 %v816, 7
          %v818 = vsub.s32 3, %v817
          %v819 = vrot.slane %v802, %v818
          %824 = vmatprep.subr.mxu0 %v799
          %825 = vmatpush1.msra.mxu0 %v798
          %826 = vmatprep.subr.mxu0 %v795
          %827 = vmatpush1.msra.mxu0 %v794
          %828 = vmatprep.subr.mxu0 %v791
          %829 = vmatpush1.msra.mxu0 %v790
          %830 = vmatprep.subr.mxu0 %v787
          %831 = vmatpush1.msra.mxu0 %v786
          %832 = vmatprep.subr.mxu0 %v783
          %833 = vmatpush1.msra.mxu0 %v782
          %834 = vmatprep.subr.mxu0 %v779
          %835 = vmatpush1.msra.mxu0 %v778
          %836 = vmatprep.subr.mxu0 %v775
          %837 = vmatpush1.msra.mxu0 %v774
          %838 = vmatprep.subr.mxu0 %v771
          %839 = vmatpush1.msra.mxu0 %v770
          %840 = vmatprep.subr.mxu0 %v767
          %841 = vmatpush1.msra.mxu0 %v766
          %842 = vmatprep.subr.mxu0 %v763
          %843 = vmatpush1.msra.mxu0 %v762
          %844 = vmatprep.subr.mxu0 %v759
          %845 = vmatpush1.msra.mxu0 %v758
          %846 = vmatprep.subr.mxu0 %v755
          %847 = vmatpush1.msra.mxu0 %v754
          %848 = vmatprep.subr.mxu0 %v751
          %849 = vmatpush1.msra.mxu0 %v750
          %850 = vmatprep.subr.mxu0 %v747
          %851 = vmatpush1.msra.mxu0 %v746
          %852 = vmatprep.subr.mxu0 %v743
          %853 = vmatpush1.msra.mxu0 %v742
          %854 = vmatprep.subr.mxu0 %v739
          %855 = vmatpush1.msra.mxu0 %v738
          %856 = vmatprep.subr.mxu0 0.0
          %857 = vmatpush2.msra.mxu0 0.0
          %858 = vmatprep.subr.mxu0 0.0
          %859 = vmatpush2.msra.mxu0 0.0
          %860 = vmatprep.subr.mxu0 0.0
          %861 = vmatpush2.msra.mxu0 0.0
          %862 = vmatprep.subr.mxu0 0.0
          %863 = vmatpush2.msra.mxu0 0.0
          %864 = vmatprep.subr.mxu0 0.0
          %865 = vmatpush2.msra.mxu0 0.0
          %866 = vmatprep.subr.mxu0 0.0
          %867 = vmatpush2.msra.mxu0 0.0
          %868 = vmatprep.subr.mxu0 0.0
          %869 = vmatpush2.msra.mxu0 0.0
          %870 = vmatprep.subr.mxu0 0.0
          %871 = vmatpush2.msra.mxu0 0.0
          %872 = vmatprep.subr.mxu0 0.0
          %873 = vmatpush2.msra.mxu0 0.0
          %874 = vmatprep.subr.mxu0 0.0
          %875 = vmatpush2.msra.mxu0 0.0
          %876 = vmatprep.subr.mxu0 0.0
          %877 = vmatpush2.msra.mxu0 0.0
          %878 = vmatprep.subr.mxu0 0.0
          %879 = vmatpush2.msra.mxu0 0.0
          %880 = vmatprep.subr.mxu0 0.0
          %881 = vmatpush2.msra.mxu0 0.0
          %882 = vmatprep.subr.mxu0 0.0
          %883 = vmatpush2.msra.mxu0 0.0
          %884 = vmatprep.subr.mxu0 0.0
          %885 = vmatpush2.msra.mxu0 0.0
          %886 = vmatprep.subr.mxu0 0.0
          %887 = vmatpush2.msra.mxu0 0.0
          %888 = vmatprep.mubr.f32.mxu0 0.0
          %889 = vmatmul.mubr.f32.gmra.mxu0 %v730
          %v890 = vpop.f32.mrf.mxu0
          %v891 = vadd.f32 %v807, %v890
          %v892 = vpop.f32.mrf.mxu0
          %v893 = vadd.f32 %v811, %v892
          %894 = vmatprep.mubr.f32.mxu0 0.0
          %895 = vmatmul.mubr.f32.gmra.mxu0 %v731
          %v896 = vpop.f32.mrf.mxu0
          %v897 = vadd.f32 %v807, %v896
          %v898 = vpop.f32.mrf.mxu0
          %v899 = vadd.f32 %v811, %v898
          %900 = vmatprep.mubr.f32.mxu0 0.0
          %901 = vmatmul.mubr.f32.gmra.mxu0 %v732
          %v902 = vpop.f32.mrf.mxu0
          %v903 = vadd.f32 %v807, %v902
          %v904 = vpop.f32.mrf.mxu0
          %v905 = vadd.f32 %v811, %v904
          %906 = vmatprep.mubr.f32.mxu0 0.0
          %907 = vmatmul.mubr.f32.gmra.mxu0 %v733
          %v908 = vpop.f32.mrf.mxu0
          %v909 = vadd.f32 %v807, %v908
          %v910 = vpop.f32.mrf.mxu0
          %v911 = vadd.f32 %v811, %v910
          %912 = vmatprep.mubr.f32.mxu0 0.0
          %913 = vmatmul.mubr.f32.gmra.mxu0 %v734
          %v914 = vpop.f32.mrf.mxu0
          %v915 = vadd.f32 %v807, %v914
          %v916 = vpop.f32.mrf.mxu0
          %v917 = vadd.f32 %v811, %v916
          %918 = vmatprep.mubr.f32.mxu0 0.0
          %919 = vmatmul.mubr.f32.gmra.mxu0 %v735
          %v920 = vpop.f32.mrf.mxu0
          %v921 = vadd.f32 %v807, %v920
          %v922 = vpop.f32.mrf.mxu0
          %v923 = vadd.f32 %v811, %v922
          %924 = vmatprep.mubr.f32.mxu0 0.0
          %925 = vmatmul.mubr.f32.gmra.mxu0 %v736
          %v926 = vpop.f32.mrf.mxu0
          %v927 = vadd.f32 %v807, %v926
          %v928 = vpop.f32.mrf.mxu0
          %v929 = vadd.f32 %v811, %v928
          %930 = vmatprep.mubr.f32.mxu0 0.0
          %931 = vmatmul.mubr.f32.gmra.mxu0 %v737
          %v932 = vpop.f32.mrf.mxu0
          %v933 = vadd.f32 %v807, %v932
          %v934 = vpop.f32.mrf.mxu0
          %v935 = vadd.f32 %v811, %v934
          %936 = vdwg.mxu0
          %937 = vmatprep.subr.mxu0 %v801
          %938 = vmatpush1.msra.mxu0 %v800
          %939 = vmatprep.subr.mxu0 %v797
          %940 = vmatpush1.msra.mxu0 %v796
          %941 = vmatprep.subr.mxu0 %v793
          %942 = vmatpush1.msra.mxu0 %v792
          %943 = vmatprep.subr.mxu0 %v789
          %944 = vmatpush1.msra.mxu0 %v788
          %945 = vmatprep.subr.mxu0 %v785
          %946 = vmatpush1.msra.mxu0 %v784
          %947 = vmatprep.subr.mxu0 %v781
          %948 = vmatpush1.msra.mxu0 %v780
          %949 = vmatprep.subr.mxu0 %v777
          %950 = vmatpush1.msra.mxu0 %v776
          %951 = vmatprep.subr.mxu0 %v773
          %952 = vmatpush1.msra.mxu0 %v772
          %953 = vmatprep.subr.mxu0 %v769
          %954 = vmatpush1.msra.mxu0 %v768
          %955 = vmatprep.subr.mxu0 %v765
          %956 = vmatpush1.msra.mxu0 %v764
          %957 = vmatprep.subr.mxu0 %v761
          %958 = vmatpush1.msra.mxu0 %v760
          %959 = vmatprep.subr.mxu0 %v757
          %960 = vmatpush1.msra.mxu0 %v756
          %961 = vmatprep.subr.mxu0 %v753
          %962 = vmatpush1.msra.mxu0 %v752
          %963 = vmatprep.subr.mxu0 %v749
          %964 = vmatpush1.msra.mxu0 %v748
          %965 = vmatprep.subr.mxu0 %v745
          %966 = vmatpush1.msra.mxu0 %v744
          %967 = vmatprep.subr.mxu0 %v741
          %968 = vmatpush1.msra.mxu0 %v740
          %969 = vmatprep.subr.mxu0 0.0
          %970 = vmatpush2.msra.mxu0 0.0
          %971 = vmatprep.subr.mxu0 0.0
          %972 = vmatpush2.msra.mxu0 0.0
          %973 = vmatprep.subr.mxu0 0.0
          %974 = vmatpush2.msra.mxu0 0.0
          %975 = vmatprep.subr.mxu0 0.0
          %976 = vmatpush2.msra.mxu0 0.0
          %977 = vmatprep.subr.mxu0 0.0
          %978 = vmatpush2.msra.mxu0 0.0
          %979 = vmatprep.subr.mxu0 0.0
          %980 = vmatpush2.msra.mxu0 0.0
          %981 = vmatprep.subr.mxu0 0.0
          %982 = vmatpush2.msra.mxu0 0.0
          %983 = vmatprep.subr.mxu0 0.0
          %984 = vmatpush2.msra.mxu0 0.0
          %985 = vmatprep.subr.mxu0 0.0
          %986 = vmatpush2.msra.mxu0 0.0
          %987 = vmatprep.subr.mxu0 0.0
          %988 = vmatpush2.msra.mxu0 0.0
          %989 = vmatprep.subr.mxu0 0.0
          %990 = vmatpush2.msra.mxu0 0.0
          %991 = vmatprep.subr.mxu0 0.0
          %992 = vmatpush2.msra.mxu0 0.0
          %993 = vmatprep.subr.mxu0 0.0
          %994 = vmatpush2.msra.mxu0 0.0
          %995 = vmatprep.subr.mxu0 0.0
          %996 = vmatpush2.msra.mxu0 0.0
          %997 = vmatprep.subr.mxu0 0.0
          %998 = vmatpush2.msra.mxu0 0.0
          %999 = vmatprep.subr.mxu0 0.0
          %1000 = vmatpush2.msra.mxu0 0.0
          %1001 = vmatprep.mubr.f32.mxu0 0.0
          %1002 = vmatmul.mubr.f32.gmra.mxu0 %v730
          %v1003 = vpop.f32.mrf.mxu0
          %v1004 = vadd.f32 %v815, %v1003
          %v1005 = vpop.f32.mrf.mxu0
          %v1006 = vadd.f32 %v819, %v1005
          %1007 = vmatprep.mubr.f32.mxu0 0.0
          %1008 = vmatmul.mubr.f32.gmra.mxu0 %v731
          %v1009 = vpop.f32.mrf.mxu0
          %v1010 = vadd.f32 %v815, %v1009
          %v1011 = vpop.f32.mrf.mxu0
          %v1012 = vadd.f32 %v819, %v1011
          %1013 = vmatprep.mubr.f32.mxu0 0.0
          %1014 = vmatmul.mubr.f32.gmra.mxu0 %v732
          %v1015 = vpop.f32.mrf.mxu0
          %v1016 = vadd.f32 %v815, %v1015
          %v1017 = vpop.f32.mrf.mxu0
          %v1018 = vadd.f32 %v819, %v1017
          %1019 = vmatprep.mubr.f32.mxu0 0.0
          %1020 = vmatmul.mubr.f32.gmra.mxu0 %v733
          %v1021 = vpop.f32.mrf.mxu0
          %v1022 = vadd.f32 %v815, %v1021
          %v1023 = vpop.f32.mrf.mxu0
          %v1024 = vadd.f32 %v819, %v1023
          %1025 = vmatprep.mubr.f32.mxu0 0.0
          %1026 = vmatmul.mubr.f32.gmra.mxu0 %v734
          %v1027 = vpop.f32.mrf.mxu0
          %v1028 = vadd.f32 %v815, %v1027
          %v1029 = vpop.f32.mrf.mxu0
          %v1030 = vadd.f32 %v819, %v1029
          %1031 = vmatprep.mubr.f32.mxu0 0.0
          %1032 = vmatmul.mubr.f32.gmra.mxu0 %v735
          %v1033 = vpop.f32.mrf.mxu0
          %v1034 = vadd.f32 %v815, %v1033
          %v1035 = vpop.f32.mrf.mxu0
          %v1036 = vadd.f32 %v819, %v1035
          %1037 = vmatprep.mubr.f32.mxu0 0.0
          %1038 = vmatmul.mubr.f32.gmra.mxu0 %v736
          %v1039 = vpop.f32.mrf.mxu0
          %v1040 = vadd.f32 %v815, %v1039
          %v1041 = vpop.f32.mrf.mxu0
          %v1042 = vadd.f32 %v819, %v1041
          %1043 = vmatprep.mubr.f32.mxu0 0.0
          %1044 = vmatmul.mubr.f32.gmra.mxu0 %v737
          %v1045 = vpop.f32.mrf.mxu0
          %v1046 = vadd.f32 %v815, %v1045
          %v1047 = vpop.f32.mrf.mxu0
          %v1048 = vadd.f32 %v819, %v1047
          %1049 = vdwg.mxu0
          %1050 = vst [vmem:[#allocation3] sm:$0xff] %v891
          %1051 = vst [vmem:[#allocation3 + $0x8] sm:$0xff] %v893
          %1052 = vst [vmem:[#allocation3 + $0x10] sm:$0xff] %v1004
          %1053 = vst [vmem:[#allocation3 + $0x18] sm:$0xff] %v1006
          %1054 = vst [vmem:[#allocation3 + $0x20] sm:$0xff] %v897
          %1055 = vst [vmem:[#allocation3 + $0x28] sm:$0xff] %v899
          %1056 = vst [vmem:[#allocation3 + $0x30] sm:$0xff] %v1010
          %1057 = vst [vmem:[#allocation3 + $0x38] sm:$0xff] %v1012
          %1058 = vst [vmem:[#allocation3 + $0x40] sm:$0xff] %v903
          %1059 = vst [vmem:[#allocation3 + $0x48] sm:$0xff] %v905
          %1060 = vst [vmem:[#allocation3 + $0x50] sm:$0xff] %v1016
          %1061 = vst [vmem:[#allocation3 + $0x58] sm:$0xff] %v1018
          %1062 = vst [vmem:[#allocation3 + $0x60] sm:$0xff] %v909
          %1063 = vst [vmem:[#allocation3 + $0x68] sm:$0xff] %v911
          %1064 = vst [vmem:[#allocation3 + $0x70] sm:$0xff] %v1022
          %1065 = vst [vmem:[#allocation3 + $0x78] sm:$0xff] %v1024
          %1066 = vst [vmem:[#allocation3 + $0x80] sm:$0xff] %v915
          %1067 = vst [vmem:[#allocation3 + $0x88] sm:$0xff] %v917
          %1068 = vst [vmem:[#allocation3 + $0x90] sm:$0xff] %v1028
          %1069 = vst [vmem:[#allocation3 + $0x98] sm:$0xff] %v1030
          %1070 = vst [vmem:[#allocation3 + $0xa0] sm:$0xff] %v921
          %1071 = vst [vmem:[#allocation3 + $0xa8] sm:$0xff] %v923
          %1072 = vst [vmem:[#allocation3 + $0xb0] sm:$0xff] %v1034
          %1073 = vst [vmem:[#allocation3 + $0xb8] sm:$0xff] %v1036
          %1074 = vst [vmem:[#allocation3 + $0xc0] sm:$0xff] %v927
          %1075 = vst [vmem:[#allocation3 + $0xc8] sm:$0xff] %v929
          %1076 = vst [vmem:[#allocation3 + $0xd0] sm:$0xff] %v1040
          %1077 = vst [vmem:[#allocation3 + $0xd8] sm:$0xff] %v1042
          %1078 = vst [vmem:[#allocation3 + $0xe0] sm:$0xff] %v933
          %1079 = vst [vmem:[#allocation3 + $0xe8] sm:$0xff] %v935
          %1080 = vst [vmem:[#allocation3 + $0xf0] sm:$0xff] %v1046
          %1081 = vst [vmem:[#allocation3 + $0xf8] sm:$0xff] %v1048
        $region64: #{lstm_classifier_forward.1} parent=43 // pred_fallthru
          _
        %1082 = vst [vmem:[#allocation4] sm:$0xff] 0.0
        %1083 = vst [vmem:[#allocation5] sm:$0xff] 0.0
        %v1084 = vld [vmem:[#allocation4] sm:$0xff]
        %v1085 = vld [vmem:[#allocation5] sm:$0xff]
        %v1086 = vld [vmem:[#allocation3] sm:$0xff]
        %v1087 = vld [vmem:[#allocation3 + $0x8] sm:$0xff]
        %v1088 = vld [vmem:[#allocation3 + $0x10] sm:$0xff]
        %v1089 = vld [vmem:[#allocation3 + $0x18] sm:$0xff]
        %v1090 = vld [vmem:[%s313] sm:$0xff]
        %v1091 = vld [vmem:[%s313 + $0x8] sm:$0xff]
        %v1092 = vld [vmem:[%s313 + $0x10] sm:$0xff]
        %v1093 = vld [vmem:[%s313 + $0x18] sm:$0xff]
        %v1094 = vld [vmem:[%s313 + $0x20] sm:$0xff]
        %v1095 = vld [vmem:[%s313 + $0x28] sm:$0xff]
        %v1096 = vld [vmem:[%s313 + $0x30] sm:$0xff]
        %v1097 = vld [vmem:[%s313 + $0x38] sm:$0xff]
        %v1098 = vld [vmem:[%s313 + $0x40] sm:$0xff]
        %v1099 = vld [vmem:[%s313 + $0x48] sm:$0xff]
        %v1100 = vld [vmem:[%s313 + $0x50] sm:$0xff]
        %v1101 = vld [vmem:[%s313 + $0x58] sm:$0xff]
        %v1102 = vld [vmem:[%s313 + $0x60] sm:$0xff]
        %v1103 = vld [vmem:[%s313 + $0x68] sm:$0xff]
        %v1104 = vld [vmem:[%s313 + $0x70] sm:$0xff]
        %v1105 = vld [vmem:[%s313 + $0x78] sm:$0xff]
        %v1106 = vld [vmem:[%s313 + $0x80] sm:$0xff]
        %v1107 = vld [vmem:[%s313 + $0x88] sm:$0xff]
        %v1108 = vld [vmem:[%s313 + $0x90] sm:$0xff]
        %v1109 = vld [vmem:[%s313 + $0x98] sm:$0xff]
        %v1110 = vld [vmem:[%s313 + $0xa0] sm:$0xff]
        %v1111 = vld [vmem:[%s313 + $0xa8] sm:$0xff]
        %v1112 = vld [vmem:[%s313 + $0xb0] sm:$0xff]
        %v1113 = vld [vmem:[%s313 + $0xb8] sm:$0xff]
        %v1114 = vld [vmem:[%s313 + $0xc0] sm:$0xff]
        %v1115 = vld [vmem:[%s313 + $0xc8] sm:$0xff]
        %v1116 = vld [vmem:[%s313 + $0xd0] sm:$0xff]
        %v1117 = vld [vmem:[%s313 + $0xd8] sm:$0xff]
        %v1118 = vld [vmem:[%s313 + $0xe0] sm:$0xff]
        %v1119 = vld [vmem:[%s313 + $0xe8] sm:$0xff]
        %v1120 = vld [vmem:[%s313 + $0xf0] sm:$0xff]
        %v1121 = vld [vmem:[%s313 + $0xf8] sm:$0xff]
        %v1122 = vld [vmem:[%s313 + $0x100] sm:$0xff]
        %v1123 = vld [vmem:[%s313 + $0x108] sm:$0xff]
        %v1124 = vld [vmem:[%s313 + $0x110] sm:$0xff]
        %v1125 = vld [vmem:[%s313 + $0x118] sm:$0xff]
        %v1126 = vld [vmem:[%s313 + $0x120] sm:$0xff]
        %v1127 = vld [vmem:[%s313 + $0x128] sm:$0xff]
        %v1128 = vld [vmem:[%s313 + $0x130] sm:$0xff]
        %v1129 = vld [vmem:[%s313 + $0x138] sm:$0xff]
        %v1130 = vld [vmem:[%s313 + $0x140] sm:$0xff]
        %v1131 = vld [vmem:[%s313 + $0x148] sm:$0xff]
        %v1132 = vld [vmem:[%s313 + $0x150] sm:$0xff]
        %v1133 = vld [vmem:[%s313 + $0x158] sm:$0xff]
        %v1134 = vld [vmem:[%s313 + $0x160] sm:$0xff]
        %v1135 = vld [vmem:[%s313 + $0x168] sm:$0xff]
        %v1136 = vld [vmem:[%s313 + $0x170] sm:$0xff]
        %v1137 = vld [vmem:[%s313 + $0x178] sm:$0xff]
        %v1138 = vld [vmem:[%s313 + $0x180] sm:$0xff]
        %v1139 = vld [vmem:[%s313 + $0x188] sm:$0xff]
        %v1140 = vld [vmem:[%s313 + $0x190] sm:$0xff]
        %v1141 = vld [vmem:[%s313 + $0x198] sm:$0xff]
        %v1142 = vld [vmem:[%s313 + $0x1a0] sm:$0xff]
        %v1143 = vld [vmem:[%s313 + $0x1a8] sm:$0xff]
        %v1144 = vld [vmem:[%s313 + $0x1b0] sm:$0xff]
        %v1145 = vld [vmem:[%s313 + $0x1b8] sm:$0xff]
        %v1146 = vld [vmem:[%s313 + $0x1c0] sm:$0xff]
        %v1147 = vld [vmem:[%s313 + $0x1c8] sm:$0xff]
        %v1148 = vld [vmem:[%s313 + $0x1d0] sm:$0xff]
        %v1149 = vld [vmem:[%s313 + $0x1d8] sm:$0xff]
        %v1150 = vld [vmem:[%s313 + $0x1e0] sm:$0xff]
        %v1151 = vld [vmem:[%s313 + $0x1e8] sm:$0xff]
        %v1152 = vld [vmem:[%s313 + $0x1f0] sm:$0xff]
        %v1153 = vld [vmem:[%s313 + $0x1f8] sm:$0xff]
        %1154 = vmatprep.subr.mxu0 %v1151
        %1155 = vmatpush1.msra.mxu0 %v1150
        %1156 = vmatprep.subr.mxu0 %v1147
        %1157 = vmatpush1.msra.mxu0 %v1146
        %1158 = vmatprep.subr.mxu0 %v1143
        %1159 = vmatpush1.msra.mxu0 %v1142
        %1160 = vmatprep.subr.mxu0 %v1139
        %1161 = vmatpush1.msra.mxu0 %v1138
        %1162 = vmatprep.subr.mxu0 %v1135
        %1163 = vmatpush1.msra.mxu0 %v1134
        %1164 = vmatprep.subr.mxu0 %v1131
        %1165 = vmatpush1.msra.mxu0 %v1130
        %1166 = vmatprep.subr.mxu0 %v1127
        %1167 = vmatpush1.msra.mxu0 %v1126
        %1168 = vmatprep.subr.mxu0 %v1123
        %1169 = vmatpush1.msra.mxu0 %v1122
        %1170 = vmatprep.subr.mxu0 %v1119
        %1171 = vmatpush1.msra.mxu0 %v1118
        %1172 = vmatprep.subr.mxu0 %v1115
        %1173 = vmatpush1.msra.mxu0 %v1114
        %1174 = vmatprep.subr.mxu0 %v1111
        %1175 = vmatpush1.msra.mxu0 %v1110
        %1176 = vmatprep.subr.mxu0 %v1107
        %1177 = vmatpush1.msra.mxu0 %v1106
        %1178 = vmatprep.subr.mxu0 %v1103
        %1179 = vmatpush1.msra.mxu0 %v1102
        %1180 = vmatprep.subr.mxu0 %v1099
        %1181 = vmatpush1.msra.mxu0 %v1098
        %1182 = vmatprep.subr.mxu0 %v1095
        %1183 = vmatpush1.msra.mxu0 %v1094
        %1184 = vmatprep.subr.mxu0 %v1091
        %1185 = vmatpush1.msra.mxu0 %v1090
        %1186 = vmatprep.subr.mxu0 0.0
        %1187 = vmatpush2.msra.mxu0 0.0
        %1188 = vmatprep.subr.mxu0 0.0
        %1189 = vmatpush2.msra.mxu0 0.0
        %1190 = vmatprep.subr.mxu0 0.0
        %1191 = vmatpush2.msra.mxu0 0.0
        %1192 = vmatprep.subr.mxu0 0.0
        %1193 = vmatpush2.msra.mxu0 0.0
        %1194 = vmatprep.subr.mxu0 0.0
        %1195 = vmatpush2.msra.mxu0 0.0
        %1196 = vmatprep.subr.mxu0 0.0
        %1197 = vmatpush2.msra.mxu0 0.0
        %1198 = vmatprep.subr.mxu0 0.0
        %1199 = vmatpush2.msra.mxu0 0.0
        %1200 = vmatprep.subr.mxu0 0.0
        %1201 = vmatpush2.msra.mxu0 0.0
        %1202 = vmatprep.subr.mxu0 0.0
        %1203 = vmatpush2.msra.mxu0 0.0
        %1204 = vmatprep.subr.mxu0 0.0
        %1205 = vmatpush2.msra.mxu0 0.0
        %1206 = vmatprep.subr.mxu0 0.0
        %1207 = vmatpush2.msra.mxu0 0.0
        %1208 = vmatprep.subr.mxu0 0.0
        %1209 = vmatpush2.msra.mxu0 0.0
        %1210 = vmatprep.subr.mxu0 0.0
        %1211 = vmatpush2.msra.mxu0 0.0
        %1212 = vmatprep.subr.mxu0 0.0
        %1213 = vmatpush2.msra.mxu0 0.0
        %1214 = vmatprep.subr.mxu0 0.0
        %1215 = vmatpush2.msra.mxu0 0.0
        %1216 = vmatprep.subr.mxu0 0.0
        %1217 = vmatpush2.msra.mxu0 0.0
        %1218 = vmatprep.mubr.f32.mxu0 0.0
        %1219 = vmatmul.mubr.f32.gmra.mxu0 %v1084
        %v1220 = vpop.f32.mrf.mxu0
        %v1221 = vadd.f32 0.0, %v1220
        %v1222 = vpop.f32.mrf.mxu0
        %v1223 = vadd.f32 0.0, %v1222
        %1224 = vdwg.mxu0
        %1225 = vmatprep.subr.mxu0 %v1153
        %1226 = vmatpush1.msra.mxu0 %v1152
        %1227 = vmatprep.subr.mxu0 %v1149
        %1228 = vmatpush1.msra.mxu0 %v1148
        %1229 = vmatprep.subr.mxu0 %v1145
        %1230 = vmatpush1.msra.mxu0 %v1144
        %1231 = vmatprep.subr.mxu0 %v1141
        %1232 = vmatpush1.msra.mxu0 %v1140
        %1233 = vmatprep.subr.mxu0 %v1137
        %1234 = vmatpush1.msra.mxu0 %v1136
        %1235 = vmatprep.subr.mxu0 %v1133
        %1236 = vmatpush1.msra.mxu0 %v1132
        %1237 = vmatprep.subr.mxu0 %v1129
        %1238 = vmatpush1.msra.mxu0 %v1128
        %1239 = vmatprep.subr.mxu0 %v1125
        %1240 = vmatpush1.msra.mxu0 %v1124
        %1241 = vmatprep.subr.mxu0 %v1121
        %1242 = vmatpush1.msra.mxu0 %v1120
        %1243 = vmatprep.subr.mxu0 %v1117
        %1244 = vmatpush1.msra.mxu0 %v1116
        %1245 = vmatprep.subr.mxu0 %v1113
        %1246 = vmatpush1.msra.mxu0 %v1112
        %1247 = vmatprep.subr.mxu0 %v1109
        %1248 = vmatpush1.msra.mxu0 %v1108
        %1249 = vmatprep.subr.mxu0 %v1105
        %1250 = vmatpush1.msra.mxu0 %v1104
        %1251 = vmatprep.subr.mxu0 %v1101
        %1252 = vmatpush1.msra.mxu0 %v1100
        %1253 = vmatprep.subr.mxu0 %v1097
        %1254 = vmatpush1.msra.mxu0 %v1096
        %1255 = vmatprep.subr.mxu0 %v1093
        %1256 = vmatpush1.msra.mxu0 %v1092
        %1257 = vmatprep.subr.mxu0 0.0
        %1258 = vmatpush2.msra.mxu0 0.0
        %1259 = vmatprep.subr.mxu0 0.0
        %1260 = vmatpush2.msra.mxu0 0.0
        %1261 = vmatprep.subr.mxu0 0.0
        %1262 = vmatpush2.msra.mxu0 0.0
        %1263 = vmatprep.subr.mxu0 0.0
        %1264 = vmatpush2.msra.mxu0 0.0
        %1265 = vmatprep.subr.mxu0 0.0
        %1266 = vmatpush2.msra.mxu0 0.0
        %1267 = vmatprep.subr.mxu0 0.0
        %1268 = vmatpush2.msra.mxu0 0.0
        %1269 = vmatprep.subr.mxu0 0.0
        %1270 = vmatpush2.msra.mxu0 0.0
        %1271 = vmatprep.subr.mxu0 0.0
        %1272 = vmatpush2.msra.mxu0 0.0
        %1273 = vmatprep.subr.mxu0 0.0
        %1274 = vmatpush2.msra.mxu0 0.0
        %1275 = vmatprep.subr.mxu0 0.0
        %1276 = vmatpush2.msra.mxu0 0.0
        %1277 = vmatprep.subr.mxu0 0.0
        %1278 = vmatpush2.msra.mxu0 0.0
        %1279 = vmatprep.subr.mxu0 0.0
        %1280 = vmatpush2.msra.mxu0 0.0
        %1281 = vmatprep.subr.mxu0 0.0
        %1282 = vmatpush2.msra.mxu0 0.0
        %1283 = vmatprep.subr.mxu0 0.0
        %1284 = vmatpush2.msra.mxu0 0.0
        %1285 = vmatprep.subr.mxu0 0.0
        %1286 = vmatpush2.msra.mxu0 0.0
        %1287 = vmatprep.subr.mxu0 0.0
        %1288 = vmatpush2.msra.mxu0 0.0
        %1289 = vmatprep.mubr.f32.mxu0 0.0
        %1290 = vmatmul.mubr.f32.gmra.mxu0 %v1084
        %v1291 = vpop.f32.mrf.mxu0
        %v1292 = vadd.f32 0.0, %v1291
        %v1293 = vpop.f32.mrf.mxu0
        %v1294 = vadd.f32 0.0, %v1293
        %1295 = vdwg.mxu0
        %v1296 = vadd.f32 %v1086, %v1221
        %v1297 = vadd.f32 %v1087, %v1223
        %v1298 = vadd.f32 %v1088, %v1292
        %v1299 = vadd.f32 %v1089, %v1294
        %v1300 = vxor.u32 %v1296, 2147483648
        %v1301 = vmul.f32 %v1300, 1.442695
        %v1302 = vpow.pop %v1301
        %v1303 = vadd.f32 %v1302, 1.0
        %v1304 = vrcp.pop %v1303
        %v1305 = vmul.f32 1.0, %v1304
        %v1306 = vxor.u32 %v1297, 2147483648
        %v1307 = vmul.f32 %v1306, 1.442695
        %v1308 = vpow.pop %v1307
        %v1309 = vadd.f32 %v1308, 1.0
        %v1310 = vrcp.pop %v1309
        %v1311 = vmul.f32 1.0, %v1310
        %v1312 = vtanh.pop %v1298
        %v1313 = vxor.u32 %v1299, 2147483648
        %v1314 = vmul.f32 %v1313, 1.442695
        %v1315 = vpow.pop %v1314
        %v1316 = vadd.f32 %v1315, 1.0
        %v1317 = vrcp.pop %v1316
        %v1318 = vmul.f32 1.0, %v1317
        %v1319 = vmul.f32 %v1311, %v1085
        %v1320 = vmul.f32 %v1305, %v1312
        %v1321 = vadd.f32 %v1319, %v1320
        %v1322 = vtanh.pop %v1321
        %v1323 = vmul.f32 %v1318, %v1322
        %1324 = vst [vmem:[#allocation4] sm:$0xff] %v1323
        %1325 = vst [vmem:[#allocation5] sm:$0xff] %v1321
        %1326 = vst [vmem:[#allocation2] sm:$0xff] %v1323
        %v1327 = vld [vmem:[#allocation4] sm:$0xff]
        %v1328 = vld [vmem:[#allocation5] sm:$0xff]
        %s1329 = scalar_lea.vmem [#allocation3], 32
        %v1330 = vld [vmem:[%s1329] sm:$0xff]
        %v1331 = vld [vmem:[%s1329 + $0x8] sm:$0xff]
        %v1332 = vld [vmem:[%s1329 + $0x10] sm:$0xff]
        %v1333 = vld [vmem:[%s1329 + $0x18] sm:$0xff]
        %v1334 = vld [vmem:[%s313] sm:$0xff]
        %v1335 = vld [vmem:[%s313 + $0x8] sm:$0xff]
        %v1336 = vld [vmem:[%s313 + $0x10] sm:$0xff]
        %v1337 = vld [vmem:[%s313 + $0x18] sm:$0xff]
        %v1338 = vld [vmem:[%s313 + $0x20] sm:$0xff]
        %v1339 = vld [vmem:[%s313 + $0x28] sm:$0xff]
        %v1340 = vld [vmem:[%s313 + $0x30] sm:$0xff]
        %v1341 = vld [vmem:[%s313 + $0x38] sm:$0xff]
        %v1342 = vld [vmem:[%s313 + $0x40] sm:$0xff]
        %v1343 = vld [vmem:[%s313 + $0x48] sm:$0xff]
        %v1344 = vld [vmem:[%s313 + $0x50] sm:$0xff]
        %v1345 = vld [vmem:[%s313 + $0x58] sm:$0xff]
        %v1346 = vld [vmem:[%s313 + $0x60] sm:$0xff]
        %v1347 = vld [vmem:[%s313 + $0x68] sm:$0xff]
        %v1348 = vld [vmem:[%s313 + $0x70] sm:$0xff]
        %v1349 = vld [vmem:[%s313 + $0x78] sm:$0xff]
        %v1350 = vld [vmem:[%s313 + $0x80] sm:$0xff]
        %v1351 = vld [vmem:[%s313 + $0x88] sm:$0xff]
        %v1352 = vld [vmem:[%s313 + $0x90] sm:$0xff]
        %v1353 = vld [vmem:[%s313 + $0x98] sm:$0xff]
        %v1354 = vld [vmem:[%s313 + $0xa0] sm:$0xff]
        %v1355 = vld [vmem:[%s313 + $0xa8] sm:$0xff]
        %v1356 = vld [vmem:[%s313 + $0xb0] sm:$0xff]
        %v1357 = vld [vmem:[%s313 + $0xb8] sm:$0xff]
        %v1358 = vld [vmem:[%s313 + $0xc0] sm:$0xff]
        %v1359 = vld [vmem:[%s313 + $0xc8] sm:$0xff]
        %v1360 = vld [vmem:[%s313 + $0xd0] sm:$0xff]
        %v1361 = vld [vmem:[%s313 + $0xd8] sm:$0xff]
        %v1362 = vld [vmem:[%s313 + $0xe0] sm:$0xff]
        %v1363 = vld [vmem:[%s313 + $0xe8] sm:$0xff]
        %v1364 = vld [vmem:[%s313 + $0xf0] sm:$0xff]
        %v1365 = vld [vmem:[%s313 + $0xf8] sm:$0xff]
        %v1366 = vld [vmem:[%s313 + $0x100] sm:$0xff]
        %v1367 = vld [vmem:[%s313 + $0x108] sm:$0xff]
        %v1368 = vld [vmem:[%s313 + $0x110] sm:$0xff]
        %v1369 = vld [vmem:[%s313 + $0x118] sm:$0xff]
        %v1370 = vld [vmem:[%s313 + $0x120] sm:$0xff]
        %v1371 = vld [vmem:[%s313 + $0x128] sm:$0xff]
        %v1372 = vld [vmem:[%s313 + $0x130] sm:$0xff]
        %v1373 = vld [vmem:[%s313 + $0x138] sm:$0xff]
        %v1374 = vld [vmem:[%s313 + $0x140] sm:$0xff]
        %v1375 = vld [vmem:[%s313 + $0x148] sm:$0xff]
        %v1376 = vld [vmem:[%s313 + $0x150] sm:$0xff]
        %v1377 = vld [vmem:[%s313 + $0x158] sm:$0xff]
        %v1378 = vld [vmem:[%s313 + $0x160] sm:$0xff]
        %v1379 = vld [vmem:[%s313 + $0x168] sm:$0xff]
        %v1380 = vld [vmem:[%s313 + $0x170] sm:$0xff]
        %v1381 = vld [vmem:[%s313 + $0x178] sm:$0xff]
        %v1382 = vld [vmem:[%s313 + $0x180] sm:$0xff]
        %v1383 = vld [vmem:[%s313 + $0x188] sm:$0xff]
        %v1384 = vld [vmem:[%s313 + $0x190] sm:$0xff]
        %v1385 = vld [vmem:[%s313 + $0x198] sm:$0xff]
        %v1386 = vld [vmem:[%s313 + $0x1a0] sm:$0xff]
        %v1387 = vld [vmem:[%s313 + $0x1a8] sm:$0xff]
        %v1388 = vld [vmem:[%s313 + $0x1b0] sm:$0xff]
        %v1389 = vld [vmem:[%s313 + $0x1b8] sm:$0xff]
        %v1390 = vld [vmem:[%s313 + $0x1c0] sm:$0xff]
        %v1391 = vld [vmem:[%s313 + $0x1c8] sm:$0xff]
        %v1392 = vld [vmem:[%s313 + $0x1d0] sm:$0xff]
        %v1393 = vld [vmem:[%s313 + $0x1d8] sm:$0xff]
        %v1394 = vld [vmem:[%s313 + $0x1e0] sm:$0xff]
        %v1395 = vld [vmem:[%s313 + $0x1e8] sm:$0xff]
        %v1396 = vld [vmem:[%s313 + $0x1f0] sm:$0xff]
        %v1397 = vld [vmem:[%s313 + $0x1f8] sm:$0xff]
        %1398 = vmatprep.subr.mxu0 %v1395
        %1399 = vmatpush1.msra.mxu0 %v1394
        %1400 = vmatprep.subr.mxu0 %v1391
        %1401 = vmatpush1.msra.mxu0 %v1390
        %1402 = vmatprep.subr.mxu0 %v1387
        %1403 = vmatpush1.msra.mxu0 %v1386
        %1404 = vmatprep.subr.mxu0 %v1383
        %1405 = vmatpush1.msra.mxu0 %v1382
        %1406 = vmatprep.subr.mxu0 %v1379
        %1407 = vmatpush1.msra.mxu0 %v1378
        %1408 = vmatprep.subr.mxu0 %v1375
        %1409 = vmatpush1.msra.mxu0 %v1374
        %1410 = vmatprep.subr.mxu0 %v1371
        %1411 = vmatpush1.msra.mxu0 %v1370
        %1412 = vmatprep.subr.mxu0 %v1367
        %1413 = vmatpush1.msra.mxu0 %v1366
        %1414 = vmatprep.subr.mxu0 %v1363
        %1415 = vmatpush1.msra.mxu0 %v1362
        %1416 = vmatprep.subr.mxu0 %v1359
        %1417 = vmatpush1.msra.mxu0 %v1358
        %1418 = vmatprep.subr.mxu0 %v1355
        %1419 = vmatpush1.msra.mxu0 %v1354
        %1420 = vmatprep.subr.mxu0 %v1351
        %1421 = vmatpush1.msra.mxu0 %v1350
        %1422 = vmatprep.subr.mxu0 %v1347
        %1423 = vmatpush1.msra.mxu0 %v1346
        %1424 = vmatprep.subr.mxu0 %v1343
        %1425 = vmatpush1.msra.mxu0 %v1342
        %1426 = vmatprep.subr.mxu0 %v1339
        %1427 = vmatpush1.msra.mxu0 %v1338
        %1428 = vmatprep.subr.mxu0 %v1335
        %1429 = vmatpush1.msra.mxu0 %v1334
        %1430 = vmatprep.subr.mxu0 0.0
        %1431 = vmatpush2.msra.mxu0 0.0
        %1432 = vmatprep.subr.mxu0 0.0
        %1433 = vmatpush2.msra.mxu0 0.0
        %1434 = vmatprep.subr.mxu0 0.0
        %1435 = vmatpush2.msra.mxu0 0.0
        %1436 = vmatprep.subr.mxu0 0.0
        %1437 = vmatpush2.msra.mxu0 0.0
        %1438 = vmatprep.subr.mxu0 0.0
        %1439 = vmatpush2.msra.mxu0 0.0
        %1440 = vmatprep.subr.mxu0 0.0
        %1441 = vmatpush2.msra.mxu0 0.0
        %1442 = vmatprep.subr.mxu0 0.0
        %1443 = vmatpush2.msra.mxu0 0.0
        %1444 = vmatprep.subr.mxu0 0.0
        %1445 = vmatpush2.msra.mxu0 0.0
        %1446 = vmatprep.subr.mxu0 0.0
        %1447 = vmatpush2.msra.mxu0 0.0
        %1448 = vmatprep.subr.mxu0 0.0
        %1449 = vmatpush2.msra.mxu0 0.0
        %1450 = vmatprep.subr.mxu0 0.0
        %1451 = vmatpush2.msra.mxu0 0.0
        %1452 = vmatprep.subr.mxu0 0.0
        %1453 = vmatpush2.msra.mxu0 0.0
        %1454 = vmatprep.subr.mxu0 0.0
        %1455 = vmatpush2.msra.mxu0 0.0
        %1456 = vmatprep.subr.mxu0 0.0
        %1457 = vmatpush2.msra.mxu0 0.0
        %1458 = vmatprep.subr.mxu0 0.0
        %1459 = vmatpush2.msra.mxu0 0.0
        %1460 = vmatprep.subr.mxu0 0.0
        %1461 = vmatpush2.msra.mxu0 0.0
        %1462 = vmatprep.mubr.f32.mxu0 0.0
        %1463 = vmatmul.mubr.f32.gmra.mxu0 %v1327
        %v1464 = vpop.f32.mrf.mxu0
        %v1465 = vadd.f32 0.0, %v1464
        %v1466 = vpop.f32.mrf.mxu0
        %v1467 = vadd.f32 0.0, %v1466
        %1468 = vdwg.mxu0
        %1469 = vmatprep.subr.mxu0 %v1397
        %1470 = vmatpush1.msra.mxu0 %v1396
        %1471 = vmatprep.subr.mxu0 %v1393
        %1472 = vmatpush1.msra.mxu0 %v1392
        %1473 = vmatprep.subr.mxu0 %v1389
        %1474 = vmatpush1.msra.mxu0 %v1388
        %1475 = vmatprep.subr.mxu0 %v1385
        %1476 = vmatpush1.msra.mxu0 %v1384
        %1477 = vmatprep.subr.mxu0 %v1381
        %1478 = vmatpush1.msra.mxu0 %v1380
        %1479 = vmatprep.subr.mxu0 %v1377
        %1480 = vmatpush1.msra.mxu0 %v1376
        %1481 = vmatprep.subr.mxu0 %v1373
        %1482 = vmatpush1.msra.mxu0 %v1372
        %1483 = vmatprep.subr.mxu0 %v1369
        %1484 = vmatpush1.msra.mxu0 %v1368
        %1485 = vmatprep.subr.mxu0 %v1365
        %1486 = vmatpush1.msra.mxu0 %v1364
        %1487 = vmatprep.subr.mxu0 %v1361
        %1488 = vmatpush1.msra.mxu0 %v1360
        %1489 = vmatprep.subr.mxu0 %v1357
        %1490 = vmatpush1.msra.mxu0 %v1356
        %1491 = vmatprep.subr.mxu0 %v1353
        %1492 = vmatpush1.msra.mxu0 %v1352
        %1493 = vmatprep.subr.mxu0 %v1349
        %1494 = vmatpush1.msra.mxu0 %v1348
        %1495 = vmatprep.subr.mxu0 %v1345
        %1496 = vmatpush1.msra.mxu0 %v1344
        %1497 = vmatprep.subr.mxu0 %v1341
        %1498 = vmatpush1.msra.mxu0 %v1340
        %1499 = vmatprep.subr.mxu0 %v1337
        %1500 = vmatpush1.msra.mxu0 %v1336
        %1501 = vmatprep.subr.mxu0 0.0
        %1502 = vmatpush2.msra.mxu0 0.0
        %1503 = vmatprep.subr.mxu0 0.0
        %1504 = vmatpush2.msra.mxu0 0.0
        %1505 = vmatprep.subr.mxu0 0.0
        %1506 = vmatpush2.msra.mxu0 0.0
        %1507 = vmatprep.subr.mxu0 0.0
        %1508 = vmatpush2.msra.mxu0 0.0
        %1509 = vmatprep.subr.mxu0 0.0
        %1510 = vmatpush2.msra.mxu0 0.0
        %1511 = vmatprep.subr.mxu0 0.0
        %1512 = vmatpush2.msra.mxu0 0.0
        %1513 = vmatprep.subr.mxu0 0.0
        %1514 = vmatpush2.msra.mxu0 0.0
        %1515 = vmatprep.subr.mxu0 0.0
        %1516 = vmatpush2.msra.mxu0 0.0
        %1517 = vmatprep.subr.mxu0 0.0
        %1518 = vmatpush2.msra.mxu0 0.0
        %1519 = vmatprep.subr.mxu0 0.0
        %1520 = vmatpush2.msra.mxu0 0.0
        %1521 = vmatprep.subr.mxu0 0.0
        %1522 = vmatpush2.msra.mxu0 0.0
        %1523 = vmatprep.subr.mxu0 0.0
        %1524 = vmatpush2.msra.mxu0 0.0
        %1525 = vmatprep.subr.mxu0 0.0
        %1526 = vmatpush2.msra.mxu0 0.0
        %1527 = vmatprep.subr.mxu0 0.0
        %1528 = vmatpush2.msra.mxu0 0.0
        %1529 = vmatprep.subr.mxu0 0.0
        %1530 = vmatpush2.msra.mxu0 0.0
        %1531 = vmatprep.subr.mxu0 0.0
        %1532 = vmatpush2.msra.mxu0 0.0
        %1533 = vmatprep.mubr.f32.mxu0 0.0
        %1534 = vmatmul.mubr.f32.gmra.mxu0 %v1327
        %v1535 = vpop.f32.mrf.mxu0
        %v1536 = vadd.f32 0.0, %v1535
        %v1537 = vpop.f32.mrf.mxu0
        %v1538 = vadd.f32 0.0, %v1537
        %1539 = vdwg.mxu0
        %v1540 = vadd.f32 %v1330, %v1465
        %v1541 = vadd.f32 %v1331, %v1467
        %v1542 = vadd.f32 %v1332, %v1536
        %v1543 = vadd.f32 %v1333, %v1538
        %v1544 = vxor.u32 %v1540, 2147483648
        %v1545 = vmul.f32 %v1544, 1.442695
        %v1546 = vpow.pop %v1545
        %v1547 = vadd.f32 %v1546, 1.0
        %v1548 = vrcp.pop %v1547
        %v1549 = vmul.f32 1.0, %v1548
        %v1550 = vxor.u32 %v1541, 2147483648
        %v1551 = vmul.f32 %v1550, 1.442695
        %v1552 = vpow.pop %v1551
        %v1553 = vadd.f32 %v1552, 1.0
        %v1554 = vrcp.pop %v1553
        %v1555 = vmul.f32 1.0, %v1554
        %v1556 = vtanh.pop %v1542
        %v1557 = vxor.u32 %v1543, 2147483648
        %v1558 = vmul.f32 %v1557, 1.442695
        %v1559 = vpow.pop %v1558
        %v1560 = vadd.f32 %v1559, 1.0
        %v1561 = vrcp.pop %v1560
        %v1562 = vmul.f32 1.0, %v1561
        %v1563 = vmul.f32 %v1555, %v1328
        %v1564 = vmul.f32 %v1549, %v1556
        %v1565 = vadd.f32 %v1563, %v1564
        %v1566 = vtanh.pop %v1565
        %v1567 = vmul.f32 %v1562, %v1566
        %1568 = vst [vmem:[#allocation4] sm:$0xff] %v1567
        %1569 = vst [vmem:[#allocation5] sm:$0xff] %v1565
        %s1570 = scalar_lea.vmem [#allocation2], 8
        %1571 = vst [vmem:[%s1570] sm:$0xff] %v1567
        %v1572 = vld [vmem:[#allocation4] sm:$0xff]
        %v1573 = vld [vmem:[#allocation5] sm:$0xff]
        %s1574 = scalar_lea.vmem [#allocation3], 64
        %v1575 = vld [vmem:[%s1574] sm:$0xff]
        %v1576 = vld [vmem:[%s1574 + $0x8] sm:$0xff]
        %v1577 = vld [vmem:[%s1574 + $0x10] sm:$0xff]
        %v1578 = vld [vmem:[%s1574 + $0x18] sm:$0xff]
        %v1579 = vld [vmem:[%s313] sm:$0xff]
        %v1580 = vld [vmem:[%s313 + $0x8] sm:$0xff]
        %v1581 = vld [vmem:[%s313 + $0x10] sm:$0xff]
        %v1582 = vld [vmem:[%s313 + $0x18] sm:$0xff]
        %v1583 = vld [vmem:[%s313 + $0x20] sm:$0xff]
        %v1584 = vld [vmem:[%s313 + $0x28] sm:$0xff]
        %v1585 = vld [vmem:[%s313 + $0x30] sm:$0xff]
        %v1586 = vld [vmem:[%s313 + $0x38] sm:$0xff]
        %v1587 = vld [vmem:[%s313 + $0x40] sm:$0xff]
        %v1588 = vld [vmem:[%s313 + $0x48] sm:$0xff]
        %v1589 = vld [vmem:[%s313 + $0x50] sm:$0xff]
        %v1590 = vld [vmem:[%s313 + $0x58] sm:$0xff]
        %v1591 = vld [vmem:[%s313 + $0x60] sm:$0xff]
        %v1592 = vld [vmem:[%s313 + $0x68] sm:$0xff]
        %v1593 = vld [vmem:[%s313 + $0x70] sm:$0xff]
        %v1594 = vld [vmem:[%s313 + $0x78] sm:$0xff]
        %v1595 = vld [vmem:[%s313 + $0x80] sm:$0xff]
        %v1596 = vld [vmem:[%s313 + $0x88] sm:$0xff]
        %v1597 = vld [vmem:[%s313 + $0x90] sm:$0xff]
        %v1598 = vld [vmem:[%s313 + $0x98] sm:$0xff]
        %v1599 = vld [vmem:[%s313 + $0xa0] sm:$0xff]
        %v1600 = vld [vmem:[%s313 + $0xa8] sm:$0xff]
        %v1601 = vld [vmem:[%s313 + $0xb0] sm:$0xff]
        %v1602 = vld [vmem:[%s313 + $0xb8] sm:$0xff]
        %v1603 = vld [vmem:[%s313 + $0xc0] sm:$0xff]
        %v1604 = vld [vmem:[%s313 + $0xc8] sm:$0xff]
        %v1605 = vld [vmem:[%s313 + $0xd0] sm:$0xff]
        %v1606 = vld [vmem:[%s313 + $0xd8] sm:$0xff]
        %v1607 = vld [vmem:[%s313 + $0xe0] sm:$0xff]
        %v1608 = vld [vmem:[%s313 + $0xe8] sm:$0xff]
        %v1609 = vld [vmem:[%s313 + $0xf0] sm:$0xff]
        %v1610 = vld [vmem:[%s313 + $0xf8] sm:$0xff]
        %v1611 = vld [vmem:[%s313 + $0x100] sm:$0xff]
        %v1612 = vld [vmem:[%s313 + $0x108] sm:$0xff]
        %v1613 = vld [vmem:[%s313 + $0x110] sm:$0xff]
        %v1614 = vld [vmem:[%s313 + $0x118] sm:$0xff]
        %v1615 = vld [vmem:[%s313 + $0x120] sm:$0xff]
        %v1616 = vld [vmem:[%s313 + $0x128] sm:$0xff]
        %v1617 = vld [vmem:[%s313 + $0x130] sm:$0xff]
        %v1618 = vld [vmem:[%s313 + $0x138] sm:$0xff]
        %v1619 = vld [vmem:[%s313 + $0x140] sm:$0xff]
        %v1620 = vld [vmem:[%s313 + $0x148] sm:$0xff]
        %v1621 = vld [vmem:[%s313 + $0x150] sm:$0xff]
        %v1622 = vld [vmem:[%s313 + $0x158] sm:$0xff]
        %v1623 = vld [vmem:[%s313 + $0x160] sm:$0xff]
        %v1624 = vld [vmem:[%s313 + $0x168] sm:$0xff]
        %v1625 = vld [vmem:[%s313 + $0x170] sm:$0xff]
        %v1626 = vld [vmem:[%s313 + $0x178] sm:$0xff]
        %v1627 = vld [vmem:[%s313 + $0x180] sm:$0xff]
        %v1628 = vld [vmem:[%s313 + $0x188] sm:$0xff]
        %v1629 = vld [vmem:[%s313 + $0x190] sm:$0xff]
        %v1630 = vld [vmem:[%s313 + $0x198] sm:$0xff]
        %v1631 = vld [vmem:[%s313 + $0x1a0] sm:$0xff]
        %v1632 = vld [vmem:[%s313 + $0x1a8] sm:$0xff]
        %v1633 = vld [vmem:[%s313 + $0x1b0] sm:$0xff]
        %v1634 = vld [vmem:[%s313 + $0x1b8] sm:$0xff]
        %v1635 = vld [vmem:[%s313 + $0x1c0] sm:$0xff]
        %v1636 = vld [vmem:[%s313 + $0x1c8] sm:$0xff]
        %v1637 = vld [vmem:[%s313 + $0x1d0] sm:$0xff]
        %v1638 = vld [vmem:[%s313 + $0x1d8] sm:$0xff]
        %v1639 = vld [vmem:[%s313 + $0x1e0] sm:$0xff]
        %v1640 = vld [vmem:[%s313 + $0x1e8] sm:$0xff]
        %v1641 = vld [vmem:[%s313 + $0x1f0] sm:$0xff]
        %v1642 = vld [vmem:[%s313 + $0x1f8] sm:$0xff]
        %1643 = vmatprep.subr.mxu0 %v1640
        %1644 = vmatpush1.msra.mxu0 %v1639
        %1645 = vmatprep.subr.mxu0 %v1636
        %1646 = vmatpush1.msra.mxu0 %v1635
        %1647 = vmatprep.subr.mxu0 %v1632
        %1648 = vmatpush1.msra.mxu0 %v1631
        %1649 = vmatprep.subr.mxu0 %v1628
        %1650 = vmatpush1.msra.mxu0 %v1627
        %1651 = vmatprep.subr.mxu0 %v1624
        %1652 = vmatpush1.msra.mxu0 %v1623
        %1653 = vmatprep.subr.mxu0 %v1620
        %1654 = vmatpush1.msra.mxu0 %v1619
        %1655 = vmatprep.subr.mxu0 %v1616
        %1656 = vmatpush1.msra.mxu0 %v1615
        %1657 = vmatprep.subr.mxu0 %v1612
        %1658 = vmatpush1.msra.mxu0 %v1611
        %1659 = vmatprep.subr.mxu0 %v1608
        %1660 = vmatpush1.msra.mxu0 %v1607
        %1661 = vmatprep.subr.mxu0 %v1604
        %1662 = vmatpush1.msra.mxu0 %v1603
        %1663 = vmatprep.subr.mxu0 %v1600
        %1664 = vmatpush1.msra.mxu0 %v1599
        %1665 = vmatprep.subr.mxu0 %v1596
        %1666 = vmatpush1.msra.mxu0 %v1595
        %1667 = vmatprep.subr.mxu0 %v1592
        %1668 = vmatpush1.msra.mxu0 %v1591
        %1669 = vmatprep.subr.mxu0 %v1588
        %1670 = vmatpush1.msra.mxu0 %v1587
        %1671 = vmatprep.subr.mxu0 %v1584
        %1672 = vmatpush1.msra.mxu0 %v1583
        %1673 = vmatprep.subr.mxu0 %v1580
        %1674 = vmatpush1.msra.mxu0 %v1579
        %1675 = vmatprep.subr.mxu0 0.0
        %1676 = vmatpush2.msra.mxu0 0.0
        %1677 = vmatprep.subr.mxu0 0.0
        %1678 = vmatpush2.msra.mxu0 0.0
        %1679 = vmatprep.subr.mxu0 0.0
        %1680 = vmatpush2.msra.mxu0 0.0
        %1681 = vmatprep.subr.mxu0 0.0
        %1682 = vmatpush2.msra.mxu0 0.0
        %1683 = vmatprep.subr.mxu0 0.0
        %1684 = vmatpush2.msra.mxu0 0.0
        %1685 = vmatprep.subr.mxu0 0.0
        %1686 = vmatpush2.msra.mxu0 0.0
        %1687 = vmatprep.subr.mxu0 0.0
        %1688 = vmatpush2.msra.mxu0 0.0
        %1689 = vmatprep.subr.mxu0 0.0
        %1690 = vmatpush2.msra.mxu0 0.0
        %1691 = vmatprep.subr.mxu0 0.0
        %1692 = vmatpush2.msra.mxu0 0.0
        %1693 = vmatprep.subr.mxu0 0.0
        %1694 = vmatpush2.msra.mxu0 0.0
        %1695 = vmatprep.subr.mxu0 0.0
        %1696 = vmatpush2.msra.mxu0 0.0
        %1697 = vmatprep.subr.mxu0 0.0
        %1698 = vmatpush2.msra.mxu0 0.0
        %1699 = vmatprep.subr.mxu0 0.0
        %1700 = vmatpush2.msra.mxu0 0.0
        %1701 = vmatprep.subr.mxu0 0.0
        %1702 = vmatpush2.msra.mxu0 0.0
        %1703 = vmatprep.subr.mxu0 0.0
        %1704 = vmatpush2.msra.mxu0 0.0
        %1705 = vmatprep.subr.mxu0 0.0
        %1706 = vmatpush2.msra.mxu0 0.0
        %1707 = vmatprep.mubr.f32.mxu0 0.0
        %1708 = vmatmul.mubr.f32.gmra.mxu0 %v1572
        %v1709 = vpop.f32.mrf.mxu0
        %v1710 = vadd.f32 0.0, %v1709
        %v1711 = vpop.f32.mrf.mxu0
        %v1712 = vadd.f32 0.0, %v1711
        %1713 = vdwg.mxu0
        %1714 = vmatprep.subr.mxu0 %v1642
        %1715 = vmatpush1.msra.mxu0 %v1641
        %1716 = vmatprep.subr.mxu0 %v1638
        %1717 = vmatpush1.msra.mxu0 %v1637
        %1718 = vmatprep.subr.mxu0 %v1634
        %1719 = vmatpush1.msra.mxu0 %v1633
        %1720 = vmatprep.subr.mxu0 %v1630
        %1721 = vmatpush1.msra.mxu0 %v1629
        %1722 = vmatprep.subr.mxu0 %v1626
        %1723 = vmatpush1.msra.mxu0 %v1625
        %1724 = vmatprep.subr.mxu0 %v1622
        %1725 = vmatpush1.msra.mxu0 %v1621
        %1726 = vmatprep.subr.mxu0 %v1618
        %1727 = vmatpush1.msra.mxu0 %v1617
        %1728 = vmatprep.subr.mxu0 %v1614
        %1729 = vmatpush1.msra.mxu0 %v1613
        %1730 = vmatprep.subr.mxu0 %v1610
        %1731 = vmatpush1.msra.mxu0 %v1609
        %1732 = vmatprep.subr.mxu0 %v1606
        %1733 = vmatpush1.msra.mxu0 %v1605
        %1734 = vmatprep.subr.mxu0 %v1602
        %1735 = vmatpush1.msra.mxu0 %v1601
        %1736 = vmatprep.subr.mxu0 %v1598
        %1737 = vmatpush1.msra.mxu0 %v1597
        %1738 = vmatprep.subr.mxu0 %v1594
        %1739 = vmatpush1.msra.mxu0 %v1593
        %1740 = vmatprep.subr.mxu0 %v1590
        %1741 = vmatpush1.msra.mxu0 %v1589
        %1742 = vmatprep.subr.mxu0 %v1586
        %1743 = vmatpush1.msra.mxu0 %v1585
        %1744 = vmatprep.subr.mxu0 %v1582
        %1745 = vmatpush1.msra.mxu0 %v1581
        %1746 = vmatprep.subr.mxu0 0.0
        %1747 = vmatpush2.msra.mxu0 0.0
        %1748 = vmatprep.subr.mxu0 0.0
        %1749 = vmatpush2.msra.mxu0 0.0
        %1750 = vmatprep.subr.mxu0 0.0
        %1751 = vmatpush2.msra.mxu0 0.0
        %1752 = vmatprep.subr.mxu0 0.0
        %1753 = vmatpush2.msra.mxu0 0.0
        %1754 = vmatprep.subr.mxu0 0.0
        %1755 = vmatpush2.msra.mxu0 0.0
        %1756 = vmatprep.subr.mxu0 0.0
        %1757 = vmatpush2.msra.mxu0 0.0
        %1758 = vmatprep.subr.mxu0 0.0
        %1759 = vmatpush2.msra.mxu0 0.0
        %1760 = vmatprep.subr.mxu0 0.0
        %1761 = vmatpush2.msra.mxu0 0.0
        %1762 = vmatprep.subr.mxu0 0.0
        %1763 = vmatpush2.msra.mxu0 0.0
        %1764 = vmatprep.subr.mxu0 0.0
        %1765 = vmatpush2.msra.mxu0 0.0
        %1766 = vmatprep.subr.mxu0 0.0
        %1767 = vmatpush2.msra.mxu0 0.0
        %1768 = vmatprep.subr.mxu0 0.0
        %1769 = vmatpush2.msra.mxu0 0.0
        %1770 = vmatprep.subr.mxu0 0.0
        %1771 = vmatpush2.msra.mxu0 0.0
        %1772 = vmatprep.subr.mxu0 0.0
        %1773 = vmatpush2.msra.mxu0 0.0
        %1774 = vmatprep.subr.mxu0 0.0
        %1775 = vmatpush2.msra.mxu0 0.0
        %1776 = vmatprep.subr.mxu0 0.0
        %1777 = vmatpush2.msra.mxu0 0.0
        %1778 = vmatprep.mubr.f32.mxu0 0.0
        %1779 = vmatmul.mubr.f32.gmra.mxu0 %v1572
        %v1780 = vpop.f32.mrf.mxu0
        %v1781 = vadd.f32 0.0, %v1780
        %v1782 = vpop.f32.mrf.mxu0
        %v1783 = vadd.f32 0.0, %v1782
        %1784 = vdwg.mxu0
        %v1785 = vadd.f32 %v1575, %v1710
        %v1786 = vadd.f32 %v1576, %v1712
        %v1787 = vadd.f32 %v1577, %v1781
        %v1788 = vadd.f32 %v1578, %v1783
        %v1789 = vxor.u32 %v1785, 2147483648
        %v1790 = vmul.f32 %v1789, 1.442695
        %v1791 = vpow.pop %v1790
        %v1792 = vadd.f32 %v1791, 1.0
        %v1793 = vrcp.pop %v1792
        %v1794 = vmul.f32 1.0, %v1793
        %v1795 = vxor.u32 %v1786, 2147483648
        %v1796 = vmul.f32 %v1795, 1.442695
        %v1797 = vpow.pop %v1796
        %v1798 = vadd.f32 %v1797, 1.0
        %v1799 = vrcp.pop %v1798
        %v1800 = vmul.f32 1.0, %v1799
        %v1801 = vtanh.pop %v1787
        %v1802 = vxor.u32 %v1788, 2147483648
        %v1803 = vmul.f32 %v1802, 1.442695
        %v1804 = vpow.pop %v1803
        %v1805 = vadd.f32 %v1804, 1.0
        %v1806 = vrcp.pop %v1805
        %v1807 = vmul.f32 1.0, %v1806
        %v1808 = vmul.f32 %v1800, %v1573
        %v1809 = vmul.f32 %v1794, %v1801
        %v1810 = vadd.f32 %v1808, %v1809
        %v1811 = vtanh.pop %v1810
        %v1812 = vmul.f32 %v1807, %v1811
        %1813 = vst [vmem:[#allocation4] sm:$0xff] %v1812
        %1814 = vst [vmem:[#allocation5] sm:$0xff] %v1810
        %s1815 = scalar_lea.vmem [#allocation2], 16
        %1816 = vst [vmem:[%s1815] sm:$0xff] %v1812
        %v1817 = vld [vmem:[#allocation4] sm:$0xff]
        %v1818 = vld [vmem:[#allocation5] sm:$0xff]
        %s1819 = scalar_lea.vmem [#allocation3], 96
        %v1820 = vld [vmem:[%s1819] sm:$0xff]
        %v1821 = vld [vmem:[%s1819 + $0x8] sm:$0xff]
        %v1822 = vld [vmem:[%s1819 + $0x10] sm:$0xff]
        %v1823 = vld [vmem:[%s1819 + $0x18] sm:$0xff]
        %v1824 = vld [vmem:[%s313] sm:$0xff]
        %v1825 = vld [vmem:[%s313 + $0x8] sm:$0xff]
        %v1826 = vld [vmem:[%s313 + $0x10] sm:$0xff]
        %v1827 = vld [vmem:[%s313 + $0x18] sm:$0xff]
        %v1828 = vld [vmem:[%s313 + $0x20] sm:$0xff]
        %v1829 = vld [vmem:[%s313 + $0x28] sm:$0xff]
        %v1830 = vld [vmem:[%s313 + $0x30] sm:$0xff]
        %v1831 = vld [vmem:[%s313 + $0x38] sm:$0xff]
        %v1832 = vld [vmem:[%s313 + $0x40] sm:$0xff]
        %v1833 = vld [vmem:[%s313 + $0x48] sm:$0xff]
        %v1834 = vld [vmem:[%s313 + $0x50] sm:$0xff]
        %v1835 = vld [vmem:[%s313 + $0x58] sm:$0xff]
        %v1836 = vld [vmem:[%s313 + $0x60] sm:$0xff]
        %v1837 = vld [vmem:[%s313 + $0x68] sm:$0xff]
        %v1838 = vld [vmem:[%s313 + $0x70] sm:$0xff]
        %v1839 = vld [vmem:[%s313 + $0x78] sm:$0xff]
        %v1840 = vld [vmem:[%s313 + $0x80] sm:$0xff]
        %v1841 = vld [vmem:[%s313 + $0x88] sm:$0xff]
        %v1842 = vld [vmem:[%s313 + $0x90] sm:$0xff]
        %v1843 = vld [vmem:[%s313 + $0x98] sm:$0xff]
        %v1844 = vld [vmem:[%s313 + $0xa0] sm:$0xff]
        %v1845 = vld [vmem:[%s313 + $0xa8] sm:$0xff]
        %v1846 = vld [vmem:[%s313 + $0xb0] sm:$0xff]
        %v1847 = vld [vmem:[%s313 + $0xb8] sm:$0xff]
        %v1848 = vld [vmem:[%s313 + $0xc0] sm:$0xff]
        %v1849 = vld [vmem:[%s313 + $0xc8] sm:$0xff]
        %v1850 = vld [vmem:[%s313 + $0xd0] sm:$0xff]
        %v1851 = vld [vmem:[%s313 + $0xd8] sm:$0xff]
        %v1852 = vld [vmem:[%s313 + $0xe0] sm:$0xff]
        %v1853 = vld [vmem:[%s313 + $0xe8] sm:$0xff]
        %v1854 = vld [vmem:[%s313 + $0xf0] sm:$0xff]
        %v1855 = vld [vmem:[%s313 + $0xf8] sm:$0xff]
        %v1856 = vld [vmem:[%s313 + $0x100] sm:$0xff]
        %v1857 = vld [vmem:[%s313 + $0x108] sm:$0xff]
        %v1858 = vld [vmem:[%s313 + $0x110] sm:$0xff]
        %v1859 = vld [vmem:[%s313 + $0x118] sm:$0xff]
        %v1860 = vld [vmem:[%s313 + $0x120] sm:$0xff]
        %v1861 = vld [vmem:[%s313 + $0x128] sm:$0xff]
        %v1862 = vld [vmem:[%s313 + $0x130] sm:$0xff]
        %v1863 = vld [vmem:[%s313 + $0x138] sm:$0xff]
        %v1864 = vld [vmem:[%s313 + $0x140] sm:$0xff]
        %v1865 = vld [vmem:[%s313 + $0x148] sm:$0xff]
        %v1866 = vld [vmem:[%s313 + $0x150] sm:$0xff]
        %v1867 = vld [vmem:[%s313 + $0x158] sm:$0xff]
        %v1868 = vld [vmem:[%s313 + $0x160] sm:$0xff]
        %v1869 = vld [vmem:[%s313 + $0x168] sm:$0xff]
        %v1870 = vld [vmem:[%s313 + $0x170] sm:$0xff]
        %v1871 = vld [vmem:[%s313 + $0x178] sm:$0xff]
        %v1872 = vld [vmem:[%s313 + $0x180] sm:$0xff]
        %v1873 = vld [vmem:[%s313 + $0x188] sm:$0xff]
        %v1874 = vld [vmem:[%s313 + $0x190] sm:$0xff]
        %v1875 = vld [vmem:[%s313 + $0x198] sm:$0xff]
        %v1876 = vld [vmem:[%s313 + $0x1a0] sm:$0xff]
        %v1877 = vld [vmem:[%s313 + $0x1a8] sm:$0xff]
        %v1878 = vld [vmem:[%s313 + $0x1b0] sm:$0xff]
        %v1879 = vld [vmem:[%s313 + $0x1b8] sm:$0xff]
        %v1880 = vld [vmem:[%s313 + $0x1c0] sm:$0xff]
        %v1881 = vld [vmem:[%s313 + $0x1c8] sm:$0xff]
        %v1882 = vld [vmem:[%s313 + $0x1d0] sm:$0xff]
        %v1883 = vld [vmem:[%s313 + $0x1d8] sm:$0xff]
        %v1884 = vld [vmem:[%s313 + $0x1e0] sm:$0xff]
        %v1885 = vld [vmem:[%s313 + $0x1e8] sm:$0xff]
        %v1886 = vld [vmem:[%s313 + $0x1f0] sm:$0xff]
        %v1887 = vld [vmem:[%s313 + $0x1f8] sm:$0xff]
        %1888 = vmatprep.subr.mxu0 %v1885
        %1889 = vmatpush1.msra.mxu0 %v1884
        %1890 = vmatprep.subr.mxu0 %v1881
        %1891 = vmatpush1.msra.mxu0 %v1880
        %1892 = vmatprep.subr.mxu0 %v1877
        %1893 = vmatpush1.msra.mxu0 %v1876
        %1894 = vmatprep.subr.mxu0 %v1873
        %1895 = vmatpush1.msra.mxu0 %v1872
        %1896 = vmatprep.subr.mxu0 %v1869
        %1897 = vmatpush1.msra.mxu0 %v1868
        %1898 = vmatprep.subr.mxu0 %v1865
        %1899 = vmatpush1.msra.mxu0 %v1864
        %1900 = vmatprep.subr.mxu0 %v1861
        %1901 = vmatpush1.msra.mxu0 %v1860
        %1902 = vmatprep.subr.mxu0 %v1857
        %1903 = vmatpush1.msra.mxu0 %v1856
        %1904 = vmatprep.subr.mxu0 %v1853
        %1905 = vmatpush1.msra.mxu0 %v1852
        %1906 = vmatprep.subr.mxu0 %v1849
        %1907 = vmatpush1.msra.mxu0 %v1848
        %1908 = vmatprep.subr.mxu0 %v1845
        %1909 = vmatpush1.msra.mxu0 %v1844
        %1910 = vmatprep.subr.mxu0 %v1841
        %1911 = vmatpush1.msra.mxu0 %v1840
        %1912 = vmatprep.subr.mxu0 %v1837
        %1913 = vmatpush1.msra.mxu0 %v1836
        %1914 = vmatprep.subr.mxu0 %v1833
        %1915 = vmatpush1.msra.mxu0 %v1832
        %1916 = vmatprep.subr.mxu0 %v1829
        %1917 = vmatpush1.msra.mxu0 %v1828
        %1918 = vmatprep.subr.mxu0 %v1825
        %1919 = vmatpush1.msra.mxu0 %v1824
        %1920 = vmatprep.subr.mxu0 0.0
        %1921 = vmatpush2.msra.mxu0 0.0
        %1922 = vmatprep.subr.mxu0 0.0
        %1923 = vmatpush2.msra.mxu0 0.0
        %1924 = vmatprep.subr.mxu0 0.0
        %1925 = vmatpush2.msra.mxu0 0.0
        %1926 = vmatprep.subr.mxu0 0.0
        %1927 = vmatpush2.msra.mxu0 0.0
        %1928 = vmatprep.subr.mxu0 0.0
        %1929 = vmatpush2.msra.mxu0 0.0
        %1930 = vmatprep.subr.mxu0 0.0
        %1931 = vmatpush2.msra.mxu0 0.0
        %1932 = vmatprep.subr.mxu0 0.0
        %1933 = vmatpush2.msra.mxu0 0.0
        %1934 = vmatprep.subr.mxu0 0.0
        %1935 = vmatpush2.msra.mxu0 0.0
        %1936 = vmatprep.subr.mxu0 0.0
        %1937 = vmatpush2.msra.mxu0 0.0
        %1938 = vmatprep.subr.mxu0 0.0
        %1939 = vmatpush2.msra.mxu0 0.0
        %1940 = vmatprep.subr.mxu0 0.0
        %1941 = vmatpush2.msra.mxu0 0.0
        %1942 = vmatprep.subr.mxu0 0.0
        %1943 = vmatpush2.msra.mxu0 0.0
        %1944 = vmatprep.subr.mxu0 0.0
        %1945 = vmatpush2.msra.mxu0 0.0
        %1946 = vmatprep.subr.mxu0 0.0
        %1947 = vmatpush2.msra.mxu0 0.0
        %1948 = vmatprep.subr.mxu0 0.0
        %1949 = vmatpush2.msra.mxu0 0.0
        %1950 = vmatprep.subr.mxu0 0.0
        %1951 = vmatpush2.msra.mxu0 0.0
        %1952 = vmatprep.mubr.f32.mxu0 0.0
        %1953 = vmatmul.mubr.f32.gmra.mxu0 %v1817
        %v1954 = vpop.f32.mrf.mxu0
        %v1955 = vadd.f32 0.0, %v1954
        %v1956 = vpop.f32.mrf.mxu0
        %v1957 = vadd.f32 0.0, %v1956
        %1958 = vdwg.mxu0
        %1959 = vmatprep.subr.mxu0 %v1887
        %1960 = vmatpush1.msra.mxu0 %v1886
        %1961 = vmatprep.subr.mxu0 %v1883
        %1962 = vmatpush1.msra.mxu0 %v1882
        %1963 = vmatprep.subr.mxu0 %v1879
        %1964 = vmatpush1.msra.mxu0 %v1878
        %1965 = vmatprep.subr.mxu0 %v1875
        %1966 = vmatpush1.msra.mxu0 %v1874
        %1967 = vmatprep.subr.mxu0 %v1871
        %1968 = vmatpush1.msra.mxu0 %v1870
        %1969 = vmatprep.subr.mxu0 %v1867
        %1970 = vmatpush1.msra.mxu0 %v1866
        %1971 = vmatprep.subr.mxu0 %v1863
        %1972 = vmatpush1.msra.mxu0 %v1862
        %1973 = vmatprep.subr.mxu0 %v1859
        %1974 = vmatpush1.msra.mxu0 %v1858
        %1975 = vmatprep.subr.mxu0 %v1855
        %1976 = vmatpush1.msra.mxu0 %v1854
        %1977 = vmatprep.subr.mxu0 %v1851
        %1978 = vmatpush1.msra.mxu0 %v1850
        %1979 = vmatprep.subr.mxu0 %v1847
        %1980 = vmatpush1.msra.mxu0 %v1846
        %1981 = vmatprep.subr.mxu0 %v1843
        %1982 = vmatpush1.msra.mxu0 %v1842
        %1983 = vmatprep.subr.mxu0 %v1839
        %1984 = vmatpush1.msra.mxu0 %v1838
        %1985 = vmatprep.subr.mxu0 %v1835
        %1986 = vmatpush1.msra.mxu0 %v1834
        %1987 = vmatprep.subr.mxu0 %v1831
        %1988 = vmatpush1.msra.mxu0 %v1830
        %1989 = vmatprep.subr.mxu0 %v1827
        %1990 = vmatpush1.msra.mxu0 %v1826
        %1991 = vmatprep.subr.mxu0 0.0
        %1992 = vmatpush2.msra.mxu0 0.0
        %1993 = vmatprep.subr.mxu0 0.0
        %1994 = vmatpush2.msra.mxu0 0.0
        %1995 = vmatprep.subr.mxu0 0.0
        %1996 = vmatpush2.msra.mxu0 0.0
        %1997 = vmatprep.subr.mxu0 0.0
        %1998 = vmatpush2.msra.mxu0 0.0
        %1999 = vmatprep.subr.mxu0 0.0
        %2000 = vmatpush2.msra.mxu0 0.0
        %2001 = vmatprep.subr.mxu0 0.0
        %2002 = vmatpush2.msra.mxu0 0.0
        %2003 = vmatprep.subr.mxu0 0.0
        %2004 = vmatpush2.msra.mxu0 0.0
        %2005 = vmatprep.subr.mxu0 0.0
        %2006 = vmatpush2.msra.mxu0 0.0
        %2007 = vmatprep.subr.mxu0 0.0
        %2008 = vmatpush2.msra.mxu0 0.0
        %2009 = vmatprep.subr.mxu0 0.0
        %2010 = vmatpush2.msra.mxu0 0.0
        %2011 = vmatprep.subr.mxu0 0.0
        %2012 = vmatpush2.msra.mxu0 0.0
        %2013 = vmatprep.subr.mxu0 0.0
        %2014 = vmatpush2.msra.mxu0 0.0
        %2015 = vmatprep.subr.mxu0 0.0
        %2016 = vmatpush2.msra.mxu0 0.0
        %2017 = vmatprep.subr.mxu0 0.0
        %2018 = vmatpush2.msra.mxu0 0.0
        %2019 = vmatprep.subr.mxu0 0.0
        %2020 = vmatpush2.msra.mxu0 0.0
        %2021 = vmatprep.subr.mxu0 0.0
        %2022 = vmatpush2.msra.mxu0 0.0
        %2023 = vmatprep.mubr.f32.mxu0 0.0
        %2024 = vmatmul.mubr.f32.gmra.mxu0 %v1817
        %v2025 = vpop.f32.mrf.mxu0
        %v2026 = vadd.f32 0.0, %v2025
        %v2027 = vpop.f32.mrf.mxu0
        %v2028 = vadd.f32 0.0, %v2027
        %2029 = vdwg.mxu0
        %v2030 = vadd.f32 %v1820, %v1955
        %v2031 = vadd.f32 %v1821, %v1957
        %v2032 = vadd.f32 %v1822, %v2026
        %v2033 = vadd.f32 %v1823, %v2028
        %v2034 = vxor.u32 %v2030, 2147483648
        %v2035 = vmul.f32 %v2034, 1.442695
        %v2036 = vpow.pop %v2035
        %v2037 = vadd.f32 %v2036, 1.0
        %v2038 = vrcp.pop %v2037
        %v2039 = vmul.f32 1.0, %v2038
        %v2040 = vxor.u32 %v2031, 2147483648
        %v2041 = vmul.f32 %v2040, 1.442695
        %v2042 = vpow.pop %v2041
        %v2043 = vadd.f32 %v2042, 1.0
        %v2044 = vrcp.pop %v2043
        %v2045 = vmul.f32 1.0, %v2044
        %v2046 = vtanh.pop %v2032
        %v2047 = vxor.u32 %v2033, 2147483648
        %v2048 = vmul.f32 %v2047, 1.442695
        %v2049 = vpow.pop %v2048
        %v2050 = vadd.f32 %v2049, 1.0
        %v2051 = vrcp.pop %v2050
        %v2052 = vmul.f32 1.0, %v2051
        %v2053 = vmul.f32 %v2045, %v1818
        %v2054 = vmul.f32 %v2039, %v2046
        %v2055 = vadd.f32 %v2053, %v2054
        %v2056 = vtanh.pop %v2055
        %v2057 = vmul.f32 %v2052, %v2056
        %2058 = vst [vmem:[#allocation4] sm:$0xff] %v2057
        %2059 = vst [vmem:[#allocation5] sm:$0xff] %v2055
        %s2060 = scalar_lea.vmem [#allocation2], 24
        %2061 = vst [vmem:[%s2060] sm:$0xff] %v2057
        %v2062 = vld [vmem:[#allocation4] sm:$0xff]
        %v2063 = vld [vmem:[#allocation5] sm:$0xff]
        %s2064 = scalar_lea.vmem [#allocation3], 128
        %v2065 = vld [vmem:[%s2064] sm:$0xff]
        %v2066 = vld [vmem:[%s2064 + $0x8] sm:$0xff]
        %v2067 = vld [vmem:[%s2064 + $0x10] sm:$0xff]
        %v2068 = vld [vmem:[%s2064 + $0x18] sm:$0xff]
        %v2069 = vld [vmem:[%s313] sm:$0xff]
        %v2070 = vld [vmem:[%s313 + $0x8] sm:$0xff]
        %v2071 = vld [vmem:[%s313 + $0x10] sm:$0xff]
        %v2072 = vld [vmem:[%s313 + $0x18] sm:$0xff]
        %v2073 = vld [vmem:[%s313 + $0x20] sm:$0xff]
        %v2074 = vld [vmem:[%s313 + $0x28] sm:$0xff]
        %v2075 = vld [vmem:[%s313 + $0x30] sm:$0xff]
        %v2076 = vld [vmem:[%s313 + $0x38] sm:$0xff]
        %v2077 = vld [vmem:[%s313 + $0x40] sm:$0xff]
        %v2078 = vld [vmem:[%s313 + $0x48] sm:$0xff]
        %v2079 = vld [vmem:[%s313 + $0x50] sm:$0xff]
        %v2080 = vld [vmem:[%s313 + $0x58] sm:$0xff]
        %v2081 = vld [vmem:[%s313 + $0x60] sm:$0xff]
        %v2082 = vld [vmem:[%s313 + $0x68] sm:$0xff]
        %v2083 = vld [vmem:[%s313 + $0x70] sm:$0xff]
        %v2084 = vld [vmem:[%s313 + $0x78] sm:$0xff]
        %v2085 = vld [vmem:[%s313 + $0x80] sm:$0xff]
        %v2086 = vld [vmem:[%s313 + $0x88] sm:$0xff]
        %v2087 = vld [vmem:[%s313 + $0x90] sm:$0xff]
        %v2088 = vld [vmem:[%s313 + $0x98] sm:$0xff]
        %v2089 = vld [vmem:[%s313 + $0xa0] sm:$0xff]
        %v2090 = vld [vmem:[%s313 + $0xa8] sm:$0xff]
        %v2091 = vld [vmem:[%s313 + $0xb0] sm:$0xff]
        %v2092 = vld [vmem:[%s313 + $0xb8] sm:$0xff]
        %v2093 = vld [vmem:[%s313 + $0xc0] sm:$0xff]
        %v2094 = vld [vmem:[%s313 + $0xc8] sm:$0xff]
        %v2095 = vld [vmem:[%s313 + $0xd0] sm:$0xff]
        %v2096 = vld [vmem:[%s313 + $0xd8] sm:$0xff]
        %v2097 = vld [vmem:[%s313 + $0xe0] sm:$0xff]
        %v2098 = vld [vmem:[%s313 + $0xe8] sm:$0xff]
        %v2099 = vld [vmem:[%s313 + $0xf0] sm:$0xff]
        %v2100 = vld [vmem:[%s313 + $0xf8] sm:$0xff]
        %v2101 = vld [vmem:[%s313 + $0x100] sm:$0xff]
        %v2102 = vld [vmem:[%s313 + $0x108] sm:$0xff]
        %v2103 = vld [vmem:[%s313 + $0x110] sm:$0xff]
        %v2104 = vld [vmem:[%s313 + $0x118] sm:$0xff]
        %v2105 = vld [vmem:[%s313 + $0x120] sm:$0xff]
        %v2106 = vld [vmem:[%s313 + $0x128] sm:$0xff]
        %v2107 = vld [vmem:[%s313 + $0x130] sm:$0xff]
        %v2108 = vld [vmem:[%s313 + $0x138] sm:$0xff]
        %v2109 = vld [vmem:[%s313 + $0x140] sm:$0xff]
        %v2110 = vld [vmem:[%s313 + $0x148] sm:$0xff]
        %v2111 = vld [vmem:[%s313 + $0x150] sm:$0xff]
        %v2112 = vld [vmem:[%s313 + $0x158] sm:$0xff]
        %v2113 = vld [vmem:[%s313 + $0x160] sm:$0xff]
        %v2114 = vld [vmem:[%s313 + $0x168] sm:$0xff]
        %v2115 = vld [vmem:[%s313 + $0x170] sm:$0xff]
        %v2116 = vld [vmem:[%s313 + $0x178] sm:$0xff]
        %v2117 = vld [vmem:[%s313 + $0x180] sm:$0xff]
        %v2118 = vld [vmem:[%s313 + $0x188] sm:$0xff]
        %v2119 = vld [vmem:[%s313 + $0x190] sm:$0xff]
        %v2120 = vld [vmem:[%s313 + $0x198] sm:$0xff]
        %v2121 = vld [vmem:[%s313 + $0x1a0] sm:$0xff]
        %v2122 = vld [vmem:[%s313 + $0x1a8] sm:$0xff]
        %v2123 = vld [vmem:[%s313 + $0x1b0] sm:$0xff]
        %v2124 = vld [vmem:[%s313 + $0x1b8] sm:$0xff]
        %v2125 = vld [vmem:[%s313 + $0x1c0] sm:$0xff]
        %v2126 = vld [vmem:[%s313 + $0x1c8] sm:$0xff]
        %v2127 = vld [vmem:[%s313 + $0x1d0] sm:$0xff]
        %v2128 = vld [vmem:[%s313 + $0x1d8] sm:$0xff]
        %v2129 = vld [vmem:[%s313 + $0x1e0] sm:$0xff]
        %v2130 = vld [vmem:[%s313 + $0x1e8] sm:$0xff]
        %v2131 = vld [vmem:[%s313 + $0x1f0] sm:$0xff]
        %v2132 = vld [vmem:[%s313 + $0x1f8] sm:$0xff]
        %2133 = vmatprep.subr.mxu0 %v2130
        %2134 = vmatpush1.msra.mxu0 %v2129
        %2135 = vmatprep.subr.mxu0 %v2126
        %2136 = vmatpush1.msra.mxu0 %v2125
        %2137 = vmatprep.subr.mxu0 %v2122
        %2138 = vmatpush1.msra.mxu0 %v2121
        %2139 = vmatprep.subr.mxu0 %v2118
        %2140 = vmatpush1.msra.mxu0 %v2117
        %2141 = vmatprep.subr.mxu0 %v2114
        %2142 = vmatpush1.msra.mxu0 %v2113
        %2143 = vmatprep.subr.mxu0 %v2110
        %2144 = vmatpush1.msra.mxu0 %v2109
        %2145 = vmatprep.subr.mxu0 %v2106
        %2146 = vmatpush1.msra.mxu0 %v2105
        %2147 = vmatprep.subr.mxu0 %v2102
        %2148 = vmatpush1.msra.mxu0 %v2101
        %2149 = vmatprep.subr.mxu0 %v2098
        %2150 = vmatpush1.msra.mxu0 %v2097
        %2151 = vmatprep.subr.mxu0 %v2094
        %2152 = vmatpush1.msra.mxu0 %v2093
        %2153 = vmatprep.subr.mxu0 %v2090
        %2154 = vmatpush1.msra.mxu0 %v2089
        %2155 = vmatprep.subr.mxu0 %v2086
        %2156 = vmatpush1.msra.mxu0 %v2085
        %2157 = vmatprep.subr.mxu0 %v2082
        %2158 = vmatpush1.msra.mxu0 %v2081
        %2159 = vmatprep.subr.mxu0 %v2078
        %2160 = vmatpush1.msra.mxu0 %v2077
        %2161 = vmatprep.subr.mxu0 %v2074
        %2162 = vmatpush1.msra.mxu0 %v2073
        %2163 = vmatprep.subr.mxu0 %v2070
        %2164 = vmatpush1.msra.mxu0 %v2069
        %2165 = vmatprep.subr.mxu0 0.0
        %2166 = vmatpush2.msra.mxu0 0.0
        %2167 = vmatprep.subr.mxu0 0.0
        %2168 = vmatpush2.msra.mxu0 0.0
        %2169 = vmatprep.subr.mxu0 0.0
        %2170 = vmatpush2.msra.mxu0 0.0
        %2171 = vmatprep.subr.mxu0 0.0
        %2172 = vmatpush2.msra.mxu0 0.0
        %2173 = vmatprep.subr.mxu0 0.0
        %2174 = vmatpush2.msra.mxu0 0.0
        %2175 = vmatprep.subr.mxu0 0.0
        %2176 = vmatpush2.msra.mxu0 0.0
        %2177 = vmatprep.subr.mxu0 0.0
        %2178 = vmatpush2.msra.mxu0 0.0
        %2179 = vmatprep.subr.mxu0 0.0
        %2180 = vmatpush2.msra.mxu0 0.0
        %2181 = vmatprep.subr.mxu0 0.0
        %2182 = vmatpush2.msra.mxu0 0.0
        %2183 = vmatprep.subr.mxu0 0.0
        %2184 = vmatpush2.msra.mxu0 0.0
        %2185 = vmatprep.subr.mxu0 0.0
        %2186 = vmatpush2.msra.mxu0 0.0
        %2187 = vmatprep.subr.mxu0 0.0
        %2188 = vmatpush2.msra.mxu0 0.0
        %2189 = vmatprep.subr.mxu0 0.0
        %2190 = vmatpush2.msra.mxu0 0.0
        %2191 = vmatprep.subr.mxu0 0.0
        %2192 = vmatpush2.msra.mxu0 0.0
        %2193 = vmatprep.subr.mxu0 0.0
        %2194 = vmatpush2.msra.mxu0 0.0
        %2195 = vmatprep.subr.mxu0 0.0
        %2196 = vmatpush2.msra.mxu0 0.0
        %2197 = vmatprep.mubr.f32.mxu0 0.0
        %2198 = vmatmul.mubr.f32.gmra.mxu0 %v2062
        %v2199 = vpop.f32.mrf.mxu0
        %v2200 = vadd.f32 0.0, %v2199
        %v2201 = vpop.f32.mrf.mxu0
        %v2202 = vadd.f32 0.0, %v2201
        %2203 = vdwg.mxu0
        %2204 = vmatprep.subr.mxu0 %v2132
        %2205 = vmatpush1.msra.mxu0 %v2131
        %2206 = vmatprep.subr.mxu0 %v2128
        %2207 = vmatpush1.msra.mxu0 %v2127
        %2208 = vmatprep.subr.mxu0 %v2124
        %2209 = vmatpush1.msra.mxu0 %v2123
        %2210 = vmatprep.subr.mxu0 %v2120
        %2211 = vmatpush1.msra.mxu0 %v2119
        %2212 = vmatprep.subr.mxu0 %v2116
        %2213 = vmatpush1.msra.mxu0 %v2115
        %2214 = vmatprep.subr.mxu0 %v2112
        %2215 = vmatpush1.msra.mxu0 %v2111
        %2216 = vmatprep.subr.mxu0 %v2108
        %2217 = vmatpush1.msra.mxu0 %v2107
        %2218 = vmatprep.subr.mxu0 %v2104
        %2219 = vmatpush1.msra.mxu0 %v2103
        %2220 = vmatprep.subr.mxu0 %v2100
        %2221 = vmatpush1.msra.mxu0 %v2099
        %2222 = vmatprep.subr.mxu0 %v2096
        %2223 = vmatpush1.msra.mxu0 %v2095
        %2224 = vmatprep.subr.mxu0 %v2092
        %2225 = vmatpush1.msra.mxu0 %v2091
        %2226 = vmatprep.subr.mxu0 %v2088
        %2227 = vmatpush1.msra.mxu0 %v2087
        %2228 = vmatprep.subr.mxu0 %v2084
        %2229 = vmatpush1.msra.mxu0 %v2083
        %2230 = vmatprep.subr.mxu0 %v2080
        %2231 = vmatpush1.msra.mxu0 %v2079
        %2232 = vmatprep.subr.mxu0 %v2076
        %2233 = vmatpush1.msra.mxu0 %v2075
        %2234 = vmatprep.subr.mxu0 %v2072
        %2235 = vmatpush1.msra.mxu0 %v2071
        %2236 = vmatprep.subr.mxu0 0.0
        %2237 = vmatpush2.msra.mxu0 0.0
        %2238 = vmatprep.subr.mxu0 0.0
        %2239 = vmatpush2.msra.mxu0 0.0
        %2240 = vmatprep.subr.mxu0 0.0
        %2241 = vmatpush2.msra.mxu0 0.0
        %2242 = vmatprep.subr.mxu0 0.0
        %2243 = vmatpush2.msra.mxu0 0.0
        %2244 = vmatprep.subr.mxu0 0.0
        %2245 = vmatpush2.msra.mxu0 0.0
        %2246 = vmatprep.subr.mxu0 0.0
        %2247 = vmatpush2.msra.mxu0 0.0
        %2248 = vmatprep.subr.mxu0 0.0
        %2249 = vmatpush2.msra.mxu0 0.0
        %2250 = vmatprep.subr.mxu0 0.0
        %2251 = vmatpush2.msra.mxu0 0.0
        %2252 = vmatprep.subr.mxu0 0.0
        %2253 = vmatpush2.msra.mxu0 0.0
        %2254 = vmatprep.subr.mxu0 0.0
        %2255 = vmatpush2.msra.mxu0 0.0
        %2256 = vmatprep.subr.mxu0 0.0
        %2257 = vmatpush2.msra.mxu0 0.0
        %2258 = vmatprep.subr.mxu0 0.0
        %2259 = vmatpush2.msra.mxu0 0.0
        %2260 = vmatprep.subr.mxu0 0.0
        %2261 = vmatpush2.msra.mxu0 0.0
        %2262 = vmatprep.subr.mxu0 0.0
        %2263 = vmatpush2.msra.mxu0 0.0
        %2264 = vmatprep.subr.mxu0 0.0
        %2265 = vmatpush2.msra.mxu0 0.0
        %2266 = vmatprep.subr.mxu0 0.0
        %2267 = vmatpush2.msra.mxu0 0.0
        %2268 = vmatprep.mubr.f32.mxu0 0.0
        %2269 = vmatmul.mubr.f32.gmra.mxu0 %v2062
        %v2270 = vpop.f32.mrf.mxu0
        %v2271 = vadd.f32 0.0, %v2270
        %v2272 = vpop.f32.mrf.mxu0
        %v2273 = vadd.f32 0.0, %v2272
        %2274 = vdwg.mxu0
        %v2275 = vadd.f32 %v2065, %v2200
        %v2276 = vadd.f32 %v2066, %v2202
        %v2277 = vadd.f32 %v2067, %v2271
        %v2278 = vadd.f32 %v2068, %v2273
        %v2279 = vxor.u32 %v2275, 2147483648
        %v2280 = vmul.f32 %v2279, 1.442695
        %v2281 = vpow.pop %v2280
        %v2282 = vadd.f32 %v2281, 1.0
        %v2283 = vrcp.pop %v2282
        %v2284 = vmul.f32 1.0, %v2283
        %v2285 = vxor.u32 %v2276, 2147483648
        %v2286 = vmul.f32 %v2285, 1.442695
        %v2287 = vpow.pop %v2286
        %v2288 = vadd.f32 %v2287, 1.0
        %v2289 = vrcp.pop %v2288
        %v2290 = vmul.f32 1.0, %v2289
        %v2291 = vtanh.pop %v2277
        %v2292 = vxor.u32 %v2278, 2147483648
        %v2293 = vmul.f32 %v2292, 1.442695
        %v2294 = vpow.pop %v2293
        %v2295 = vadd.f32 %v2294, 1.0
        %v2296 = vrcp.pop %v2295
        %v2297 = vmul.f32 1.0, %v2296
        %v2298 = vmul.f32 %v2290, %v2063
        %v2299 = vmul.f32 %v2284, %v2291
        %v2300 = vadd.f32 %v2298, %v2299
        %v2301 = vtanh.pop %v2300
        %v2302 = vmul.f32 %v2297, %v2301
        %2303 = vst [vmem:[#allocation4] sm:$0xff] %v2302
        %2304 = vst [vmem:[#allocation5] sm:$0xff] %v2300
        %s2305 = scalar_lea.vmem [#allocation2], 32
        %2306 = vst [vmem:[%s2305] sm:$0xff] %v2302
        %v2307 = vld [vmem:[#allocation4] sm:$0xff]
        %v2308 = vld [vmem:[#allocation5] sm:$0xff]
        %s2309 = scalar_lea.vmem [#allocation3], 160
        %v2310 = vld [vmem:[%s2309] sm:$0xff]
        %v2311 = vld [vmem:[%s2309 + $0x8] sm:$0xff]
        %v2312 = vld [vmem:[%s2309 + $0x10] sm:$0xff]
        %v2313 = vld [vmem:[%s2309 + $0x18] sm:$0xff]
        %v2314 = vld [vmem:[%s313] sm:$0xff]
        %v2315 = vld [vmem:[%s313 + $0x8] sm:$0xff]
        %v2316 = vld [vmem:[%s313 + $0x10] sm:$0xff]
        %v2317 = vld [vmem:[%s313 + $0x18] sm:$0xff]
        %v2318 = vld [vmem:[%s313 + $0x20] sm:$0xff]
        %v2319 = vld [vmem:[%s313 + $0x28] sm:$0xff]
        %v2320 = vld [vmem:[%s313 + $0x30] sm:$0xff]
        %v2321 = vld [vmem:[%s313 + $0x38] sm:$0xff]
        %v2322 = vld [vmem:[%s313 + $0x40] sm:$0xff]
        %v2323 = vld [vmem:[%s313 + $0x48] sm:$0xff]
        %v2324 = vld [vmem:[%s313 + $0x50] sm:$0xff]
        %v2325 = vld [vmem:[%s313 + $0x58] sm:$0xff]
        %v2326 = vld [vmem:[%s313 + $0x60] sm:$0xff]
        %v2327 = vld [vmem:[%s313 + $0x68] sm:$0xff]
        %v2328 = vld [vmem:[%s313 + $0x70] sm:$0xff]
        %v2329 = vld [vmem:[%s313 + $0x78] sm:$0xff]
        %v2330 = vld [vmem:[%s313 + $0x80] sm:$0xff]
        %v2331 = vld [vmem:[%s313 + $0x88] sm:$0xff]
        %v2332 = vld [vmem:[%s313 + $0x90] sm:$0xff]
        %v2333 = vld [vmem:[%s313 + $0x98] sm:$0xff]
        %v2334 = vld [vmem:[%s313 + $0xa0] sm:$0xff]
        %v2335 = vld [vmem:[%s313 + $0xa8] sm:$0xff]
        %v2336 = vld [vmem:[%s313 + $0xb0] sm:$0xff]
        %v2337 = vld [vmem:[%s313 + $0xb8] sm:$0xff]
        %v2338 = vld [vmem:[%s313 + $0xc0] sm:$0xff]
        %v2339 = vld [vmem:[%s313 + $0xc8] sm:$0xff]
        %v2340 = vld [vmem:[%s313 + $0xd0] sm:$0xff]
        %v2341 = vld [vmem:[%s313 + $0xd8] sm:$0xff]
        %v2342 = vld [vmem:[%s313 + $0xe0] sm:$0xff]
        %v2343 = vld [vmem:[%s313 + $0xe8] sm:$0xff]
        %v2344 = vld [vmem:[%s313 + $0xf0] sm:$0xff]
        %v2345 = vld [vmem:[%s313 + $0xf8] sm:$0xff]
        %v2346 = vld [vmem:[%s313 + $0x100] sm:$0xff]
        %v2347 = vld [vmem:[%s313 + $0x108] sm:$0xff]
        %v2348 = vld [vmem:[%s313 + $0x110] sm:$0xff]
        %v2349 = vld [vmem:[%s313 + $0x118] sm:$0xff]
        %v2350 = vld [vmem:[%s313 + $0x120] sm:$0xff]
        %v2351 = vld [vmem:[%s313 + $0x128] sm:$0xff]
        %v2352 = vld [vmem:[%s313 + $0x130] sm:$0xff]
        %v2353 = vld [vmem:[%s313 + $0x138] sm:$0xff]
        %v2354 = vld [vmem:[%s313 + $0x140] sm:$0xff]
        %v2355 = vld [vmem:[%s313 + $0x148] sm:$0xff]
        %v2356 = vld [vmem:[%s313 + $0x150] sm:$0xff]
        %v2357 = vld [vmem:[%s313 + $0x158] sm:$0xff]
        %v2358 = vld [vmem:[%s313 + $0x160] sm:$0xff]
        %v2359 = vld [vmem:[%s313 + $0x168] sm:$0xff]
        %v2360 = vld [vmem:[%s313 + $0x170] sm:$0xff]
        %v2361 = vld [vmem:[%s313 + $0x178] sm:$0xff]
        %v2362 = vld [vmem:[%s313 + $0x180] sm:$0xff]
        %v2363 = vld [vmem:[%s313 + $0x188] sm:$0xff]
        %v2364 = vld [vmem:[%s313 + $0x190] sm:$0xff]
        %v2365 = vld [vmem:[%s313 + $0x198] sm:$0xff]
        %v2366 = vld [vmem:[%s313 + $0x1a0] sm:$0xff]
        %v2367 = vld [vmem:[%s313 + $0x1a8] sm:$0xff]
        %v2368 = vld [vmem:[%s313 + $0x1b0] sm:$0xff]
        %v2369 = vld [vmem:[%s313 + $0x1b8] sm:$0xff]
        %v2370 = vld [vmem:[%s313 + $0x1c0] sm:$0xff]
        %v2371 = vld [vmem:[%s313 + $0x1c8] sm:$0xff]
        %v2372 = vld [vmem:[%s313 + $0x1d0] sm:$0xff]
        %v2373 = vld [vmem:[%s313 + $0x1d8] sm:$0xff]
        %v2374 = vld [vmem:[%s313 + $0x1e0] sm:$0xff]
        %v2375 = vld [vmem:[%s313 + $0x1e8] sm:$0xff]
        %v2376 = vld [vmem:[%s313 + $0x1f0] sm:$0xff]
        %v2377 = vld [vmem:[%s313 + $0x1f8] sm:$0xff]
        %2378 = vmatprep.subr.mxu0 %v2375
        %2379 = vmatpush1.msra.mxu0 %v2374
        %2380 = vmatprep.subr.mxu0 %v2371
        %2381 = vmatpush1.msra.mxu0 %v2370
        %2382 = vmatprep.subr.mxu0 %v2367
        %2383 = vmatpush1.msra.mxu0 %v2366
        %2384 = vmatprep.subr.mxu0 %v2363
        %2385 = vmatpush1.msra.mxu0 %v2362
        %2386 = vmatprep.subr.mxu0 %v2359
        %2387 = vmatpush1.msra.mxu0 %v2358
        %2388 = vmatprep.subr.mxu0 %v2355
        %2389 = vmatpush1.msra.mxu0 %v2354
        %2390 = vmatprep.subr.mxu0 %v2351
        %2391 = vmatpush1.msra.mxu0 %v2350
        %2392 = vmatprep.subr.mxu0 %v2347
        %2393 = vmatpush1.msra.mxu0 %v2346
        %2394 = vmatprep.subr.mxu0 %v2343
        %2395 = vmatpush1.msra.mxu0 %v2342
        %2396 = vmatprep.subr.mxu0 %v2339
        %2397 = vmatpush1.msra.mxu0 %v2338
        %2398 = vmatprep.subr.mxu0 %v2335
        %2399 = vmatpush1.msra.mxu0 %v2334
        %2400 = vmatprep.subr.mxu0 %v2331
        %2401 = vmatpush1.msra.mxu0 %v2330
        %2402 = vmatprep.subr.mxu0 %v2327
        %2403 = vmatpush1.msra.mxu0 %v2326
        %2404 = vmatprep.subr.mxu0 %v2323
        %2405 = vmatpush1.msra.mxu0 %v2322
        %2406 = vmatprep.subr.mxu0 %v2319
        %2407 = vmatpush1.msra.mxu0 %v2318
        %2408 = vmatprep.subr.mxu0 %v2315
        %2409 = vmatpush1.msra.mxu0 %v2314
        %2410 = vmatprep.subr.mxu0 0.0
        %2411 = vmatpush2.msra.mxu0 0.0
        %2412 = vmatprep.subr.mxu0 0.0
        %2413 = vmatpush2.msra.mxu0 0.0
        %2414 = vmatprep.subr.mxu0 0.0
        %2415 = vmatpush2.msra.mxu0 0.0
        %2416 = vmatprep.subr.mxu0 0.0
        %2417 = vmatpush2.msra.mxu0 0.0
        %2418 = vmatprep.subr.mxu0 0.0
        %2419 = vmatpush2.msra.mxu0 0.0
        %2420 = vmatprep.subr.mxu0 0.0
        %2421 = vmatpush2.msra.mxu0 0.0
        %2422 = vmatprep.subr.mxu0 0.0
        %2423 = vmatpush2.msra.mxu0 0.0
        %2424 = vmatprep.subr.mxu0 0.0
        %2425 = vmatpush2.msra.mxu0 0.0
        %2426 = vmatprep.subr.mxu0 0.0
        %2427 = vmatpush2.msra.mxu0 0.0
        %2428 = vmatprep.subr.mxu0 0.0
        %2429 = vmatpush2.msra.mxu0 0.0
        %2430 = vmatprep.subr.mxu0 0.0
        %2431 = vmatpush2.msra.mxu0 0.0
        %2432 = vmatprep.subr.mxu0 0.0
        %2433 = vmatpush2.msra.mxu0 0.0
        %2434 = vmatprep.subr.mxu0 0.0
        %2435 = vmatpush2.msra.mxu0 0.0
        %2436 = vmatprep.subr.mxu0 0.0
        %2437 = vmatpush2.msra.mxu0 0.0
        %2438 = vmatprep.subr.mxu0 0.0
        %2439 = vmatpush2.msra.mxu0 0.0
        %2440 = vmatprep.subr.mxu0 0.0
        %2441 = vmatpush2.msra.mxu0 0.0
        %2442 = vmatprep.mubr.f32.mxu0 0.0
        %2443 = vmatmul.mubr.f32.gmra.mxu0 %v2307
        %v2444 = vpop.f32.mrf.mxu0
        %v2445 = vadd.f32 0.0, %v2444
        %v2446 = vpop.f32.mrf.mxu0
        %v2447 = vadd.f32 0.0, %v2446
        %2448 = vdwg.mxu0
        %2449 = vmatprep.subr.mxu0 %v2377
        %2450 = vmatpush1.msra.mxu0 %v2376
        %2451 = vmatprep.subr.mxu0 %v2373
        %2452 = vmatpush1.msra.mxu0 %v2372
        %2453 = vmatprep.subr.mxu0 %v2369
        %2454 = vmatpush1.msra.mxu0 %v2368
        %2455 = vmatprep.subr.mxu0 %v2365
        %2456 = vmatpush1.msra.mxu0 %v2364
        %2457 = vmatprep.subr.mxu0 %v2361
        %2458 = vmatpush1.msra.mxu0 %v2360
        %2459 = vmatprep.subr.mxu0 %v2357
        %2460 = vmatpush1.msra.mxu0 %v2356
        %2461 = vmatprep.subr.mxu0 %v2353
        %2462 = vmatpush1.msra.mxu0 %v2352
        %2463 = vmatprep.subr.mxu0 %v2349
        %2464 = vmatpush1.msra.mxu0 %v2348
        %2465 = vmatprep.subr.mxu0 %v2345
        %2466 = vmatpush1.msra.mxu0 %v2344
        %2467 = vmatprep.subr.mxu0 %v2341
        %2468 = vmatpush1.msra.mxu0 %v2340
        %2469 = vmatprep.subr.mxu0 %v2337
        %2470 = vmatpush1.msra.mxu0 %v2336
        %2471 = vmatprep.subr.mxu0 %v2333
        %2472 = vmatpush1.msra.mxu0 %v2332
        %2473 = vmatprep.subr.mxu0 %v2329
        %2474 = vmatpush1.msra.mxu0 %v2328
        %2475 = vmatprep.subr.mxu0 %v2325
        %2476 = vmatpush1.msra.mxu0 %v2324
        %2477 = vmatprep.subr.mxu0 %v2321
        %2478 = vmatpush1.msra.mxu0 %v2320
        %2479 = vmatprep.subr.mxu0 %v2317
        %2480 = vmatpush1.msra.mxu0 %v2316
        %2481 = vmatprep.subr.mxu0 0.0
        %2482 = vmatpush2.msra.mxu0 0.0
        %2483 = vmatprep.subr.mxu0 0.0
        %2484 = vmatpush2.msra.mxu0 0.0
        %2485 = vmatprep.subr.mxu0 0.0
        %2486 = vmatpush2.msra.mxu0 0.0
        %2487 = vmatprep.subr.mxu0 0.0
        %2488 = vmatpush2.msra.mxu0 0.0
        %2489 = vmatprep.subr.mxu0 0.0
        %2490 = vmatpush2.msra.mxu0 0.0
        %2491 = vmatprep.subr.mxu0 0.0
        %2492 = vmatpush2.msra.mxu0 0.0
        %2493 = vmatprep.subr.mxu0 0.0
        %2494 = vmatpush2.msra.mxu0 0.0
        %2495 = vmatprep.subr.mxu0 0.0
        %2496 = vmatpush2.msra.mxu0 0.0
        %2497 = vmatprep.subr.mxu0 0.0
        %2498 = vmatpush2.msra.mxu0 0.0
        %2499 = vmatprep.subr.mxu0 0.0
        %2500 = vmatpush2.msra.mxu0 0.0
        %2501 = vmatprep.subr.mxu0 0.0
        %2502 = vmatpush2.msra.mxu0 0.0
        %2503 = vmatprep.subr.mxu0 0.0
        %2504 = vmatpush2.msra.mxu0 0.0
        %2505 = vmatprep.subr.mxu0 0.0
        %2506 = vmatpush2.msra.mxu0 0.0
        %2507 = vmatprep.subr.mxu0 0.0
        %2508 = vmatpush2.msra.mxu0 0.0
        %2509 = vmatprep.subr.mxu0 0.0
        %2510 = vmatpush2.msra.mxu0 0.0
        %2511 = vmatprep.subr.mxu0 0.0
        %2512 = vmatpush2.msra.mxu0 0.0
        %2513 = vmatprep.mubr.f32.mxu0 0.0
        %2514 = vmatmul.mubr.f32.gmra.mxu0 %v2307
        %v2515 = vpop.f32.mrf.mxu0
        %v2516 = vadd.f32 0.0, %v2515
        %v2517 = vpop.f32.mrf.mxu0
        %v2518 = vadd.f32 0.0, %v2517
        %2519 = vdwg.mxu0
        %v2520 = vadd.f32 %v2310, %v2445
        %v2521 = vadd.f32 %v2311, %v2447
        %v2522 = vadd.f32 %v2312, %v2516
        %v2523 = vadd.f32 %v2313, %v2518
        %v2524 = vxor.u32 %v2520, 2147483648
        %v2525 = vmul.f32 %v2524, 1.442695
        %v2526 = vpow.pop %v2525
        %v2527 = vadd.f32 %v2526, 1.0
        %v2528 = vrcp.pop %v2527
        %v2529 = vmul.f32 1.0, %v2528
        %v2530 = vxor.u32 %v2521, 2147483648
        %v2531 = vmul.f32 %v2530, 1.442695
        %v2532 = vpow.pop %v2531
        %v2533 = vadd.f32 %v2532, 1.0
        %v2534 = vrcp.pop %v2533
        %v2535 = vmul.f32 1.0, %v2534
        %v2536 = vtanh.pop %v2522
        %v2537 = vxor.u32 %v2523, 2147483648
        %v2538 = vmul.f32 %v2537, 1.442695
        %v2539 = vpow.pop %v2538
        %v2540 = vadd.f32 %v2539, 1.0
        %v2541 = vrcp.pop %v2540
        %v2542 = vmul.f32 1.0, %v2541
        %v2543 = vmul.f32 %v2535, %v2308
        %v2544 = vmul.f32 %v2529, %v2536
        %v2545 = vadd.f32 %v2543, %v2544
        %v2546 = vtanh.pop %v2545
        %v2547 = vmul.f32 %v2542, %v2546
        %2548 = vst [vmem:[#allocation4] sm:$0xff] %v2547
        %2549 = vst [vmem:[#allocation5] sm:$0xff] %v2545
        %s2550 = scalar_lea.vmem [#allocation2], 40
        %2551 = vst [vmem:[%s2550] sm:$0xff] %v2547
        %v2552 = vld [vmem:[#allocation4] sm:$0xff]
        %v2553 = vld [vmem:[#allocation5] sm:$0xff]
        %s2554 = scalar_lea.vmem [#allocation3], 192
        %v2555 = vld [vmem:[%s2554] sm:$0xff]
        %v2556 = vld [vmem:[%s2554 + $0x8] sm:$0xff]
        %v2557 = vld [vmem:[%s2554 + $0x10] sm:$0xff]
        %v2558 = vld [vmem:[%s2554 + $0x18] sm:$0xff]
        %v2559 = vld [vmem:[%s313] sm:$0xff]
        %v2560 = vld [vmem:[%s313 + $0x8] sm:$0xff]
        %v2561 = vld [vmem:[%s313 + $0x10] sm:$0xff]
        %v2562 = vld [vmem:[%s313 + $0x18] sm:$0xff]
        %v2563 = vld [vmem:[%s313 + $0x20] sm:$0xff]
        %v2564 = vld [vmem:[%s313 + $0x28] sm:$0xff]
        %v2565 = vld [vmem:[%s313 + $0x30] sm:$0xff]
        %v2566 = vld [vmem:[%s313 + $0x38] sm:$0xff]
        %v2567 = vld [vmem:[%s313 + $0x40] sm:$0xff]
        %v2568 = vld [vmem:[%s313 + $0x48] sm:$0xff]
        %v2569 = vld [vmem:[%s313 + $0x50] sm:$0xff]
        %v2570 = vld [vmem:[%s313 + $0x58] sm:$0xff]
        %v2571 = vld [vmem:[%s313 + $0x60] sm:$0xff]
        %v2572 = vld [vmem:[%s313 + $0x68] sm:$0xff]
        %v2573 = vld [vmem:[%s313 + $0x70] sm:$0xff]
        %v2574 = vld [vmem:[%s313 + $0x78] sm:$0xff]
        %v2575 = vld [vmem:[%s313 + $0x80] sm:$0xff]
        %v2576 = vld [vmem:[%s313 + $0x88] sm:$0xff]
        %v2577 = vld [vmem:[%s313 + $0x90] sm:$0xff]
        %v2578 = vld [vmem:[%s313 + $0x98] sm:$0xff]
        %v2579 = vld [vmem:[%s313 + $0xa0] sm:$0xff]
        %v2580 = vld [vmem:[%s313 + $0xa8] sm:$0xff]
        %v2581 = vld [vmem:[%s313 + $0xb0] sm:$0xff]
        %v2582 = vld [vmem:[%s313 + $0xb8] sm:$0xff]
        %v2583 = vld [vmem:[%s313 + $0xc0] sm:$0xff]
        %v2584 = vld [vmem:[%s313 + $0xc8] sm:$0xff]
        %v2585 = vld [vmem:[%s313 + $0xd0] sm:$0xff]
        %v2586 = vld [vmem:[%s313 + $0xd8] sm:$0xff]
        %v2587 = vld [vmem:[%s313 + $0xe0] sm:$0xff]
        %v2588 = vld [vmem:[%s313 + $0xe8] sm:$0xff]
        %v2589 = vld [vmem:[%s313 + $0xf0] sm:$0xff]
        %v2590 = vld [vmem:[%s313 + $0xf8] sm:$0xff]
        %v2591 = vld [vmem:[%s313 + $0x100] sm:$0xff]
        %v2592 = vld [vmem:[%s313 + $0x108] sm:$0xff]
        %v2593 = vld [vmem:[%s313 + $0x110] sm:$0xff]
        %v2594 = vld [vmem:[%s313 + $0x118] sm:$0xff]
        %v2595 = vld [vmem:[%s313 + $0x120] sm:$0xff]
        %v2596 = vld [vmem:[%s313 + $0x128] sm:$0xff]
        %v2597 = vld [vmem:[%s313 + $0x130] sm:$0xff]
        %v2598 = vld [vmem:[%s313 + $0x138] sm:$0xff]
        %v2599 = vld [vmem:[%s313 + $0x140] sm:$0xff]
        %v2600 = vld [vmem:[%s313 + $0x148] sm:$0xff]
        %v2601 = vld [vmem:[%s313 + $0x150] sm:$0xff]
        %v2602 = vld [vmem:[%s313 + $0x158] sm:$0xff]
        %v2603 = vld [vmem:[%s313 + $0x160] sm:$0xff]
        %v2604 = vld [vmem:[%s313 + $0x168] sm:$0xff]
        %v2605 = vld [vmem:[%s313 + $0x170] sm:$0xff]
        %v2606 = vld [vmem:[%s313 + $0x178] sm:$0xff]
        %v2607 = vld [vmem:[%s313 + $0x180] sm:$0xff]
        %v2608 = vld [vmem:[%s313 + $0x188] sm:$0xff]
        %v2609 = vld [vmem:[%s313 + $0x190] sm:$0xff]
        %v2610 = vld [vmem:[%s313 + $0x198] sm:$0xff]
        %v2611 = vld [vmem:[%s313 + $0x1a0] sm:$0xff]
        %v2612 = vld [vmem:[%s313 + $0x1a8] sm:$0xff]
        %v2613 = vld [vmem:[%s313 + $0x1b0] sm:$0xff]
        %v2614 = vld [vmem:[%s313 + $0x1b8] sm:$0xff]
        %v2615 = vld [vmem:[%s313 + $0x1c0] sm:$0xff]
        %v2616 = vld [vmem:[%s313 + $0x1c8] sm:$0xff]
        %v2617 = vld [vmem:[%s313 + $0x1d0] sm:$0xff]
        %v2618 = vld [vmem:[%s313 + $0x1d8] sm:$0xff]
        %v2619 = vld [vmem:[%s313 + $0x1e0] sm:$0xff]
        %v2620 = vld [vmem:[%s313 + $0x1e8] sm:$0xff]
        %v2621 = vld [vmem:[%s313 + $0x1f0] sm:$0xff]
        %v2622 = vld [vmem:[%s313 + $0x1f8] sm:$0xff]
        %2623 = vmatprep.subr.mxu0 %v2620
        %2624 = vmatpush1.msra.mxu0 %v2619
        %2625 = vmatprep.subr.mxu0 %v2616
        %2626 = vmatpush1.msra.mxu0 %v2615
        %2627 = vmatprep.subr.mxu0 %v2612
        %2628 = vmatpush1.msra.mxu0 %v2611
        %2629 = vmatprep.subr.mxu0 %v2608
        %2630 = vmatpush1.msra.mxu0 %v2607
        %2631 = vmatprep.subr.mxu0 %v2604
        %2632 = vmatpush1.msra.mxu0 %v2603
        %2633 = vmatprep.subr.mxu0 %v2600
        %2634 = vmatpush1.msra.mxu0 %v2599
        %2635 = vmatprep.subr.mxu0 %v2596
        %2636 = vmatpush1.msra.mxu0 %v2595
        %2637 = vmatprep.subr.mxu0 %v2592
        %2638 = vmatpush1.msra.mxu0 %v2591
        %2639 = vmatprep.subr.mxu0 %v2588
        %2640 = vmatpush1.msra.mxu0 %v2587
        %2641 = vmatprep.subr.mxu0 %v2584
        %2642 = vmatpush1.msra.mxu0 %v2583
        %2643 = vmatprep.subr.mxu0 %v2580
        %2644 = vmatpush1.msra.mxu0 %v2579
        %2645 = vmatprep.subr.mxu0 %v2576
        %2646 = vmatpush1.msra.mxu0 %v2575
        %2647 = vmatprep.subr.mxu0 %v2572
        %2648 = vmatpush1.msra.mxu0 %v2571
        %2649 = vmatprep.subr.mxu0 %v2568
        %2650 = vmatpush1.msra.mxu0 %v2567
        %2651 = vmatprep.subr.mxu0 %v2564
        %2652 = vmatpush1.msra.mxu0 %v2563
        %2653 = vmatprep.subr.mxu0 %v2560
        %2654 = vmatpush1.msra.mxu0 %v2559
        %2655 = vmatprep.subr.mxu0 0.0
        %2656 = vmatpush2.msra.mxu0 0.0
        %2657 = vmatprep.subr.mxu0 0.0
        %2658 = vmatpush2.msra.mxu0 0.0
        %2659 = vmatprep.subr.mxu0 0.0
        %2660 = vmatpush2.msra.mxu0 0.0
        %2661 = vmatprep.subr.mxu0 0.0
        %2662 = vmatpush2.msra.mxu0 0.0
        %2663 = vmatprep.subr.mxu0 0.0
        %2664 = vmatpush2.msra.mxu0 0.0
        %2665 = vmatprep.subr.mxu0 0.0
        %2666 = vmatpush2.msra.mxu0 0.0
        %2667 = vmatprep.subr.mxu0 0.0
        %2668 = vmatpush2.msra.mxu0 0.0
        %2669 = vmatprep.subr.mxu0 0.0
        %2670 = vmatpush2.msra.mxu0 0.0
        %2671 = vmatprep.subr.mxu0 0.0
        %2672 = vmatpush2.msra.mxu0 0.0
        %2673 = vmatprep.subr.mxu0 0.0
        %2674 = vmatpush2.msra.mxu0 0.0
        %2675 = vmatprep.subr.mxu0 0.0
        %2676 = vmatpush2.msra.mxu0 0.0
        %2677 = vmatprep.subr.mxu0 0.0
        %2678 = vmatpush2.msra.mxu0 0.0
        %2679 = vmatprep.subr.mxu0 0.0
        %2680 = vmatpush2.msra.mxu0 0.0
        %2681 = vmatprep.subr.mxu0 0.0
        %2682 = vmatpush2.msra.mxu0 0.0
        %2683 = vmatprep.subr.mxu0 0.0
        %2684 = vmatpush2.msra.mxu0 0.0
        %2685 = vmatprep.subr.mxu0 0.0
        %2686 = vmatpush2.msra.mxu0 0.0
        %2687 = vmatprep.mubr.f32.mxu0 0.0
        %2688 = vmatmul.mubr.f32.gmra.mxu0 %v2552
        %v2689 = vpop.f32.mrf.mxu0
        %v2690 = vadd.f32 0.0, %v2689
        %v2691 = vpop.f32.mrf.mxu0
        %v2692 = vadd.f32 0.0, %v2691
        %2693 = vdwg.mxu0
        %2694 = vmatprep.subr.mxu0 %v2622
        %2695 = vmatpush1.msra.mxu0 %v2621
        %2696 = vmatprep.subr.mxu0 %v2618
        %2697 = vmatpush1.msra.mxu0 %v2617
        %2698 = vmatprep.subr.mxu0 %v2614
        %2699 = vmatpush1.msra.mxu0 %v2613
        %2700 = vmatprep.subr.mxu0 %v2610
        %2701 = vmatpush1.msra.mxu0 %v2609
        %2702 = vmatprep.subr.mxu0 %v2606
        %2703 = vmatpush1.msra.mxu0 %v2605
        %2704 = vmatprep.subr.mxu0 %v2602
        %2705 = vmatpush1.msra.mxu0 %v2601
        %2706 = vmatprep.subr.mxu0 %v2598
        %2707 = vmatpush1.msra.mxu0 %v2597
        %2708 = vmatprep.subr.mxu0 %v2594
        %2709 = vmatpush1.msra.mxu0 %v2593
        %2710 = vmatprep.subr.mxu0 %v2590
        %2711 = vmatpush1.msra.mxu0 %v2589
        %2712 = vmatprep.subr.mxu0 %v2586
        %2713 = vmatpush1.msra.mxu0 %v2585
        %2714 = vmatprep.subr.mxu0 %v2582
        %2715 = vmatpush1.msra.mxu0 %v2581
        %2716 = vmatprep.subr.mxu0 %v2578
        %2717 = vmatpush1.msra.mxu0 %v2577
        %2718 = vmatprep.subr.mxu0 %v2574
        %2719 = vmatpush1.msra.mxu0 %v2573
        %2720 = vmatprep.subr.mxu0 %v2570
        %2721 = vmatpush1.msra.mxu0 %v2569
        %2722 = vmatprep.subr.mxu0 %v2566
        %2723 = vmatpush1.msra.mxu0 %v2565
        %2724 = vmatprep.subr.mxu0 %v2562
        %2725 = vmatpush1.msra.mxu0 %v2561
        %2726 = vmatprep.subr.mxu0 0.0
        %2727 = vmatpush2.msra.mxu0 0.0
        %2728 = vmatprep.subr.mxu0 0.0
        %2729 = vmatpush2.msra.mxu0 0.0
        %2730 = vmatprep.subr.mxu0 0.0
        %2731 = vmatpush2.msra.mxu0 0.0
        %2732 = vmatprep.subr.mxu0 0.0
        %2733 = vmatpush2.msra.mxu0 0.0
        %2734 = vmatprep.subr.mxu0 0.0
        %2735 = vmatpush2.msra.mxu0 0.0
        %2736 = vmatprep.subr.mxu0 0.0
        %2737 = vmatpush2.msra.mxu0 0.0
        %2738 = vmatprep.subr.mxu0 0.0
        %2739 = vmatpush2.msra.mxu0 0.0
        %2740 = vmatprep.subr.mxu0 0.0
        %2741 = vmatpush2.msra.mxu0 0.0
        %2742 = vmatprep.subr.mxu0 0.0
        %2743 = vmatpush2.msra.mxu0 0.0
        %2744 = vmatprep.subr.mxu0 0.0
        %2745 = vmatpush2.msra.mxu0 0.0
        %2746 = vmatprep.subr.mxu0 0.0
        %2747 = vmatpush2.msra.mxu0 0.0
        %2748 = vmatprep.subr.mxu0 0.0
        %2749 = vmatpush2.msra.mxu0 0.0
        %2750 = vmatprep.subr.mxu0 0.0
        %2751 = vmatpush2.msra.mxu0 0.0
        %2752 = vmatprep.subr.mxu0 0.0
        %2753 = vmatpush2.msra.mxu0 0.0
        %2754 = vmatprep.subr.mxu0 0.0
        %2755 = vmatpush2.msra.mxu0 0.0
        %2756 = vmatprep.subr.mxu0 0.0
        %2757 = vmatpush2.msra.mxu0 0.0
        %2758 = vmatprep.mubr.f32.mxu0 0.0
        %2759 = vmatmul.mubr.f32.gmra.mxu0 %v2552
        %v2760 = vpop.f32.mrf.mxu0
        %v2761 = vadd.f32 0.0, %v2760
        %v2762 = vpop.f32.mrf.mxu0
        %v2763 = vadd.f32 0.0, %v2762
        %2764 = vdwg.mxu0
        %v2765 = vadd.f32 %v2555, %v2690
        %v2766 = vadd.f32 %v2556, %v2692
        %v2767 = vadd.f32 %v2557, %v2761
        %v2768 = vadd.f32 %v2558, %v2763
        %v2769 = vxor.u32 %v2765, 2147483648
        %v2770 = vmul.f32 %v2769, 1.442695
        %v2771 = vpow.pop %v2770
        %v2772 = vadd.f32 %v2771, 1.0
        %v2773 = vrcp.pop %v2772
        %v2774 = vmul.f32 1.0, %v2773
        %v2775 = vxor.u32 %v2766, 2147483648
        %v2776 = vmul.f32 %v2775, 1.442695
        %v2777 = vpow.pop %v2776
        %v2778 = vadd.f32 %v2777, 1.0
        %v2779 = vrcp.pop %v2778
        %v2780 = vmul.f32 1.0, %v2779
        %v2781 = vtanh.pop %v2767
        %v2782 = vxor.u32 %v2768, 2147483648
        %v2783 = vmul.f32 %v2782, 1.442695
        %v2784 = vpow.pop %v2783
        %v2785 = vadd.f32 %v2784, 1.0
        %v2786 = vrcp.pop %v2785
        %v2787 = vmul.f32 1.0, %v2786
        %v2788 = vmul.f32 %v2780, %v2553
        %v2789 = vmul.f32 %v2774, %v2781
        %v2790 = vadd.f32 %v2788, %v2789
        %v2791 = vtanh.pop %v2790
        %v2792 = vmul.f32 %v2787, %v2791
        %2793 = vst [vmem:[#allocation4] sm:$0xff] %v2792
        %2794 = vst [vmem:[#allocation5] sm:$0xff] %v2790
        %s2795 = scalar_lea.vmem [#allocation2], 48
        %2796 = vst [vmem:[%s2795] sm:$0xff] %v2792
        %v2797 = vld [vmem:[#allocation4] sm:$0xff]
        %v2798 = vld [vmem:[#allocation5] sm:$0xff]
        %s2799 = scalar_lea.vmem [#allocation3], 224
        %v2800 = vld [vmem:[%s2799] sm:$0xff]
        %v2801 = vld [vmem:[%s2799 + $0x8] sm:$0xff]
        %v2802 = vld [vmem:[%s2799 + $0x10] sm:$0xff]
        %v2803 = vld [vmem:[%s2799 + $0x18] sm:$0xff]
        %v2804 = vld [vmem:[%s313] sm:$0xff]
        %v2805 = vld [vmem:[%s313 + $0x8] sm:$0xff]
        %v2806 = vld [vmem:[%s313 + $0x10] sm:$0xff]
        %v2807 = vld [vmem:[%s313 + $0x18] sm:$0xff]
        %v2808 = vld [vmem:[%s313 + $0x20] sm:$0xff]
        %v2809 = vld [vmem:[%s313 + $0x28] sm:$0xff]
        %v2810 = vld [vmem:[%s313 + $0x30] sm:$0xff]
        %v2811 = vld [vmem:[%s313 + $0x38] sm:$0xff]
        %v2812 = vld [vmem:[%s313 + $0x40] sm:$0xff]
        %v2813 = vld [vmem:[%s313 + $0x48] sm:$0xff]
        %v2814 = vld [vmem:[%s313 + $0x50] sm:$0xff]
        %v2815 = vld [vmem:[%s313 + $0x58] sm:$0xff]
        %v2816 = vld [vmem:[%s313 + $0x60] sm:$0xff]
        %v2817 = vld [vmem:[%s313 + $0x68] sm:$0xff]
        %v2818 = vld [vmem:[%s313 + $0x70] sm:$0xff]
        %v2819 = vld [vmem:[%s313 + $0x78] sm:$0xff]
        %v2820 = vld [vmem:[%s313 + $0x80] sm:$0xff]
        %v2821 = vld [vmem:[%s313 + $0x88] sm:$0xff]
        %v2822 = vld [vmem:[%s313 + $0x90] sm:$0xff]
        %v2823 = vld [vmem:[%s313 + $0x98] sm:$0xff]
        %v2824 = vld [vmem:[%s313 + $0xa0] sm:$0xff]
        %v2825 = vld [vmem:[%s313 + $0xa8] sm:$0xff]
        %v2826 = vld [vmem:[%s313 + $0xb0] sm:$0xff]
        %v2827 = vld [vmem:[%s313 + $0xb8] sm:$0xff]
        %v2828 = vld [vmem:[%s313 + $0xc0] sm:$0xff]
        %v2829 = vld [vmem:[%s313 + $0xc8] sm:$0xff]
        %v2830 = vld [vmem:[%s313 + $0xd0] sm:$0xff]
        %v2831 = vld [vmem:[%s313 + $0xd8] sm:$0xff]
        %v2832 = vld [vmem:[%s313 + $0xe0] sm:$0xff]
        %v2833 = vld [vmem:[%s313 + $0xe8] sm:$0xff]
        %v2834 = vld [vmem:[%s313 + $0xf0] sm:$0xff]
        %v2835 = vld [vmem:[%s313 + $0xf8] sm:$0xff]
        %v2836 = vld [vmem:[%s313 + $0x100] sm:$0xff]
        %v2837 = vld [vmem:[%s313 + $0x108] sm:$0xff]
        %v2838 = vld [vmem:[%s313 + $0x110] sm:$0xff]
        %v2839 = vld [vmem:[%s313 + $0x118] sm:$0xff]
        %v2840 = vld [vmem:[%s313 + $0x120] sm:$0xff]
        %v2841 = vld [vmem:[%s313 + $0x128] sm:$0xff]
        %v2842 = vld [vmem:[%s313 + $0x130] sm:$0xff]
        %v2843 = vld [vmem:[%s313 + $0x138] sm:$0xff]
        %v2844 = vld [vmem:[%s313 + $0x140] sm:$0xff]
        %v2845 = vld [vmem:[%s313 + $0x148] sm:$0xff]
        %v2846 = vld [vmem:[%s313 + $0x150] sm:$0xff]
        %v2847 = vld [vmem:[%s313 + $0x158] sm:$0xff]
        %v2848 = vld [vmem:[%s313 + $0x160] sm:$0xff]
        %v2849 = vld [vmem:[%s313 + $0x168] sm:$0xff]
        %v2850 = vld [vmem:[%s313 + $0x170] sm:$0xff]
        %v2851 = vld [vmem:[%s313 + $0x178] sm:$0xff]
        %v2852 = vld [vmem:[%s313 + $0x180] sm:$0xff]
        %v2853 = vld [vmem:[%s313 + $0x188] sm:$0xff]
        %v2854 = vld [vmem:[%s313 + $0x190] sm:$0xff]
        %v2855 = vld [vmem:[%s313 + $0x198] sm:$0xff]
        %v2856 = vld [vmem:[%s313 + $0x1a0] sm:$0xff]
        %v2857 = vld [vmem:[%s313 + $0x1a8] sm:$0xff]
        %v2858 = vld [vmem:[%s313 + $0x1b0] sm:$0xff]
        %v2859 = vld [vmem:[%s313 + $0x1b8] sm:$0xff]
        %v2860 = vld [vmem:[%s313 + $0x1c0] sm:$0xff]
        %v2861 = vld [vmem:[%s313 + $0x1c8] sm:$0xff]
        %v2862 = vld [vmem:[%s313 + $0x1d0] sm:$0xff]
        %v2863 = vld [vmem:[%s313 + $0x1d8] sm:$0xff]
        %v2864 = vld [vmem:[%s313 + $0x1e0] sm:$0xff]
        %v2865 = vld [vmem:[%s313 + $0x1e8] sm:$0xff]
        %v2866 = vld [vmem:[%s313 + $0x1f0] sm:$0xff]
        %v2867 = vld [vmem:[%s313 + $0x1f8] sm:$0xff]
        %2868 = vmatprep.subr.mxu0 %v2865
        %2869 = vmatpush1.msra.mxu0 %v2864
        %2870 = vmatprep.subr.mxu0 %v2861
        %2871 = vmatpush1.msra.mxu0 %v2860
        %2872 = vmatprep.subr.mxu0 %v2857
        %2873 = vmatpush1.msra.mxu0 %v2856
        %2874 = vmatprep.subr.mxu0 %v2853
        %2875 = vmatpush1.msra.mxu0 %v2852
        %2876 = vmatprep.subr.mxu0 %v2849
        %2877 = vmatpush1.msra.mxu0 %v2848
        %2878 = vmatprep.subr.mxu0 %v2845
        %2879 = vmatpush1.msra.mxu0 %v2844
        %2880 = vmatprep.subr.mxu0 %v2841
        %2881 = vmatpush1.msra.mxu0 %v2840
        %2882 = vmatprep.subr.mxu0 %v2837
        %2883 = vmatpush1.msra.mxu0 %v2836
        %2884 = vmatprep.subr.mxu0 %v2833
        %2885 = vmatpush1.msra.mxu0 %v2832
        %2886 = vmatprep.subr.mxu0 %v2829
        %2887 = vmatpush1.msra.mxu0 %v2828
        %2888 = vmatprep.subr.mxu0 %v2825
        %2889 = vmatpush1.msra.mxu0 %v2824
        %2890 = vmatprep.subr.mxu0 %v2821
        %2891 = vmatpush1.msra.mxu0 %v2820
        %2892 = vmatprep.subr.mxu0 %v2817
        %2893 = vmatpush1.msra.mxu0 %v2816
        %2894 = vmatprep.subr.mxu0 %v2813
        %2895 = vmatpush1.msra.mxu0 %v2812
        %2896 = vmatprep.subr.mxu0 %v2809
        %2897 = vmatpush1.msra.mxu0 %v2808
        %2898 = vmatprep.subr.mxu0 %v2805
        %2899 = vmatpush1.msra.mxu0 %v2804
        %2900 = vmatprep.subr.mxu0 0.0
        %2901 = vmatpush2.msra.mxu0 0.0
        %2902 = vmatprep.subr.mxu0 0.0
        %2903 = vmatpush2.msra.mxu0 0.0
        %2904 = vmatprep.subr.mxu0 0.0
        %2905 = vmatpush2.msra.mxu0 0.0
        %2906 = vmatprep.subr.mxu0 0.0
        %2907 = vmatpush2.msra.mxu0 0.0
        %2908 = vmatprep.subr.mxu0 0.0
        %2909 = vmatpush2.msra.mxu0 0.0
        %2910 = vmatprep.subr.mxu0 0.0
        %2911 = vmatpush2.msra.mxu0 0.0
        %2912 = vmatprep.subr.mxu0 0.0
        %2913 = vmatpush2.msra.mxu0 0.0
        %2914 = vmatprep.subr.mxu0 0.0
        %2915 = vmatpush2.msra.mxu0 0.0
        %2916 = vmatprep.subr.mxu0 0.0
        %2917 = vmatpush2.msra.mxu0 0.0
        %2918 = vmatprep.subr.mxu0 0.0
        %2919 = vmatpush2.msra.mxu0 0.0
        %2920 = vmatprep.subr.mxu0 0.0
        %2921 = vmatpush2.msra.mxu0 0.0
        %2922 = vmatprep.subr.mxu0 0.0
        %2923 = vmatpush2.msra.mxu0 0.0
        %2924 = vmatprep.subr.mxu0 0.0
        %2925 = vmatpush2.msra.mxu0 0.0
        %2926 = vmatprep.subr.mxu0 0.0
        %2927 = vmatpush2.msra.mxu0 0.0
        %2928 = vmatprep.subr.mxu0 0.0
        %2929 = vmatpush2.msra.mxu0 0.0
        %2930 = vmatprep.subr.mxu0 0.0
        %2931 = vmatpush2.msra.mxu0 0.0
        %2932 = vmatprep.mubr.f32.mxu0 0.0
        %2933 = vmatmul.mubr.f32.gmra.mxu0 %v2797
        %v2934 = vpop.f32.mrf.mxu0
        %v2935 = vadd.f32 0.0, %v2934
        %v2936 = vpop.f32.mrf.mxu0
        %v2937 = vadd.f32 0.0, %v2936
        %2938 = vdwg.mxu0
        %2939 = vmatprep.subr.mxu0 %v2867
        %2940 = vmatpush1.msra.mxu0 %v2866
        %2941 = vmatprep.subr.mxu0 %v2863
        %2942 = vmatpush1.msra.mxu0 %v2862
        %2943 = vmatprep.subr.mxu0 %v2859
        %2944 = vmatpush1.msra.mxu0 %v2858
        %2945 = vmatprep.subr.mxu0 %v2855
        %2946 = vmatpush1.msra.mxu0 %v2854
        %2947 = vmatprep.subr.mxu0 %v2851
        %2948 = vmatpush1.msra.mxu0 %v2850
        %2949 = vmatprep.subr.mxu0 %v2847
        %2950 = vmatpush1.msra.mxu0 %v2846
        %2951 = vmatprep.subr.mxu0 %v2843
        %2952 = vmatpush1.msra.mxu0 %v2842
        %2953 = vmatprep.subr.mxu0 %v2839
        %2954 = vmatpush1.msra.mxu0 %v2838
        %2955 = vmatprep.subr.mxu0 %v2835
        %2956 = vmatpush1.msra.mxu0 %v2834
        %2957 = vmatprep.subr.mxu0 %v2831
        %2958 = vmatpush1.msra.mxu0 %v2830
        %2959 = vmatprep.subr.mxu0 %v2827
        %2960 = vmatpush1.msra.mxu0 %v2826
        %2961 = vmatprep.subr.mxu0 %v2823
        %2962 = vmatpush1.msra.mxu0 %v2822
        %2963 = vmatprep.subr.mxu0 %v2819
        %2964 = vmatpush1.msra.mxu0 %v2818
        %2965 = vmatprep.subr.mxu0 %v2815
        %2966 = vmatpush1.msra.mxu0 %v2814
        %2967 = vmatprep.subr.mxu0 %v2811
        %2968 = vmatpush1.msra.mxu0 %v2810
        %2969 = vmatprep.subr.mxu0 %v2807
        %2970 = vmatpush1.msra.mxu0 %v2806
        %2971 = vmatprep.subr.mxu0 0.0
        %2972 = vmatpush2.msra.mxu0 0.0
        %2973 = vmatprep.subr.mxu0 0.0
        %2974 = vmatpush2.msra.mxu0 0.0
        %2975 = vmatprep.subr.mxu0 0.0
        %2976 = vmatpush2.msra.mxu0 0.0
        %2977 = vmatprep.subr.mxu0 0.0
        %2978 = vmatpush2.msra.mxu0 0.0
        %2979 = vmatprep.subr.mxu0 0.0
        %2980 = vmatpush2.msra.mxu0 0.0
        %2981 = vmatprep.subr.mxu0 0.0
        %2982 = vmatpush2.msra.mxu0 0.0
        %2983 = vmatprep.subr.mxu0 0.0
        %2984 = vmatpush2.msra.mxu0 0.0
        %2985 = vmatprep.subr.mxu0 0.0
        %2986 = vmatpush2.msra.mxu0 0.0
        %2987 = vmatprep.subr.mxu0 0.0
        %2988 = vmatpush2.msra.mxu0 0.0
        %2989 = vmatprep.subr.mxu0 0.0
        %2990 = vmatpush2.msra.mxu0 0.0
        %2991 = vmatprep.subr.mxu0 0.0
        %2992 = vmatpush2.msra.mxu0 0.0
        %2993 = vmatprep.subr.mxu0 0.0
        %2994 = vmatpush2.msra.mxu0 0.0
        %2995 = vmatprep.subr.mxu0 0.0
        %2996 = vmatpush2.msra.mxu0 0.0
        %2997 = vmatprep.subr.mxu0 0.0
        %2998 = vmatpush2.msra.mxu0 0.0
        %2999 = vmatprep.subr.mxu0 0.0
        %3000 = vmatpush2.msra.mxu0 0.0
        %3001 = vmatprep.subr.mxu0 0.0
        %3002 = vmatpush2.msra.mxu0 0.0
        %3003 = vmatprep.mubr.f32.mxu0 0.0
        %3004 = vmatmul.mubr.f32.gmra.mxu0 %v2797
        %v3005 = vpop.f32.mrf.mxu0
        %v3006 = vadd.f32 0.0, %v3005
        %v3007 = vpop.f32.mrf.mxu0
        %v3008 = vadd.f32 0.0, %v3007
        %3009 = vdwg.mxu0
        %v3010 = vadd.f32 %v2800, %v2935
        %v3011 = vadd.f32 %v2801, %v2937
        %v3012 = vadd.f32 %v2802, %v3006
        %v3013 = vadd.f32 %v2803, %v3008
        %v3014 = vxor.u32 %v3010, 2147483648
        %v3015 = vmul.f32 %v3014, 1.442695
        %v3016 = vpow.pop %v3015
        %v3017 = vadd.f32 %v3016, 1.0
        %v3018 = vrcp.pop %v3017
        %v3019 = vmul.f32 1.0, %v3018
        %v3020 = vxor.u32 %v3011, 2147483648
        %v3021 = vmul.f32 %v3020, 1.442695
        %v3022 = vpow.pop %v3021
        %v3023 = vadd.f32 %v3022, 1.0
        %v3024 = vrcp.pop %v3023
        %v3025 = vmul.f32 1.0, %v3024
        %v3026 = vtanh.pop %v3012
        %v3027 = vxor.u32 %v3013, 2147483648
        %v3028 = vmul.f32 %v3027, 1.442695
        %v3029 = vpow.pop %v3028
        %v3030 = vadd.f32 %v3029, 1.0
        %v3031 = vrcp.pop %v3030
        %v3032 = vmul.f32 1.0, %v3031
        %v3033 = vmul.f32 %v3025, %v2798
        %v3034 = vmul.f32 %v3019, %v3026
        %v3035 = vadd.f32 %v3033, %v3034
        %v3036 = vtanh.pop %v3035
        %v3037 = vmul.f32 %v3032, %v3036
        %3038 = vst [vmem:[#allocation4] sm:$0xff] %v3037
        %3039 = vst [vmem:[#allocation5] sm:$0xff] %v3035
        %s3040 = scalar_lea.vmem [#allocation2], 56
        %3041 = vst [vmem:[%s3040] sm:$0xff] %v3037
        %p3042 = scmp.eq.s32.totalorder %s28, 1
        // Predicated region
        $region65: #{lstm_classifier_forward.1} parent=43 // pred_check
          %p3043 = pneg %p3042
        $region66: #{lstm_classifier_forward.1} parent=43 // pred_check_branch
          %3045 = sbr.rel (%p3043) target = $region68
        $region67: #{lstm_classifier_forward.1} parent=43 // pred_region
          %v3046 = vld [vmem:[#allocation4] sm:$0xff]
          %v3047 = vld [vmem:[#allocation10] sm:$0xff]
          %v3048 = vld [vmem:[#allocation10 + $0x8] sm:$0xff]
          %v3049 = vld [vmem:[#allocation10 + $0x10] sm:$0xff]
          %v3050 = vld [vmem:[#allocation10 + $0x18] sm:$0xff]
          %v3051 = vld [vmem:[#allocation10 + $0x20] sm:$0xff]
          %v3052 = vld [vmem:[#allocation10 + $0x28] sm:$0xff]
          %v3053 = vld [vmem:[#allocation10 + $0x30] sm:$0xff]
          %v3054 = vld [vmem:[#allocation10 + $0x38] sm:$0xff]
          %v3055 = vld [vmem:[#allocation10 + $0x40] sm:$0xff]
          %v3056 = vld [vmem:[#allocation10 + $0x48] sm:$0xff]
          %v3057 = vld [vmem:[#allocation10 + $0x50] sm:$0xff]
          %v3058 = vld [vmem:[#allocation10 + $0x58] sm:$0xff]
          %v3059 = vld [vmem:[#allocation10 + $0x60] sm:$0xff]
          %v3060 = vld [vmem:[#allocation10 + $0x68] sm:$0xff]
          %v3061 = vld [vmem:[#allocation10 + $0x70] sm:$0xff]
          %v3062 = vld [vmem:[#allocation10 + $0x78] sm:$0xff]
          %v3063 = vld [vmem:[%s5] sm:$0x1]
          %v3065 = vlaneseq
          %v3066 = vshrl.u32 %v3065, 7
          %v3067 = vsub.s32 0, %v3066
          %v3068 = vrot.slane %v3063, %v3067
          %3070 = vmatprep.subr.mxu0 0.0
          %3071 = vmatpush1.msra.mxu0 %v3062
          %3072 = vmatprep.subr.mxu0 0.0
          %3073 = vmatpush1.msra.mxu0 %v3061
          %3074 = vmatprep.subr.mxu0 0.0
          %3075 = vmatpush1.msra.mxu0 %v3060
          %3076 = vmatprep.subr.mxu0 0.0
          %3077 = vmatpush1.msra.mxu0 %v3059
          %3078 = vmatprep.subr.mxu0 0.0
          %3079 = vmatpush1.msra.mxu0 %v3058
          %3080 = vmatprep.subr.mxu0 0.0
          %3081 = vmatpush1.msra.mxu0 %v3057
          %3082 = vmatprep.subr.mxu0 0.0
          %3083 = vmatpush1.msra.mxu0 %v3056
          %3084 = vmatprep.subr.mxu0 0.0
          %3085 = vmatpush1.msra.mxu0 %v3055
          %3086 = vmatprep.subr.mxu0 0.0
          %3087 = vmatpush1.msra.mxu0 %v3054
          %3088 = vmatprep.subr.mxu0 0.0
          %3089 = vmatpush1.msra.mxu0 %v3053
          %3090 = vmatprep.subr.mxu0 0.0
          %3091 = vmatpush1.msra.mxu0 %v3052
          %3092 = vmatprep.subr.mxu0 0.0
          %3093 = vmatpush1.msra.mxu0 %v3051
          %3094 = vmatprep.subr.mxu0 0.0
          %3095 = vmatpush1.msra.mxu0 %v3050
          %3096 = vmatprep.subr.mxu0 0.0
          %3097 = vmatpush1.msra.mxu0 %v3049
          %3098 = vmatprep.subr.mxu0 0.0
          %3099 = vmatpush1.msra.mxu0 %v3048
          %3100 = vmatprep.subr.mxu0 0.0
          %3101 = vmatpush1.msra.mxu0 %v3047
          %3102 = vmatprep.subr.mxu0 0.0
          %3103 = vmatpush2.msra.mxu0 0.0
          %3104 = vmatprep.subr.mxu0 0.0
          %3105 = vmatpush2.msra.mxu0 0.0
          %3106 = vmatprep.subr.mxu0 0.0
          %3107 = vmatpush2.msra.mxu0 0.0
          %3108 = vmatprep.subr.mxu0 0.0
          %3109 = vmatpush2.msra.mxu0 0.0
          %3110 = vmatprep.subr.mxu0 0.0
          %3111 = vmatpush2.msra.mxu0 0.0
          %3112 = vmatprep.subr.mxu0 0.0
          %3113 = vmatpush2.msra.mxu0 0.0
          %3114 = vmatprep.subr.mxu0 0.0
          %3115 = vmatpush2.msra.mxu0 0.0
          %3116 = vmatprep.subr.mxu0 0.0
          %3117 = vmatpush2.msra.mxu0 0.0
          %3118 = vmatprep.subr.mxu0 0.0
          %3119 = vmatpush2.msra.mxu0 0.0
          %3120 = vmatprep.subr.mxu0 0.0
          %3121 = vmatpush2.msra.mxu0 0.0
          %3122 = vmatprep.subr.mxu0 0.0
          %3123 = vmatpush2.msra.mxu0 0.0
          %3124 = vmatprep.subr.mxu0 0.0
          %3125 = vmatpush2.msra.mxu0 0.0
          %3126 = vmatprep.subr.mxu0 0.0
          %3127 = vmatpush2.msra.mxu0 0.0
          %3128 = vmatprep.subr.mxu0 0.0
          %3129 = vmatpush2.msra.mxu0 0.0
          %3130 = vmatprep.subr.mxu0 0.0
          %3131 = vmatpush2.msra.mxu0 0.0
          %3132 = vmatprep.subr.mxu0 0.0
          %3133 = vmatpush2.msra.mxu0 0.0
          %3134 = vmatprep.mubr.f32.mxu0 0.0
          %3135 = vmatmul.mubr.f32.gmra.mxu0 %v3046
          %v3136 = vpop.f32.mrf.mxu0
          %v3137 = vadd.f32 %v3068, %v3136
          %v3138 = vpop.f32.mrf.mxu0
          %3139 = vdwg.mxu0
          %3140 = vst [vmem:[%s369] sm:$0xff] %v3137
        $region68: #{lstm_classifier_forward.1} parent=43 // pred_fallthru
          _
        %p3141 = scmp.lt.s32.totalorder %s27, 0
        %s3142 = scalar_select %p3141, %s27, 0
        %s3143 = smul.addr %s3142, 8
        %s3144 = scalar_lea.vmem %s6, %s3143
        // Predicated region
        $region69: #{lstm_classifier_forward.1} parent=43 // pred_check
          %p3145 = pneg %p199
        $region70: #{lstm_classifier_forward.1} parent=43 // pred_check_branch
          %3147 = sbr.rel (%p3145) target = $region72
        $region71: #{lstm_classifier_forward.1} parent=43 // pred_region
          _
        $region72: #{lstm_classifier_forward.1} parent=43 // pred_fallthru
          _
        // Predicated region
        $region73: #{lstm_classifier_forward.1} parent=43 // pred_check
          %p3148 = pneg %p199
        $region74: #{lstm_classifier_forward.1} parent=43 // pred_check_branch
          %3150 = sbr.rel (%p3148) target = $region76
        $region75: #{lstm_classifier_forward.1} parent=43 // pred_region
          %p3151 = scmp.lt.s32.totalorder %s27, 0
          %s3152 = scalar_select %p3151, %s27, 0
          %s3153 = smul.addr %s3152, 8
          %s3154 = scalar_lea.vmem %s6, %s3153
        $region76: #{lstm_classifier_forward.1} parent=43 // pred_fallthru
          _
      $region44: #{lstm_classifier_forward.1} parent=5 // pred_fallthru
        _
      %p3155 = scmp.le.s32.totalorder 2, %s18
      // Predicated region
      $region77: #{lstm_classifier_forward.1} parent=5 // pred_check
        %p3156 = pneg %p3155
      $region78: #{lstm_classifier_forward.1} parent=5 // pred_check_branch
        %3158 = sbr.rel (%p3156) target = $region80
      $region79: #{lstm_classifier_forward.1} parent=5 // pred_region
        %s3159 = ssub.s32 %s18, 2
      $region80: #{lstm_classifier_forward.1} parent=5 // pred_fallthru
        _
    $region6: #{lstm_classifier_forward.1} parent=1 // loop_footer
      %s22 = sadd.s32 1, %s18
    $region7: #{lstm_classifier_forward.1} parent=1 // loop_footer_branch
      %17 = sbr.rel target = $region3
    $region8: #{lstm_classifier_forward.1} parent=1 // loop_exit
      _
    %3160 = vsyncpa [#allocation7], 1
    %s3161 = scalar_lea.sflag [#allocation7], 1
    %3162 = vsyncpa %s3161, 1
    %3163 = vsyncpa [#allocation9], 1
    %s3164 = scalar_lea.sflag [#allocation9], 1
    %3165 = vsyncpa %s3164, 1

</llo_original>
